<compile_context>
chip_gen: v6e
topology: v6e:2x2x1
jax: 0.10.0
libtpu: 0.0.40
codegen_flags: <defaults>
</compile_context>

<pallas_src>
import math
from functools import partial

import jax
import jax.numpy as jnp
import numpy as np
from jax.experimental import pallas as pl
from jax.experimental.pallas import tpu as pltpu

HIDDEN = 32
NUM_HEADS = 4
HEAD_DIM = HIDDEN // NUM_HEADS
LN_EPS = 1e-5


# ----------------------------------------------------------------------------
# Fused Pallas kernel: [site MHA + res + LN] -> [temporal MHA + res + LN]
# ----------------------------------------------------------------------------
def _fused_kernel(x_ref, w_ref, b_ref, m_ref, o_ref, *, num_heads, head_dim):
    Rb = x_ref.shape[1]
    C = x_ref.shape[2]
    x = x_ref[0].astype(jnp.float32)                                   # (Rb, C)

    # Static per-head lane masks (1, C): avoids lane slicing / concatenation.
    lane = jax.lax.broadcasted_iota(jnp.int32, (1, C), 1)
    head_masks = [
        jnp.logical_and(lane >= h * head_dim,
                        lane < (h + 1) * head_dim).astype(jnp.float32)
        for h in range(num_heads)
    ]

    def attn_ln(xin, stage):
        # w_ref[stage]: (4, C, C) = [wq_t*scale, wk_t, wv_t, wo_t]
        # b_ref[stage]: (6, 1, C) = [bq*scale, bk, bv, bo, gamma, beta]
        # m_ref[stage]: (H*Rb, Rb) additive mask (0 in-group, -1e30 otherwise),
        #               already tiled across heads host-side.
        q = jnp.dot(xin, w_ref[stage, 0], preferred_element_type=jnp.float32) + b_ref[stage, 0]
        k = jnp.dot(xin, w_ref[stage, 1], preferred_element_type=jnp.float32) + b_ref[stage, 1]
        v = jnp.dot(xin, w_ref[stage, 2], preferred_element_type=jnp.float32) + b_ref[stage, 2]

        # Stack all heads along rows: head h occupies rows [h*Rb, (h+1)*Rb).
        qm = jnp.concatenate([q * hm for hm in head_masks], axis=0)    # (H*Rb, C)

        # All-head scores in ONE matmul; contract last dims (no explicit k.T).
        s = jax.lax.dot_general(qm, k, (((1,), (1,)), ((), ())),
                                preferred_element_type=jnp.float32)    # (H*Rb, Rb)
        s = s + m_ref[stage]
        s = s - jnp.max(s, axis=-1, keepdims=True)
        p = jnp.exp(s)
        p = p * pl.reciprocal(jnp.sum(p, axis=-1, keepdims=True), approx=True)

        pv = jnp.dot(p, v, preferred_element_type=jnp.float32)         # (H*Rb, C)

        # Reduce the head-stacked row blocks back to (Rb, C) with the disjoint
        # lane masks (static, sublane-aligned slices: Rb is a multiple of 8).
        attn = pv[0:Rb, :] * head_masks[0]
        for h in range(1, num_heads):
            attn = attn + pv[h * Rb:(h + 1) * Rb, :] * head_masks[h]

        y = jnp.dot(attn, w_ref[stage, 3],
                    preferred_element_type=jnp.float32) + b_ref[stage, 3] + xin
        mean = jnp.mean(y, axis=-1, keepdims=True)
        var = jnp.mean(jnp.square(y - mean), axis=-1, keepdims=True)
        return (y - mean) * jax.lax.rsqrt(var + LN_EPS) * b_ref[stage, 4] + b_ref[stage, 5]

    h1 = attn_ln(x, 0)                      # site attention + residual + LN
    out = attn_ln(h1, 1)                    # temporal attention + residual + LN
    o_ref[0] = out.astype(o_ref.dtype)


# ----------------------------------------------------------------------------
# Host-side packing / launch
# ----------------------------------------------------------------------------
def _pack_params(params, head_dim):
    """Pack per-stage weights/vectors; fold 1/sqrt(head_dim) into wq/bq ONCE."""
    scale = 1.0 / math.sqrt(head_dim)

    def one(p):
        w = jnp.stack([p["wq_t"] * scale, p["wk_t"], p["wv_t"], p["wo_t"]], 0)   # (4,C,C)
        b = jnp.stack([p["bq"] * scale, p["bk"], p["bv"], p["bo"],
                       p["gamma"], p["beta"]], 0)                                 # (6,1,C)
        return w, b

    ws, bs = one(params["site"])
    wt, bt = one(params["temporal"])
    return jnp.stack([ws, wt], 0), jnp.stack([bs, bt], 0)   # (2,4,C,C), (2,6,1,C)


def _choose_batch_per_step(N, R):
    """Batch elements packed into one slab per grid step.

    Single-TC chips (v5e/v6e): merge the whole batch -> fewest grid steps and
    tallest matmuls.  Multi-TC chips (v7x, v4/v5p megacore): keep >= 2 grid
    steps so both TensorCores stay busy.  Capped so (nb*R)^2 softmax/mask cost
    stays modest.
    """
    cap = max(1, 256 // R)
    kind = ""
    try:
        kind = jax.devices()[0].device_kind.lower()
    except Exception:  # pragma: no cover - defensive
        pass
    multi_tc = any(t in kind for t in ("v7", "v4", "v5p"))
    if multi_tc and N >= 2:
        nb = N // 2 if N % 2 == 0 else 1
    else:
        nb = N
    return max(1, min(nb, cap))


def cross_site_temporal_attention(site_features, params, batch_per_step=None):
    stacked = jnp.stack(site_features, axis=1)          # (N, num_sites, L, C)
    N, num_sites, L, C = stacked.shape
    R = num_sites * L                                    # row r = s*L + l
    x = stacked.reshape(N, R, C)

    nb = batch_per_step if batch_per_step is not None else _choose_batch_per_step(N, R)
    nb = max(1, min(nb, N))
    n_pad = (-N) % nb
    if n_pad:
        x = jnp.concatenate([x, jnp.zeros((n_pad, R, C), x.dtype)], axis=0)
    nsteps = (N + n_pad) // nb
    Rb = nb * R
    x = x.reshape(nsteps, Rb, C)                         # slab row = b*R + s*L + l

    w_all, b_all = _pack_params(params, HEAD_DIM)

    # Block-diagonal (batch-in-slab x group) additive masks, tiled across heads
    # host-side so the kernel adds them to the head-stacked (H*Rb, Rb) scores.
    rows = np.arange(Rb)
    b_idx = rows // R
    s_idx = (rows % R) // L
    l_idx = rows % L
    same_b = b_idx[:, None] == b_idx[None, :]
    site_m = np.where(same_b & (l_idx[:, None] == l_idx[None, :]), 0.0, -1e30)
    temp_m = np.where(same_b & (s_idx[:, None] == s_idx[None, :]), 0.0, -1e30)
    masks = jnp.asarray(
        np.stack([np.tile(site_m, (NUM_HEADS, 1)),
                  np.tile(temp_m, (NUM_HEADS, 1))], axis=0), jnp.float32)  # (2,H*Rb,Rb)

    def const_spec(a):
        nd = a.ndim
        return pl.BlockSpec(a.shape, lambda i, _nd=nd: (0,) * _nd)

    out = pl.pallas_call(
        partial(_fused_kernel, num_heads=NUM_HEADS, head_dim=HEAD_DIM),
        out_shape=jax.ShapeDtypeStruct((nsteps, Rb, C), x.dtype),
        grid=(nsteps,),
        in_specs=[pl.BlockSpec((1, Rb, C), lambda i: (i, 0, 0)),
                  const_spec(w_all), const_spec(b_all), const_spec(masks)],
        out_specs=pl.BlockSpec((1, Rb, C), lambda i: (i, 0, 0)),
        compiler_params=pltpu.CompilerParams(dimension_semantics=("parallel",)),
    )(x, w_all, b_all, masks)

    out = out.reshape(nsteps * nb, R, C)[:N].reshape(N, num_sites, L, C)
    return [out[:, i, :, :] for i in range(num_sites)]


# ----------------------------------------------------------------------------
# Pure-JAX reference (same math, no Pallas) for a correctness check
# ----------------------------------------------------------------------------
def _mha_ln_ref(x, p):
    B, S, C = x.shape
    q = x @ p["wq_t"] + p["bq"]
    k = x @ p["wk_t"] + p["bk"]
    v = x @ p["wv_t"] + p["bv"]
    qh = q.reshape(B, S, NUM_HEADS, HEAD_DIM)
    kh = k.reshape(B, S, NUM_HEADS, HEAD_DIM)
    vh = v.reshape(B, S, NUM_HEADS, HEAD_DIM)
    s = jnp.einsum("bshd,bthd->bhst", qh, kh) / math.sqrt(HEAD_DIM)
    p_attn = jax.nn.softmax(s, axis=-1)
    o = jnp.einsum("bhst,bthd->bshd", p_attn, vh).reshape(B, S, C)
    y = o @ p["wo_t"] + p["bo"] + x
    mean = jnp.mean(y, axis=-1, keepdims=True)
    var = jnp.mean((y - mean) ** 2, axis=-1, keepdims=True)
    return (y - mean) * jax.lax.rsqrt(var + LN_EPS) * p["gamma"] + p["beta"]


def _ref_forward(site_features, params):
    stacked = jnp.stack(site_features, axis=1)
    N, num_sites, L, C = stacked.shape
    reshaped = jnp.transpose(stacked, (0, 2, 1, 3)).reshape(N * L, num_sites, C)
    site_out = _mha_ln_ref(reshaped, params["site"])
    t_in = jnp.transpose(site_out.reshape(N, L, num_sites, C), (0, 2, 1, 3))
    t_out = _mha_ln_ref(t_in.reshape(N * num_sites, L, C), params["temporal"])
    out = t_out.reshape(N, num_sites, L, C)
    return [out[:, i, :, :] for i in range(num_sites)]


# ----------------------------------------------------------------------------
# Deterministic parameter init (same shapes as nn.MultiheadAttention/LayerNorm)
# ----------------------------------------------------------------------------
def init_attention_block(key, hidden):
    ks = jax.random.split(key, 4)
    scale = 1.0 / math.sqrt(hidden)

    def w(k):
        return jax.random.uniform(k, (hidden, hidden), jnp.float32,
                                  minval=-scale, maxval=scale)

    return {
        "wq_t": w(ks[0]), "wk_t": w(ks[1]), "wv_t": w(ks[2]), "wo_t": w(ks[3]),
        "bq": jnp.zeros((1, hidden), jnp.float32),
        "bk": jnp.zeros((1, hidden), jnp.float32),
        "bv": jnp.zeros((1, hidden), jnp.float32),
        "bo": jnp.zeros((1, hidden), jnp.float32),
        "gamma": jnp.ones((1, hidden), jnp.float32),   # LayerNorm weight
        "beta": jnp.zeros((1, hidden), jnp.float32),   # LayerNorm bias
    }


if __name__ == "__main__":
    N, NUM_SITES, L, C = 2, 3, 8, HIDDEN

    key = jax.random.PRNGKey(0)
    k_params, k_data = jax.random.split(key)
    kp1, kp2 = jax.random.split(k_params)
    params = {
        "site": init_attention_block(kp1, C),
        "temporal": init_attention_block(kp2, C),
    }

    data_keys = jax.random.split(k_data, NUM_SITES)
    site_features = [jax.random.normal(k, (N, L, C), jnp.float32)
                     for k in data_keys]

    outputs = cross_site_temporal_attention(site_features, params)
    outputs = jax.block_until_ready(outputs)

    ref_outputs = jax.block_until_ready(_ref_forward(site_features, params))
    for o, r in zip(outputs, ref_outputs):
        assert o.shape == (N, L, C)
        # Tolerance accounts for the EUP approximate reciprocal in the softmax.
        np.testing.assert_allclose(np.asarray(o), np.asarray(r),
                                   rtol=5e-3, atol=5e-3)

    print("KERNEL_OK")
</pallas_src>

<mosaic_0001>
module attributes {stable_mosaic.version = 11 : i64} {
  func.func @_fused_kernel(%arg0: i32, %arg1: memref<1x48x32xf32, #tpu.memory_space<vmem>>, %arg2: memref<2x4x32x32xf32, #tpu.memory_space<vmem>>, %arg3: memref<2x6x1x32xf32, #tpu.memory_space<vmem>>, %arg4: memref<2x192x48xf32, #tpu.memory_space<vmem>>, %arg5: memref<1x48x32xf32, #tpu.memory_space<vmem>>) attributes {dimension_semantics = [#tpu.dimension_semantics<parallel>], iteration_bounds = array<i64: 1>, scalar_prefetch = 0 : i64, scratch_operands = 0 : i64, tpu.core_type = #tpu.core_type<tc>, window_params = [{transform_indices = @transform_0, window_bounds = array<i64: 1, 48, 32>}, {pipeline_mode = #tpu.pipeline_mode<synchronous>, transform_indices = @transform_1, window_bounds = array<i64: 2, 4, 32, 32>}, {pipeline_mode = #tpu.pipeline_mode<synchronous>, transform_indices = @transform_2, window_bounds = array<i64: 2, 6, 1, 32>}, {pipeline_mode = #tpu.pipeline_mode<synchronous>, transform_indices = @transform_3, window_bounds = array<i64: 2, 192, 48>}, {transform_indices = @transform_4, window_bounds = array<i64: 1, 48, 32>}]} {
    %c0 = arith.constant 0 : index
    %c0_0 = arith.constant 0 : index
    %c0_1 = arith.constant 0 : index
    %0 = vector.load %arg1[%c0, %c0_0, %c0_1] : memref<1x48x32xf32, #tpu.memory_space<vmem>>, vector<1x48x32xf32>
    %1 = vector.shape_cast %0 : vector<1x48x32xf32> to vector<48x32xf32>
    %2 = tpu.iota {dimensions = array<i32: 1>} : vector<1x32xi32>
    %c0_i32 = arith.constant 0 : i32
    %3 = vector.broadcast %c0_i32 : i32 to vector<1x32xi32>
    %4 = arith.cmpi sge, %2, %3 : vector<1x32xi32>
    %c8_i32 = arith.constant 8 : i32
    %5 = vector.broadcast %c8_i32 : i32 to vector<1x32xi32>
    %6 = arith.cmpi slt, %2, %5 : vector<1x32xi32>
    %7 = arith.andi %4, %6 : vector<1x32xi1>
    %8 = arith.extui %7 : vector<1x32xi1> to vector<1x32xi32>
    %9 = arith.sitofp %8 : vector<1x32xi32> to vector<1x32xf32>
    %c8_i32_2 = arith.constant 8 : i32
    %10 = vector.broadcast %c8_i32_2 : i32 to vector<1x32xi32>
    %11 = arith.cmpi sge, %2, %10 : vector<1x32xi32>
    %c16_i32 = arith.constant 16 : i32
    %12 = vector.broadcast %c16_i32 : i32 to vector<1x32xi32>
    %13 = arith.cmpi slt, %2, %12 : vector<1x32xi32>
    %14 = arith.andi %11, %13 : vector<1x32xi1>
    %15 = arith.extui %14 : vector<1x32xi1> to vector<1x32xi32>
    %16 = arith.sitofp %15 : vector<1x32xi32> to vector<1x32xf32>
    %c16_i32_3 = arith.constant 16 : i32
    %17 = vector.broadcast %c16_i32_3 : i32 to vector<1x32xi32>
    %18 = arith.cmpi sge, %2, %17 : vector<1x32xi32>
    %c24_i32 = arith.constant 24 : i32
    %19 = vector.broadcast %c24_i32 : i32 to vector<1x32xi32>
    %20 = arith.cmpi slt, %2, %19 : vector<1x32xi32>
    %21 = arith.andi %18, %20 : vector<1x32xi1>
    %22 = arith.extui %21 : vector<1x32xi1> to vector<1x32xi32>
    %23 = arith.sitofp %22 : vector<1x32xi32> to vector<1x32xf32>
    %c24_i32_4 = arith.constant 24 : i32
    %24 = vector.broadcast %c24_i32_4 : i32 to vector<1x32xi32>
    %25 = arith.cmpi sge, %2, %24 : vector<1x32xi32>
    %c32_i32 = arith.constant 32 : i32
    %26 = vector.broadcast %c32_i32 : i32 to vector<1x32xi32>
    %27 = arith.cmpi slt, %2, %26 : vector<1x32xi32>
    %28 = arith.andi %25, %27 : vector<1x32xi1>
    %29 = arith.extui %28 : vector<1x32xi1> to vector<1x32xi32>
    %30 = arith.sitofp %29 : vector<1x32xi32> to vector<1x32xf32>
    %c0_5 = arith.constant 0 : index
    %c0_6 = arith.constant 0 : index
    %c0_7 = arith.constant 0 : index
    %c0_8 = arith.constant 0 : index
    %31 = vector.load %arg2[%c0_5, %c0_6, %c0_7, %c0_8] : memref<2x4x32x32xf32, #tpu.memory_space<vmem>>, vector<1x1x32x32xf32>
    %32 = vector.shape_cast %31 : vector<1x1x32x32xf32> to vector<32x32xf32>
    %cst = arith.constant dense<0.000000e+00> : vector<48x32xf32>
    %33 = tpu.matmul %1, %32, %cst {dimension_numbers = #tpu.dot_dimension_numbers<[1], [0], [0], [1], [0, 0, 1, 1], [], []>} : vector<48x32xf32>, vector<32x32xf32>, vector<48x32xf32> -> vector<48x32xf32>
    %c0_9 = arith.constant 0 : index
    %c0_10 = arith.constant 0 : index
    %c0_11 = arith.constant 0 : index
    %c0_12 = arith.constant 0 : index
    %34 = vector.load %arg3[%c0_9, %c0_10, %c0_11, %c0_12] : memref<2x6x1x32xf32, #tpu.memory_space<vmem>>, vector<1x1x1x32xf32>
    %35 = vector.shape_cast %34 : vector<1x1x1x32xf32> to vector<1x32xf32>
    %36 = vector.broadcast %35 : vector<1x32xf32> to vector<48x32xf32>
    %37 = arith.addf %33, %36 : vector<48x32xf32>
    %c0_13 = arith.constant 0 : index
    %c1 = arith.constant 1 : index
    %c0_14 = arith.constant 0 : index
    %c0_15 = arith.constant 0 : index
    %38 = vector.load %arg2[%c0_13, %c1, %c0_14, %c0_15] : memref<2x4x32x32xf32, #tpu.memory_space<vmem>>, vector<1x1x32x32xf32>
    %39 = vector.shape_cast %38 : vector<1x1x32x32xf32> to vector<32x32xf32>
    %cst_16 = arith.constant dense<0.000000e+00> : vector<48x32xf32>
    %40 = tpu.matmul %1, %39, %cst_16 {dimension_numbers = #tpu.dot_dimension_numbers<[1], [0], [0], [1], [0, 0, 1, 1], [], []>} : vector<48x32xf32>, vector<32x32xf32>, vector<48x32xf32> -> vector<48x32xf32>
    %c0_17 = arith.constant 0 : index
    %c1_18 = arith.constant 1 : index
    %c0_19 = arith.constant 0 : index
    %c0_20 = arith.constant 0 : index
    %41 = vector.load %arg3[%c0_17, %c1_18, %c0_19, %c0_20] : memref<2x6x1x32xf32, #tpu.memory_space<vmem>>, vector<1x1x1x32xf32>
    %42 = vector.shape_cast %41 : vector<1x1x1x32xf32> to vector<1x32xf32>
    %43 = vector.broadcast %42 : vector<1x32xf32> to vector<48x32xf32>
    %44 = arith.addf %40, %43 : vector<48x32xf32>
    %c0_21 = arith.constant 0 : index
    %c2 = arith.constant 2 : index
    %c0_22 = arith.constant 0 : index
    %c0_23 = arith.constant 0 : index
    %45 = vector.load %arg2[%c0_21, %c2, %c0_22, %c0_23] : memref<2x4x32x32xf32, #tpu.memory_space<vmem>>, vector<1x1x32x32xf32>
    %46 = vector.shape_cast %45 : vector<1x1x32x32xf32> to vector<32x32xf32>
    %cst_24 = arith.constant dense<0.000000e+00> : vector<48x32xf32>
    %47 = tpu.matmul %1, %46, %cst_24 {dimension_numbers = #tpu.dot_dimension_numbers<[1], [0], [0], [1], [0, 0, 1, 1], [], []>} : vector<48x32xf32>, vector<32x32xf32>, vector<48x32xf32> -> vector<48x32xf32>
    %c0_25 = arith.constant 0 : index
    %c2_26 = arith.constant 2 : index
    %c0_27 = arith.constant 0 : index
    %c0_28 = arith.constant 0 : index
    %48 = vector.load %arg3[%c0_25, %c2_26, %c0_27, %c0_28] : memref<2x6x1x32xf32, #tpu.memory_space<vmem>>, vector<1x1x1x32xf32>
    %49 = vector.shape_cast %48 : vector<1x1x1x32xf32> to vector<1x32xf32>
    %50 = vector.broadcast %49 : vector<1x32xf32> to vector<48x32xf32>
    %51 = arith.addf %47, %50 : vector<48x32xf32>
    %52 = vector.broadcast %9 : vector<1x32xf32> to vector<48x32xf32>
    %53 = arith.mulf %37, %52 : vector<48x32xf32>
    %54 = vector.broadcast %16 : vector<1x32xf32> to vector<48x32xf32>
    %55 = arith.mulf %37, %54 : vector<48x32xf32>
    %56 = vector.broadcast %23 : vector<1x32xf32> to vector<48x32xf32>
    %57 = arith.mulf %37, %56 : vector<48x32xf32>
    %58 = vector.broadcast %30 : vector<1x32xf32> to vector<48x32xf32>
    %59 = arith.mulf %37, %58 : vector<48x32xf32>
    %60 = tpu.concatenate %53, %55, %57, %59 in 0 : vector<48x32xf32>, vector<48x32xf32>, vector<48x32xf32>, vector<48x32xf32> -> vector<192x32xf32>
    %cst_29 = arith.constant dense<0.000000e+00> : vector<192x48xf32>
    %61 = tpu.matmul %60, %44, %cst_29 {dimension_numbers = #tpu.dot_dimension_numbers<[1], [1], [0], [0], [0, 0, 1, 0], [], []>} : vector<192x32xf32>, vector<48x32xf32>, vector<192x48xf32> -> vector<192x48xf32>
    %c0_30 = arith.constant 0 : index
    %c0_31 = arith.constant 0 : index
    %c0_32 = arith.constant 0 : index
    %62 = vector.load %arg4[%c0_30, %c0_31, %c0_32] : memref<2x192x48xf32, #tpu.memory_space<vmem>>, vector<1x192x48xf32>
    %63 = vector.shape_cast %62 : vector<1x192x48xf32> to vector<192x48xf32>
    %64 = arith.addf %61, %63 : vector<192x48xf32>
    %cst_33 = arith.constant dense<0xFF800000> : vector<192xf32>
    %65 = vector.multi_reduction <maximumf>, %64, %cst_33 [1] : vector<192x48xf32> to vector<192xf32>
    %66 = vector.shape_cast %65 : vector<192xf32> to vector<192x1xf32>
    %67 = vector.broadcast %66 : vector<192x1xf32> to vector<192x48xf32>
    %68 = arith.subf %64, %67 : vector<192x48xf32>
    %69 = math.exp %68 : vector<192x48xf32>
    %cst_34 = arith.constant dense<0.000000e+00> : vector<192xf32>
    %70 = vector.multi_reduction <add>, %69, %cst_34 [1] : vector<192x48xf32> to vector<192xf32>
    %71 = vector.shape_cast %70 : vector<192xf32> to vector<192x1xf32>
    %72 = tpu.reciprocal %71 {approx = true} : vector<192x1xf32> -> vector<192x1xf32>
    %73 = vector.broadcast %72 : vector<192x1xf32> to vector<192x48xf32>
    %74 = arith.mulf %69, %73 : vector<192x48xf32>
    %cst_35 = arith.constant dense<0.000000e+00> : vector<192x32xf32>
    %75 = tpu.matmul %74, %51, %cst_35 {dimension_numbers = #tpu.dot_dimension_numbers<[1], [0], [0], [1], [0, 0, 1, 1], [], []>} : vector<192x48xf32>, vector<48x32xf32>, vector<192x32xf32> -> vector<192x32xf32>
    %76 = vector.extract_strided_slice %75 {offsets = [0, 0], sizes = [48, 32], strides = [1, 1]} : vector<192x32xf32> to vector<48x32xf32>
    %77 = vector.broadcast %9 : vector<1x32xf32> to vector<48x32xf32>
    %78 = arith.mulf %76, %77 : vector<48x32xf32>
    %79 = vector.extract_strided_slice %75 {offsets = [48, 0], sizes = [48, 32], strides = [1, 1]} : vector<192x32xf32> to vector<48x32xf32>
    %80 = vector.broadcast %16 : vector<1x32xf32> to vector<48x32xf32>
    %81 = arith.mulf %79, %80 : vector<48x32xf32>
    %82 = arith.addf %78, %81 : vector<48x32xf32>
    %83 = vector.extract_strided_slice %75 {offsets = [96, 0], sizes = [48, 32], strides = [1, 1]} : vector<192x32xf32> to vector<48x32xf32>
    %84 = vector.broadcast %23 : vector<1x32xf32> to vector<48x32xf32>
    %85 = arith.mulf %83, %84 : vector<48x32xf32>
    %86 = arith.addf %82, %85 : vector<48x32xf32>
    %87 = vector.extract_strided_slice %75 {offsets = [144, 0], sizes = [48, 32], strides = [1, 1]} : vector<192x32xf32> to vector<48x32xf32>
    %88 = vector.broadcast %30 : vector<1x32xf32> to vector<48x32xf32>
    %89 = arith.mulf %87, %88 : vector<48x32xf32>
    %90 = arith.addf %86, %89 : vector<48x32xf32>
    %c0_36 = arith.constant 0 : index
    %c3 = arith.constant 3 : index
    %c0_37 = arith.constant 0 : index
    %c0_38 = arith.constant 0 : index
    %91 = vector.load %arg2[%c0_36, %c3, %c0_37, %c0_38] : memref<2x4x32x32xf32, #tpu.memory_space<vmem>>, vector<1x1x32x32xf32>
    %92 = vector.shape_cast %91 : vector<1x1x32x32xf32> to vector<32x32xf32>
    %cst_39 = arith.constant dense<0.000000e+00> : vector<48x32xf32>
    %93 = tpu.matmul %90, %92, %cst_39 {dimension_numbers = #tpu.dot_dimension_numbers<[1], [0], [0], [1], [0, 0, 1, 1], [], []>} : vector<48x32xf32>, vector<32x32xf32>, vector<48x32xf32> -> vector<48x32xf32>
    %c0_40 = arith.constant 0 : index
    %c3_41 = arith.constant 3 : index
    %c0_42 = arith.constant 0 : index
    %c0_43 = arith.constant 0 : index
    %94 = vector.load %arg3[%c0_40, %c3_41, %c0_42, %c0_43] : memref<2x6x1x32xf32, #tpu.memory_space<vmem>>, vector<1x1x1x32xf32>
    %95 = vector.shape_cast %94 : vector<1x1x1x32xf32> to vector<1x32xf32>
    %96 = vector.broadcast %95 : vector<1x32xf32> to vector<48x32xf32>
    %97 = arith.addf %93, %96 : vector<48x32xf32>
    %98 = arith.addf %97, %1 : vector<48x32xf32>
    %cst_44 = arith.constant dense<0.000000e+00> : vector<48xf32>
    %99 = vector.multi_reduction <add>, %98, %cst_44 [1] : vector<48x32xf32> to vector<48xf32>
    %100 = vector.shape_cast %99 : vector<48xf32> to vector<48x1xf32>
    %cst_45 = arith.constant 3.200000e+01 : f32
    %101 = vector.broadcast %cst_45 : f32 to vector<48x1xf32>
    %102 = arith.divf %100, %101 : vector<48x1xf32>
    %103 = vector.broadcast %102 : vector<48x1xf32> to vector<48x32xf32>
    %104 = arith.subf %98, %103 : vector<48x32xf32>
    %105 = arith.mulf %104, %104 : vector<48x32xf32>
    %cst_46 = arith.constant dense<0.000000e+00> : vector<48xf32>
    %106 = vector.multi_reduction <add>, %105, %cst_46 [1] : vector<48x32xf32> to vector<48xf32>
    %107 = vector.shape_cast %106 : vector<48xf32> to vector<48x1xf32>
    %cst_47 = arith.constant 3.200000e+01 : f32
    %108 = vector.broadcast %cst_47 : f32 to vector<48x1xf32>
    %109 = arith.divf %107, %108 : vector<48x1xf32>
    %110 = vector.broadcast %102 : vector<48x1xf32> to vector<48x32xf32>
    %111 = arith.subf %98, %110 : vector<48x32xf32>
    %cst_48 = arith.constant 9.99999974E-6 : f32
    %112 = vector.broadcast %cst_48 : f32 to vector<48x1xf32>
    %113 = arith.addf %109, %112 : vector<48x1xf32>
    %114 = math.rsqrt %113 : vector<48x1xf32>
    %115 = vector.broadcast %114 : vector<48x1xf32> to vector<48x32xf32>
    %116 = arith.mulf %111, %115 : vector<48x32xf32>
    %c0_49 = arith.constant 0 : index
    %c4 = arith.constant 4 : index
    %c0_50 = arith.constant 0 : index
    %c0_51 = arith.constant 0 : index
    %117 = vector.load %arg3[%c0_49, %c4, %c0_50, %c0_51] : memref<2x6x1x32xf32, #tpu.memory_space<vmem>>, vector<1x1x1x32xf32>
    %118 = vector.shape_cast %117 : vector<1x1x1x32xf32> to vector<1x32xf32>
    %119 = vector.broadcast %118 : vector<1x32xf32> to vector<48x32xf32>
    %120 = arith.mulf %116, %119 : vector<48x32xf32>
    %c0_52 = arith.constant 0 : index
    %c5 = arith.constant 5 : index
    %c0_53 = arith.constant 0 : index
    %c0_54 = arith.constant 0 : index
    %121 = vector.load %arg3[%c0_52, %c5, %c0_53, %c0_54] : memref<2x6x1x32xf32, #tpu.memory_space<vmem>>, vector<1x1x1x32xf32>
    %122 = vector.shape_cast %121 : vector<1x1x1x32xf32> to vector<1x32xf32>
    %123 = vector.broadcast %122 : vector<1x32xf32> to vector<48x32xf32>
    %124 = arith.addf %120, %123 : vector<48x32xf32>
    %c1_55 = arith.constant 1 : index
    %c0_56 = arith.constant 0 : index
    %c0_57 = arith.constant 0 : index
    %c0_58 = arith.constant 0 : index
    %125 = vector.load %arg2[%c1_55, %c0_56, %c0_57, %c0_58] : memref<2x4x32x32xf32, #tpu.memory_space<vmem>>, vector<1x1x32x32xf32>
    %126 = vector.shape_cast %125 : vector<1x1x32x32xf32> to vector<32x32xf32>
    %cst_59 = arith.constant dense<0.000000e+00> : vector<48x32xf32>
    %127 = tpu.matmul %124, %126, %cst_59 {dimension_numbers = #tpu.dot_dimension_numbers<[1], [0], [0], [1], [0, 0, 1, 1], [], []>} : vector<48x32xf32>, vector<32x32xf32>, vector<48x32xf32> -> vector<48x32xf32>
    %c1_60 = arith.constant 1 : index
    %c0_61 = arith.constant 0 : index
    %c0_62 = arith.constant 0 : index
    %c0_63 = arith.constant 0 : index
    %128 = vector.load %arg3[%c1_60, %c0_61, %c0_62, %c0_63] : memref<2x6x1x32xf32, #tpu.memory_space<vmem>>, vector<1x1x1x32xf32>
    %129 = vector.shape_cast %128 : vector<1x1x1x32xf32> to vector<1x32xf32>
    %130 = vector.broadcast %129 : vector<1x32xf32> to vector<48x32xf32>
    %131 = arith.addf %127, %130 : vector<48x32xf32>
    %c1_64 = arith.constant 1 : index
    %c1_65 = arith.constant 1 : index
    %c0_66 = arith.constant 0 : index
    %c0_67 = arith.constant 0 : index
    %132 = vector.load %arg2[%c1_64, %c1_65, %c0_66, %c0_67] : memref<2x4x32x32xf32, #tpu.memory_space<vmem>>, vector<1x1x32x32xf32>
    %133 = vector.shape_cast %132 : vector<1x1x32x32xf32> to vector<32x32xf32>
    %cst_68 = arith.constant dense<0.000000e+00> : vector<48x32xf32>
    %134 = tpu.matmul %124, %133, %cst_68 {dimension_numbers = #tpu.dot_dimension_numbers<[1], [0], [0], [1], [0, 0, 1, 1], [], []>} : vector<48x32xf32>, vector<32x32xf32>, vector<48x32xf32> -> vector<48x32xf32>
    %c1_69 = arith.constant 1 : index
    %c1_70 = arith.constant 1 : index
    %c0_71 = arith.constant 0 : index
    %c0_72 = arith.constant 0 : index
    %135 = vector.load %arg3[%c1_69, %c1_70, %c0_71, %c0_72] : memref<2x6x1x32xf32, #tpu.memory_space<vmem>>, vector<1x1x1x32xf32>
    %136 = vector.shape_cast %135 : vector<1x1x1x32xf32> to vector<1x32xf32>
    %137 = vector.broadcast %136 : vector<1x32xf32> to vector<48x32xf32>
    %138 = arith.addf %134, %137 : vector<48x32xf32>
    %c1_73 = arith.constant 1 : index
    %c2_74 = arith.constant 2 : index
    %c0_75 = arith.constant 0 : index
    %c0_76 = arith.constant 0 : index
    %139 = vector.load %arg2[%c1_73, %c2_74, %c0_75, %c0_76] : memref<2x4x32x32xf32, #tpu.memory_space<vmem>>, vector<1x1x32x32xf32>
    %140 = vector.shape_cast %139 : vector<1x1x32x32xf32> to vector<32x32xf32>
    %cst_77 = arith.constant dense<0.000000e+00> : vector<48x32xf32>
    %141 = tpu.matmul %124, %140, %cst_77 {dimension_numbers = #tpu.dot_dimension_numbers<[1], [0], [0], [1], [0, 0, 1, 1], [], []>} : vector<48x32xf32>, vector<32x32xf32>, vector<48x32xf32> -> vector<48x32xf32>
    %c1_78 = arith.constant 1 : index
    %c2_79 = arith.constant 2 : index
    %c0_80 = arith.constant 0 : index
    %c0_81 = arith.constant 0 : index
    %142 = vector.load %arg3[%c1_78, %c2_79, %c0_80, %c0_81] : memref<2x6x1x32xf32, #tpu.memory_space<vmem>>, vector<1x1x1x32xf32>
    %143 = vector.shape_cast %142 : vector<1x1x1x32xf32> to vector<1x32xf32>
    %144 = vector.broadcast %143 : vector<1x32xf32> to vector<48x32xf32>
    %145 = arith.addf %141, %144 : vector<48x32xf32>
    %146 = vector.broadcast %9 : vector<1x32xf32> to vector<48x32xf32>
    %147 = arith.mulf %131, %146 : vector<48x32xf32>
    %148 = vector.broadcast %16 : vector<1x32xf32> to vector<48x32xf32>
    %149 = arith.mulf %131, %148 : vector<48x32xf32>
    %150 = vector.broadcast %23 : vector<1x32xf32> to vector<48x32xf32>
    %151 = arith.mulf %131, %150 : vector<48x32xf32>
    %152 = vector.broadcast %30 : vector<1x32xf32> to vector<48x32xf32>
    %153 = arith.mulf %131, %152 : vector<48x32xf32>
    %154 = tpu.concatenate %147, %149, %151, %153 in 0 : vector<48x32xf32>, vector<48x32xf32>, vector<48x32xf32>, vector<48x32xf32> -> vector<192x32xf32>
    %cst_82 = arith.constant dense<0.000000e+00> : vector<192x48xf32>
    %155 = tpu.matmul %154, %138, %cst_82 {dimension_numbers = #tpu.dot_dimension_numbers<[1], [1], [0], [0], [0, 0, 1, 0], [], []>} : vector<192x32xf32>, vector<48x32xf32>, vector<192x48xf32> -> vector<192x48xf32>
    %c1_83 = arith.constant 1 : index
    %c0_84 = arith.constant 0 : index
    %c0_85 = arith.constant 0 : index
    %156 = vector.load %arg4[%c1_83, %c0_84, %c0_85] : memref<2x192x48xf32, #tpu.memory_space<vmem>>, vector<1x192x48xf32>
    %157 = vector.shape_cast %156 : vector<1x192x48xf32> to vector<192x48xf32>
    %158 = arith.addf %155, %157 : vector<192x48xf32>
    %cst_86 = arith.constant dense<0xFF800000> : vector<192xf32>
    %159 = vector.multi_reduction <maximumf>, %158, %cst_86 [1] : vector<192x48xf32> to vector<192xf32>
    %160 = vector.shape_cast %159 : vector<192xf32> to vector<192x1xf32>
    %161 = vector.broadcast %160 : vector<192x1xf32> to vector<192x48xf32>
    %162 = arith.subf %158, %161 : vector<192x48xf32>
    %163 = math.exp %162 : vector<192x48xf32>
    %cst_87 = arith.constant dense<0.000000e+00> : vector<192xf32>
    %164 = vector.multi_reduction <add>, %163, %cst_87 [1] : vector<192x48xf32> to vector<192xf32>
    %165 = vector.shape_cast %164 : vector<192xf32> to vector<192x1xf32>
    %166 = tpu.reciprocal %165 {approx = true} : vector<192x1xf32> -> vector<192x1xf32>
    %167 = vector.broadcast %166 : vector<192x1xf32> to vector<192x48xf32>
    %168 = arith.mulf %163, %167 : vector<192x48xf32>
    %cst_88 = arith.constant dense<0.000000e+00> : vector<192x32xf32>
    %169 = tpu.matmul %168, %145, %cst_88 {dimension_numbers = #tpu.dot_dimension_numbers<[1], [0], [0], [1], [0, 0, 1, 1], [], []>} : vector<192x48xf32>, vector<48x32xf32>, vector<192x32xf32> -> vector<192x32xf32>
    %170 = vector.extract_strided_slice %169 {offsets = [0, 0], sizes = [48, 32], strides = [1, 1]} : vector<192x32xf32> to vector<48x32xf32>
    %171 = vector.broadcast %9 : vector<1x32xf32> to vector<48x32xf32>
    %172 = arith.mulf %170, %171 : vector<48x32xf32>
    %173 = vector.extract_strided_slice %169 {offsets = [48, 0], sizes = [48, 32], strides = [1, 1]} : vector<192x32xf32> to vector<48x32xf32>
    %174 = vector.broadcast %16 : vector<1x32xf32> to vector<48x32xf32>
    %175 = arith.mulf %173, %174 : vector<48x32xf32>
    %176 = arith.addf %172, %175 : vector<48x32xf32>
    %177 = vector.extract_strided_slice %169 {offsets = [96, 0], sizes = [48, 32], strides = [1, 1]} : vector<192x32xf32> to vector<48x32xf32>
    %178 = vector.broadcast %23 : vector<1x32xf32> to vector<48x32xf32>
    %179 = arith.mulf %177, %178 : vector<48x32xf32>
    %180 = arith.addf %176, %179 : vector<48x32xf32>
    %181 = vector.extract_strided_slice %169 {offsets = [144, 0], sizes = [48, 32], strides = [1, 1]} : vector<192x32xf32> to vector<48x32xf32>
    %182 = vector.broadcast %30 : vector<1x32xf32> to vector<48x32xf32>
    %183 = arith.mulf %181, %182 : vector<48x32xf32>
    %184 = arith.addf %180, %183 : vector<48x32xf32>
    %c1_89 = arith.constant 1 : index
    %c3_90 = arith.constant 3 : index
    %c0_91 = arith.constant 0 : index
    %c0_92 = arith.constant 0 : index
    %185 = vector.load %arg2[%c1_89, %c3_90, %c0_91, %c0_92] : memref<2x4x32x32xf32, #tpu.memory_space<vmem>>, vector<1x1x32x32xf32>
    %186 = vector.shape_cast %185 : vector<1x1x32x32xf32> to vector<32x32xf32>
    %cst_93 = arith.constant dense<0.000000e+00> : vector<48x32xf32>
    %187 = tpu.matmul %184, %186, %cst_93 {dimension_numbers = #tpu.dot_dimension_numbers<[1], [0], [0], [1], [0, 0, 1, 1], [], []>} : vector<48x32xf32>, vector<32x32xf32>, vector<48x32xf32> -> vector<48x32xf32>
    %c1_94 = arith.constant 1 : index
    %c3_95 = arith.constant 3 : index
    %c0_96 = arith.constant 0 : index
    %c0_97 = arith.constant 0 : index
    %188 = vector.load %arg3[%c1_94, %c3_95, %c0_96, %c0_97] : memref<2x6x1x32xf32, #tpu.memory_space<vmem>>, vector<1x1x1x32xf32>
    %189 = vector.shape_cast %188 : vector<1x1x1x32xf32> to vector<1x32xf32>
    %190 = vector.broadcast %189 : vector<1x32xf32> to vector<48x32xf32>
    %191 = arith.addf %187, %190 : vector<48x32xf32>
    %192 = arith.addf %191, %124 : vector<48x32xf32>
    %cst_98 = arith.constant dense<0.000000e+00> : vector<48xf32>
    %193 = vector.multi_reduction <add>, %192, %cst_98 [1] : vector<48x32xf32> to vector<48xf32>
    %194 = vector.shape_cast %193 : vector<48xf32> to vector<48x1xf32>
    %cst_99 = arith.constant 3.200000e+01 : f32
    %195 = vector.broadcast %cst_99 : f32 to vector<48x1xf32>
    %196 = arith.divf %194, %195 : vector<48x1xf32>
    %197 = vector.broadcast %196 : vector<48x1xf32> to vector<48x32xf32>
    %198 = arith.subf %192, %197 : vector<48x32xf32>
    %199 = arith.mulf %198, %198 : vector<48x32xf32>
    %cst_100 = arith.constant dense<0.000000e+00> : vector<48xf32>
    %200 = vector.multi_reduction <add>, %199, %cst_100 [1] : vector<48x32xf32> to vector<48xf32>
    %201 = vector.shape_cast %200 : vector<48xf32> to vector<48x1xf32>
    %cst_101 = arith.constant 3.200000e+01 : f32
    %202 = vector.broadcast %cst_101 : f32 to vector<48x1xf32>
    %203 = arith.divf %201, %202 : vector<48x1xf32>
    %204 = vector.broadcast %196 : vector<48x1xf32> to vector<48x32xf32>
    %205 = arith.subf %192, %204 : vector<48x32xf32>
    %cst_102 = arith.constant 9.99999974E-6 : f32
    %206 = vector.broadcast %cst_102 : f32 to vector<48x1xf32>
    %207 = arith.addf %203, %206 : vector<48x1xf32>
    %208 = math.rsqrt %207 : vector<48x1xf32>
    %209 = vector.broadcast %208 : vector<48x1xf32> to vector<48x32xf32>
    %210 = arith.mulf %205, %209 : vector<48x32xf32>
    %c1_103 = arith.constant 1 : index
    %c4_104 = arith.constant 4 : index
    %c0_105 = arith.constant 0 : index
    %c0_106 = arith.constant 0 : index
    %211 = vector.load %arg3[%c1_103, %c4_104, %c0_105, %c0_106] : memref<2x6x1x32xf32, #tpu.memory_space<vmem>>, vector<1x1x1x32xf32>
    %212 = vector.shape_cast %211 : vector<1x1x1x32xf32> to vector<1x32xf32>
    %213 = vector.broadcast %212 : vector<1x32xf32> to vector<48x32xf32>
    %214 = arith.mulf %210, %213 : vector<48x32xf32>
    %c1_107 = arith.constant 1 : index
    %c5_108 = arith.constant 5 : index
    %c0_109 = arith.constant 0 : index
    %c0_110 = arith.constant 0 : index
    %215 = vector.load %arg3[%c1_107, %c5_108, %c0_109, %c0_110] : memref<2x6x1x32xf32, #tpu.memory_space<vmem>>, vector<1x1x1x32xf32>
    %216 = vector.shape_cast %215 : vector<1x1x1x32xf32> to vector<1x32xf32>
    %217 = vector.broadcast %216 : vector<1x32xf32> to vector<48x32xf32>
    %218 = arith.addf %214, %217 : vector<48x32xf32>
    %c0_111 = arith.constant 0 : index
    %c0_112 = arith.constant 0 : index
    %c0_113 = arith.constant 0 : index
    %219 = vector.load %arg5[%c0_111, %c0_112, %c0_113] : memref<1x48x32xf32, #tpu.memory_space<vmem>>, vector<1x48x32xf32>
    %220 = vector.shape_cast %219 : vector<1x48x32xf32> to vector<48x32xf32>
    %221 = vector.shape_cast %218 : vector<48x32xf32> to vector<1x48x32xf32>
    tpu.vector_store %arg5[%c0_111, %c0_112, %c0_113], %221 {strides = array<i32>} : memref<1x48x32xf32, #tpu.memory_space<vmem>>, vector<1x48x32xf32>,
    return
  }
  func.func @transform_0(%arg0: i32) -> (i32, i32, i32) {
    %c0_i32 = arith.constant 0 : i32
    %c0_i32_0 = arith.constant 0 : i32
    %c0_i32_1 = arith.constant 0 : i32
    return %arg0, %c0_i32, %c0_i32_0 : i32, i32, i32
  }
  func.func @transform_1(%arg0: i32) -> (i32, i32, i32, i32) {
    %c0_i32 = arith.constant 0 : i32
    %c0_i32_0 = arith.constant 0 : i32
    %c0_i32_1 = arith.constant 0 : i32
    %c0_i32_2 = arith.constant 0 : i32
    %c0_i32_3 = arith.constant 0 : i32
    return %c0_i32, %c0_i32_0, %c0_i32_1, %c0_i32_2 : i32, i32, i32, i32
  }
  func.func @transform_2(%arg0: i32) -> (i32, i32, i32, i32) {
    %c0_i32 = arith.constant 0 : i32
    %c0_i32_0 = arith.constant 0 : i32
    %c0_i32_1 = arith.constant 0 : i32
    %c0_i32_2 = arith.constant 0 : i32
    %c0_i32_3 = arith.constant 0 : i32
    return %c0_i32, %c0_i32_0, %c0_i32_1, %c0_i32_2 : i32, i32, i32, i32
  }
  func.func @transform_3(%arg0: i32) -> (i32, i32, i32) {
    %c0_i32 = arith.constant 0 : i32
    %c0_i32_0 = arith.constant 0 : i32
    %c0_i32_1 = arith.constant 0 : i32
    %c0_i32_2 = arith.constant 0 : i32
    return %c0_i32, %c0_i32_0, %c0_i32_1 : i32, i32, i32
  }
  func.func @transform_4(%arg0: i32) -> (i32, i32, i32) {
    %c0_i32 = arith.constant 0 : i32
    %c0_i32_0 = arith.constant 0 : i32
    %c0_i32_1 = arith.constant 0 : i32
    return %arg0, %c0_i32, %c0_i32_0 : i32, i32, i32
  }
}

</mosaic_0001>

<llo_original>
// kernel: tpu_custom_call.1
$region0: #{tpu_custom_call.1}
  #allocation0 [shape = 'u32[]', space=smem, size = 0x4, offset = 0x4, fixed_abs, tag = 'smem constant byte address 0x4 - core index']
  #allocation1 [shape = 'u32[144,128]{1,0:T(1,128)}', space=vmem, size = 0x12000, scoped, tag = 'internal scratch']
  %s0 = inlined_call_operand.vmem [shape: f32[1,48,32], index: 0, kind: input, shape index: {}]
  %s1 = inlined_call_operand.vmem [shape: f32[2,4,32,32], index: 1, kind: input, shape index: {}]
  %s2 = inlined_call_operand.vmem [shape: f32[2,6,1,32], index: 2, kind: input, shape index: {}]
  %s3 = inlined_call_operand.vmem [shape: f32[2,192,48], index: 3, kind: input, shape index: {}]
  %s4 = inlined_call_operand.vmem [shape: f32[1,48,32], index: 4, kind: output, shape index: {}]
  %s5 = sld [smem:[#allocation0]]
  $region26: #{tpu_custom_call.1} parent=0
    _
  %s7 = ssub.s32 1, %s5
  %s8 = scalar_select 0, %s7, %s5
  // Predicated region
  $region2: #{tpu_custom_call.1} parent=0 // pred_check
    _
  $region3: #{tpu_custom_call.1} parent=0 // pred_check_branch
    %10 = sbr.rel (0) target = $region5
  $region4: #{tpu_custom_call.1} parent=0 // pred_region
    _
  $region5: #{tpu_custom_call.1} parent=0 // pred_fallthru
    _
  // Predicated region
  $region6: #{tpu_custom_call.1} parent=0 // pred_check
    _
  $region7: #{tpu_custom_call.1} parent=0 // pred_check_branch
    %12 = sbr.rel (0) target = $region9
  $region8: #{tpu_custom_call.1} parent=0 // pred_region
    _
  $region9: #{tpu_custom_call.1} parent=0 // pred_fallthru
    _
  // Predicated region
  $region10: #{tpu_custom_call.1} parent=0 // pred_check
    _
  $region11: #{tpu_custom_call.1} parent=0 // pred_check_branch
    %14 = sbr.rel (0) target = $region13
  $region12: #{tpu_custom_call.1} parent=0 // pred_region
    _
  $region13: #{tpu_custom_call.1} parent=0 // pred_fallthru
    _
  // Predicated region
  $region14: #{tpu_custom_call.1} parent=0 // pred_check
    _
  $region15: #{tpu_custom_call.1} parent=0 // pred_check_branch
    %16 = sbr.rel (0) target = $region17
  $region16: #{tpu_custom_call.1} parent=0 // pred_region
    _
  $region17: #{tpu_custom_call.1} parent=0 // pred_fallthru
    _
  %v17 = vld [vmem:[%s0] sm:$0xff]
  %v18 = vld [vmem:[%s0 + $0x8] sm:$0xff]
  %v19 = vld [vmem:[%s0 + $0x10] sm:$0xff]
  %v20 = vld [vmem:[%s0 + $0x18] sm:$0xff]
  %v21 = vld [vmem:[%s0 + $0x20] sm:$0xff]
  %v22 = vld [vmem:[%s0 + $0x28] sm:$0xff]
  %v23 = vlaneseq
  %v24 = vand.u32 %v23, 127
  %vm25 = vcmp.ge.s32.totalorder %v24, 0
  %vm26 = vcmp.lt.s32.totalorder %v24, 8
  %vm27 = vmand %vm25, %vm26
  %v28 = vsel %vm27, 1, 0
  %v29 = vcvt.s32.f32 %v28
  %vm30 = vcmp.ge.s32.totalorder %v24, 8
  %vm31 = vcmp.lt.s32.totalorder %v24, 16
  %vm32 = vmand %vm30, %vm31
  %v33 = vsel %vm32, 1, 0
  %v34 = vcvt.s32.f32 %v33
  %vm35 = vcmp.ge.s32.totalorder %v24, 16
  %vm36 = vcmp.lt.s32.totalorder %v24, 24
  %vm37 = vmand %vm35, %vm36
  %v38 = vsel %vm37, 1, 0
  %v39 = vcvt.s32.f32 %v38
  %vm40 = vcmp.ge.s32.totalorder %v24, 24
  %vm41 = vcmp.lt.s32.totalorder %v24, 32
  %vm42 = vmand %vm40, %vm41
  %v43 = vsel %vm42, 1, 0
  %v44 = vcvt.s32.f32 %v43
  %v45 = vld [vmem:[%s1] sm:$0xff]
  %v46 = vld [vmem:[%s1 + $0x8] sm:$0xff]
  %v47 = vld [vmem:[%s1 + $0x10] sm:$0xff]
  %v48 = vld [vmem:[%s1 + $0x18] sm:$0xff]
  %v49 = vld [vmem:[%s2] sm:$0x1]
  %v51 = vlaneseq
  %v52 = vshrl.u32 %v51, 7
  %v53 = vsub.s32 0, %v52
  %v54 = vrot.slane %v49, %v53
  %vm56 = vcmask 261120
  %v58 = vsel %vm56, %v17, 0
  %v61 = vsel %vm56, %v18, 0
  %v64 = vsel %vm56, %v19, 0
  %v67 = vsel %vm56, %v20, 0
  %v70 = vsel %vm56, %v21, 0
  %v73 = vsel %vm56, %v22, 0
  %75 = vmatprep.subr.mxu0 0.0
  %76 = vmatpush1.msra.mxu0 0.0
  %77 = vmatprep.subr.mxu0 0.0
  %78 = vmatpush1.msra.mxu0 0.0
  %79 = vmatprep.subr.mxu0 0.0
  %80 = vmatpush1.msra.mxu0 0.0
  %81 = vmatprep.subr.mxu0 0.0
  %82 = vmatpush1.msra.mxu0 0.0
  %83 = vmatprep.subr.mxu0 0.0
  %84 = vmatpush1.msra.mxu0 0.0
  %85 = vmatprep.subr.mxu0 0.0
  %86 = vmatpush1.msra.mxu0 0.0
  %87 = vmatprep.subr.mxu0 0.0
  %88 = vmatpush1.msra.mxu0 0.0
  %89 = vmatprep.subr.mxu0 0.0
  %90 = vmatpush1.msra.mxu0 0.0
  %91 = vmatprep.subr.mxu0 0.0
  %92 = vmatpush1.msra.mxu0 0.0
  %93 = vmatprep.subr.mxu0 0.0
  %94 = vmatpush1.msra.mxu0 0.0
  %95 = vmatprep.subr.mxu0 0.0
  %96 = vmatpush1.msra.mxu0 0.0
  %97 = vmatprep.subr.mxu0 0.0
  %98 = vmatpush1.msra.mxu0 0.0
  %99 = vmatprep.subr.mxu0 0.0
  %100 = vmatpush1.msra.mxu0 %v48
  %101 = vmatprep.subr.mxu0 0.0
  %102 = vmatpush1.msra.mxu0 %v47
  %103 = vmatprep.subr.mxu0 0.0
  %104 = vmatpush1.msra.mxu0 %v46
  %105 = vmatprep.subr.mxu0 0.0
  %106 = vmatpush1.msra.mxu0 %v45
  %107 = vmatprep.subr.mxu0 0.0
  %108 = vmatpush2.msra.mxu0 0.0
  %109 = vmatprep.subr.mxu0 0.0
  %110 = vmatpush2.msra.mxu0 0.0
  %111 = vmatprep.subr.mxu0 0.0
  %112 = vmatpush2.msra.mxu0 0.0
  %113 = vmatprep.subr.mxu0 0.0
  %114 = vmatpush2.msra.mxu0 0.0
  %115 = vmatprep.subr.mxu0 0.0
  %116 = vmatpush2.msra.mxu0 0.0
  %117 = vmatprep.subr.mxu0 0.0
  %118 = vmatpush2.msra.mxu0 0.0
  %119 = vmatprep.subr.mxu0 0.0
  %120 = vmatpush2.msra.mxu0 0.0
  %121 = vmatprep.subr.mxu0 0.0
  %122 = vmatpush2.msra.mxu0 0.0
  %123 = vmatprep.subr.mxu0 0.0
  %124 = vmatpush2.msra.mxu0 0.0
  %125 = vmatprep.subr.mxu0 0.0
  %126 = vmatpush2.msra.mxu0 0.0
  %127 = vmatprep.subr.mxu0 0.0
  %128 = vmatpush2.msra.mxu0 0.0
  %129 = vmatprep.subr.mxu0 0.0
  %130 = vmatpush2.msra.mxu0 0.0
  %131 = vmatprep.subr.mxu0 0.0
  %132 = vmatpush2.msra.mxu0 0.0
  %133 = vmatprep.subr.mxu0 0.0
  %134 = vmatpush2.msra.mxu0 0.0
  %135 = vmatprep.subr.mxu0 0.0
  %136 = vmatpush2.msra.mxu0 0.0
  %137 = vmatprep.subr.mxu0 0.0
  %138 = vmatpush2.msra.mxu0 0.0
  %139 = vmatprep.mubr.f32.mxu0 0.0
  %140 = vmatmul.mubr.f32.gmra.mxu0 %v58
  %v141 = vpop.f32.mrf.mxu0
  %v142 = vadd.f32 %v54, %v141
  %v143 = vpop.f32.mrf.mxu0
  %144 = vmatprep.mubr.f32.mxu0 0.0
  %145 = vmatmul.mubr.f32.gmra.mxu0 %v61
  %v146 = vpop.f32.mrf.mxu0
  %v147 = vadd.f32 %v54, %v146
  %v148 = vpop.f32.mrf.mxu0
  %149 = vmatprep.mubr.f32.mxu0 0.0
  %150 = vmatmul.mubr.f32.gmra.mxu0 %v64
  %v151 = vpop.f32.mrf.mxu0
  %v152 = vadd.f32 %v54, %v151
  %v153 = vpop.f32.mrf.mxu0
  %154 = vmatprep.mubr.f32.mxu0 0.0
  %155 = vmatmul.mubr.f32.gmra.mxu0 %v67
  %v156 = vpop.f32.mrf.mxu0
  %v157 = vadd.f32 %v54, %v156
  %v158 = vpop.f32.mrf.mxu0
  %159 = vmatprep.mubr.f32.mxu0 0.0
  %160 = vmatmul.mubr.f32.gmra.mxu0 %v70
  %v161 = vpop.f32.mrf.mxu0
  %v162 = vadd.f32 %v54, %v161
  %v163 = vpop.f32.mrf.mxu0
  %164 = vmatprep.mubr.f32.mxu0 0.0
  %165 = vmatmul.mubr.f32.gmra.mxu0 %v73
  %v166 = vpop.f32.mrf.mxu0
  %v167 = vadd.f32 %v54, %v166
  %v168 = vpop.f32.mrf.mxu0
  %169 = vdwg.mxu0
  %s170 = scalar_lea.vmem %s1, 32
  %v171 = vld [vmem:[%s170] sm:$0xff]
  %v172 = vld [vmem:[%s170 + $0x8] sm:$0xff]
  %v173 = vld [vmem:[%s170 + $0x10] sm:$0xff]
  %v174 = vld [vmem:[%s170 + $0x18] sm:$0xff]
  %s175 = scalar_lea.vmem %s2, 1
  %v176 = vld [vmem:[%s175] sm:$0x1]
  %v178 = vlaneseq
  %v179 = vshrl.u32 %v178, 7
  %v180 = vsub.s32 0, %v179
  %v181 = vrot.slane %v176, %v180
  %183 = vmatprep.subr.mxu0 0.0
  %184 = vmatpush1.msra.mxu0 0.0
  %185 = vmatprep.subr.mxu0 0.0
  %186 = vmatpush1.msra.mxu0 0.0
  %187 = vmatprep.subr.mxu0 0.0
  %188 = vmatpush1.msra.mxu0 0.0
  %189 = vmatprep.subr.mxu0 0.0
  %190 = vmatpush1.msra.mxu0 0.0
  %191 = vmatprep.subr.mxu0 0.0
  %192 = vmatpush1.msra.mxu0 0.0
  %193 = vmatprep.subr.mxu0 0.0
  %194 = vmatpush1.msra.mxu0 0.0
  %195 = vmatprep.subr.mxu0 0.0
  %196 = vmatpush1.msra.mxu0 0.0
  %197 = vmatprep.subr.mxu0 0.0
  %198 = vmatpush1.msra.mxu0 0.0
  %199 = vmatprep.subr.mxu0 0.0
  %200 = vmatpush1.msra.mxu0 0.0
  %201 = vmatprep.subr.mxu0 0.0
  %202 = vmatpush1.msra.mxu0 0.0
  %203 = vmatprep.subr.mxu0 0.0
  %204 = vmatpush1.msra.mxu0 0.0
  %205 = vmatprep.subr.mxu0 0.0
  %206 = vmatpush1.msra.mxu0 0.0
  %207 = vmatprep.subr.mxu0 0.0
  %208 = vmatpush1.msra.mxu0 %v174
  %209 = vmatprep.subr.mxu0 0.0
  %210 = vmatpush1.msra.mxu0 %v173
  %211 = vmatprep.subr.mxu0 0.0
  %212 = vmatpush1.msra.mxu0 %v172
  %213 = vmatprep.subr.mxu0 0.0
  %214 = vmatpush1.msra.mxu0 %v171
  %215 = vmatprep.subr.mxu0 0.0
  %216 = vmatpush2.msra.mxu0 0.0
  %217 = vmatprep.subr.mxu0 0.0
  %218 = vmatpush2.msra.mxu0 0.0
  %219 = vmatprep.subr.mxu0 0.0
  %220 = vmatpush2.msra.mxu0 0.0
  %221 = vmatprep.subr.mxu0 0.0
  %222 = vmatpush2.msra.mxu0 0.0
  %223 = vmatprep.subr.mxu0 0.0
  %224 = vmatpush2.msra.mxu0 0.0
  %225 = vmatprep.subr.mxu0 0.0
  %226 = vmatpush2.msra.mxu0 0.0
  %227 = vmatprep.subr.mxu0 0.0
  %228 = vmatpush2.msra.mxu0 0.0
  %229 = vmatprep.subr.mxu0 0.0
  %230 = vmatpush2.msra.mxu0 0.0
  %231 = vmatprep.subr.mxu0 0.0
  %232 = vmatpush2.msra.mxu0 0.0
  %233 = vmatprep.subr.mxu0 0.0
  %234 = vmatpush2.msra.mxu0 0.0
  %235 = vmatprep.subr.mxu0 0.0
  %236 = vmatpush2.msra.mxu0 0.0
  %237 = vmatprep.subr.mxu0 0.0
  %238 = vmatpush2.msra.mxu0 0.0
  %239 = vmatprep.subr.mxu0 0.0
  %240 = vmatpush2.msra.mxu0 0.0
  %241 = vmatprep.subr.mxu0 0.0
  %242 = vmatpush2.msra.mxu0 0.0
  %243 = vmatprep.subr.mxu0 0.0
  %244 = vmatpush2.msra.mxu0 0.0
  %245 = vmatprep.subr.mxu0 0.0
  %246 = vmatpush2.msra.mxu0 0.0
  %247 = vmatprep.mubr.f32.mxu0 0.0
  %248 = vmatmul.mubr.f32.gmra.mxu0 %v58
  %v249 = vpop.f32.mrf.mxu0
  %v250 = vadd.f32 %v181, %v249
  %v251 = vpop.f32.mrf.mxu0
  %252 = vmatprep.mubr.f32.mxu0 0.0
  %253 = vmatmul.mubr.f32.gmra.mxu0 %v61
  %v254 = vpop.f32.mrf.mxu0
  %v255 = vadd.f32 %v181, %v254
  %v256 = vpop.f32.mrf.mxu0
  %257 = vmatprep.mubr.f32.mxu0 0.0
  %258 = vmatmul.mubr.f32.gmra.mxu0 %v64
  %v259 = vpop.f32.mrf.mxu0
  %v260 = vadd.f32 %v181, %v259
  %v261 = vpop.f32.mrf.mxu0
  %262 = vmatprep.mubr.f32.mxu0 0.0
  %263 = vmatmul.mubr.f32.gmra.mxu0 %v67
  %v264 = vpop.f32.mrf.mxu0
  %v265 = vadd.f32 %v181, %v264
  %v266 = vpop.f32.mrf.mxu0
  %267 = vmatprep.mubr.f32.mxu0 0.0
  %268 = vmatmul.mubr.f32.gmra.mxu0 %v70
  %v269 = vpop.f32.mrf.mxu0
  %v270 = vadd.f32 %v181, %v269
  %v271 = vpop.f32.mrf.mxu0
  %272 = vmatprep.mubr.f32.mxu0 0.0
  %273 = vmatmul.mubr.f32.gmra.mxu0 %v73
  %v274 = vpop.f32.mrf.mxu0
  %v275 = vadd.f32 %v181, %v274
  %v276 = vpop.f32.mrf.mxu0
  %277 = vdwg.mxu0
  %s278 = scalar_lea.vmem %s1, 64
  %v279 = vld [vmem:[%s278] sm:$0xff]
  %v280 = vld [vmem:[%s278 + $0x8] sm:$0xff]
  %v281 = vld [vmem:[%s278 + $0x10] sm:$0xff]
  %v282 = vld [vmem:[%s278 + $0x18] sm:$0xff]
  %s283 = scalar_lea.vmem %s2, 2
  %v284 = vld [vmem:[%s283] sm:$0x1]
  %v286 = vlaneseq
  %v287 = vshrl.u32 %v286, 7
  %v288 = vsub.s32 0, %v287
  %v289 = vrot.slane %v284, %v288
  %291 = vmatprep.subr.mxu0 0.0
  %292 = vmatpush1.msra.mxu0 0.0
  %293 = vmatprep.subr.mxu0 0.0
  %294 = vmatpush1.msra.mxu0 0.0
  %295 = vmatprep.subr.mxu0 0.0
  %296 = vmatpush1.msra.mxu0 0.0
  %297 = vmatprep.subr.mxu0 0.0
  %298 = vmatpush1.msra.mxu0 0.0
  %299 = vmatprep.subr.mxu0 0.0
  %300 = vmatpush1.msra.mxu0 0.0
  %301 = vmatprep.subr.mxu0 0.0
  %302 = vmatpush1.msra.mxu0 0.0
  %303 = vmatprep.subr.mxu0 0.0
  %304 = vmatpush1.msra.mxu0 0.0
  %305 = vmatprep.subr.mxu0 0.0
  %306 = vmatpush1.msra.mxu0 0.0
  %307 = vmatprep.subr.mxu0 0.0
  %308 = vmatpush1.msra.mxu0 0.0
  %309 = vmatprep.subr.mxu0 0.0
  %310 = vmatpush1.msra.mxu0 0.0
  %311 = vmatprep.subr.mxu0 0.0
  %312 = vmatpush1.msra.mxu0 0.0
  %313 = vmatprep.subr.mxu0 0.0
  %314 = vmatpush1.msra.mxu0 0.0
  %315 = vmatprep.subr.mxu0 0.0
  %316 = vmatpush1.msra.mxu0 %v282
  %317 = vmatprep.subr.mxu0 0.0
  %318 = vmatpush1.msra.mxu0 %v281
  %319 = vmatprep.subr.mxu0 0.0
  %320 = vmatpush1.msra.mxu0 %v280
  %321 = vmatprep.subr.mxu0 0.0
  %322 = vmatpush1.msra.mxu0 %v279
  %323 = vmatprep.subr.mxu0 0.0
  %324 = vmatpush2.msra.mxu0 0.0
  %325 = vmatprep.subr.mxu0 0.0
  %326 = vmatpush2.msra.mxu0 0.0
  %327 = vmatprep.subr.mxu0 0.0
  %328 = vmatpush2.msra.mxu0 0.0
  %329 = vmatprep.subr.mxu0 0.0
  %330 = vmatpush2.msra.mxu0 0.0
  %331 = vmatprep.subr.mxu0 0.0
  %332 = vmatpush2.msra.mxu0 0.0
  %333 = vmatprep.subr.mxu0 0.0
  %334 = vmatpush2.msra.mxu0 0.0
  %335 = vmatprep.subr.mxu0 0.0
  %336 = vmatpush2.msra.mxu0 0.0
  %337 = vmatprep.subr.mxu0 0.0
  %338 = vmatpush2.msra.mxu0 0.0
  %339 = vmatprep.subr.mxu0 0.0
  %340 = vmatpush2.msra.mxu0 0.0
  %341 = vmatprep.subr.mxu0 0.0
  %342 = vmatpush2.msra.mxu0 0.0
  %343 = vmatprep.subr.mxu0 0.0
  %344 = vmatpush2.msra.mxu0 0.0
  %345 = vmatprep.subr.mxu0 0.0
  %346 = vmatpush2.msra.mxu0 0.0
  %347 = vmatprep.subr.mxu0 0.0
  %348 = vmatpush2.msra.mxu0 0.0
  %349 = vmatprep.subr.mxu0 0.0
  %350 = vmatpush2.msra.mxu0 0.0
  %351 = vmatprep.subr.mxu0 0.0
  %352 = vmatpush2.msra.mxu0 0.0
  %353 = vmatprep.subr.mxu0 0.0
  %354 = vmatpush2.msra.mxu0 0.0
  %355 = vmatprep.mubr.f32.mxu0 0.0
  %356 = vmatmul.mubr.f32.gmra.mxu0 %v58
  %v357 = vpop.f32.mrf.mxu0
  %v358 = vadd.f32 %v289, %v357
  %v359 = vpop.f32.mrf.mxu0
  %360 = vmatprep.mubr.f32.mxu0 0.0
  %361 = vmatmul.mubr.f32.gmra.mxu0 %v61
  %v362 = vpop.f32.mrf.mxu0
  %v363 = vadd.f32 %v289, %v362
  %v364 = vpop.f32.mrf.mxu0
  %365 = vmatprep.mubr.f32.mxu0 0.0
  %366 = vmatmul.mubr.f32.gmra.mxu0 %v64
  %v367 = vpop.f32.mrf.mxu0
  %v368 = vadd.f32 %v289, %v367
  %v369 = vpop.f32.mrf.mxu0
  %370 = vmatprep.mubr.f32.mxu0 0.0
  %371 = vmatmul.mubr.f32.gmra.mxu0 %v67
  %v372 = vpop.f32.mrf.mxu0
  %v373 = vadd.f32 %v289, %v372
  %v374 = vpop.f32.mrf.mxu0
  %375 = vmatprep.mubr.f32.mxu0 0.0
  %376 = vmatmul.mubr.f32.gmra.mxu0 %v70
  %v377 = vpop.f32.mrf.mxu0
  %v378 = vadd.f32 %v289, %v377
  %v379 = vpop.f32.mrf.mxu0
  %380 = vmatprep.mubr.f32.mxu0 0.0
  %381 = vmatmul.mubr.f32.gmra.mxu0 %v73
  %v382 = vpop.f32.mrf.mxu0
  %v383 = vadd.f32 %v289, %v382
  %v384 = vpop.f32.mrf.mxu0
  %385 = vdwg.mxu0
  %v386 = vmul.f32 %v142, %v29
  %v387 = vmul.f32 %v147, %v29
  %v388 = vmul.f32 %v152, %v29
  %v389 = vmul.f32 %v157, %v29
  %v390 = vmul.f32 %v162, %v29
  %v391 = vmul.f32 %v167, %v29
  %v392 = vmul.f32 %v142, %v34
  %v393 = vmul.f32 %v147, %v34
  %v394 = vmul.f32 %v152, %v34
  %v395 = vmul.f32 %v157, %v34
  %v396 = vmul.f32 %v162, %v34
  %v397 = vmul.f32 %v167, %v34
  %v398 = vmul.f32 %v142, %v39
  %v399 = vmul.f32 %v147, %v39
  %v400 = vmul.f32 %v152, %v39
  %v401 = vmul.f32 %v157, %v39
  %v402 = vmul.f32 %v162, %v39
  %v403 = vmul.f32 %v167, %v39
  %v404 = vmul.f32 %v142, %v44
  %v405 = vmul.f32 %v147, %v44
  %v406 = vmul.f32 %v152, %v44
  %v407 = vmul.f32 %v157, %v44
  %v408 = vmul.f32 %v162, %v44
  %v409 = vmul.f32 %v167, %v44
  %v410 = vld [vmem:[%s3] sm:$0xff]
  %v411 = vld [vmem:[%s3 + $0x8] sm:$0xff]
  %v412 = vld [vmem:[%s3 + $0x10] sm:$0xff]
  %v413 = vld [vmem:[%s3 + $0x18] sm:$0xff]
  %v414 = vld [vmem:[%s3 + $0x20] sm:$0xff]
  %v415 = vld [vmem:[%s3 + $0x28] sm:$0xff]
  %v416 = vld [vmem:[%s3 + $0x30] sm:$0xff]
  %v417 = vld [vmem:[%s3 + $0x38] sm:$0xff]
  %v418 = vld [vmem:[%s3 + $0x40] sm:$0xff]
  %v419 = vld [vmem:[%s3 + $0x48] sm:$0xff]
  %v420 = vld [vmem:[%s3 + $0x50] sm:$0xff]
  %v421 = vld [vmem:[%s3 + $0x58] sm:$0xff]
  %v422 = vld [vmem:[%s3 + $0x60] sm:$0xff]
  %v423 = vld [vmem:[%s3 + $0x68] sm:$0xff]
  %v424 = vld [vmem:[%s3 + $0x70] sm:$0xff]
  %v425 = vld [vmem:[%s3 + $0x78] sm:$0xff]
  %v426 = vld [vmem:[%s3 + $0x80] sm:$0xff]
  %v427 = vld [vmem:[%s3 + $0x88] sm:$0xff]
  %v428 = vld [vmem:[%s3 + $0x90] sm:$0xff]
  %v429 = vld [vmem:[%s3 + $0x98] sm:$0xff]
  %v430 = vld [vmem:[%s3 + $0xa0] sm:$0xff]
  %v431 = vld [vmem:[%s3 + $0xa8] sm:$0xff]
  %v432 = vld [vmem:[%s3 + $0xb0] sm:$0xff]
  %v433 = vld [vmem:[%s3 + $0xb8] sm:$0xff]
  %v435 = vsel %vm56, %v386, 0
  %v438 = vsel %vm56, %v387, 0
  %v441 = vsel %vm56, %v388, 0
  %v444 = vsel %vm56, %v389, 0
  %v447 = vsel %vm56, %v390, 0
  %v450 = vsel %vm56, %v391, 0
  %v453 = vsel %vm56, %v392, 0
  %v456 = vsel %vm56, %v393, 0
  %v459 = vsel %vm56, %v394, 0
  %v462 = vsel %vm56, %v395, 0
  %v465 = vsel %vm56, %v396, 0
  %v468 = vsel %vm56, %v397, 0
  %v471 = vsel %vm56, %v398, 0
  %v474 = vsel %vm56, %v399, 0
  %v477 = vsel %vm56, %v400, 0
  %v480 = vsel %vm56, %v401, 0
  %v483 = vsel %vm56, %v402, 0
  %v486 = vsel %vm56, %v403, 0
  %v489 = vsel %vm56, %v404, 0
  %v492 = vsel %vm56, %v405, 0
  %v495 = vsel %vm56, %v406, 0
  %v498 = vsel %vm56, %v407, 0
  %v501 = vsel %vm56, %v408, 0
  %v504 = vsel %vm56, %v409, 0
  %v507 = vsel %vm56, %v250, 0
  %v510 = vsel %vm56, %v255, 0
  %v513 = vsel %vm56, %v260, 0
  %v516 = vsel %vm56, %v265, 0
  %v519 = vsel %vm56, %v270, 0
  %v522 = vsel %vm56, %v275, 0
  %524 = vmatprep.subr.mxu0 0.0
  %525 = vmatpush1.xpose.msra.mxu0 0.0
  %526 = vmatprep.subr.mxu0 0.0
  %527 = vmatpush1.xpose.msra.mxu0 0.0
  %528 = vmatprep.subr.mxu0 0.0
  %529 = vmatpush1.xpose.msra.mxu0 0.0
  %530 = vmatprep.subr.mxu0 0.0
  %531 = vmatpush1.xpose.msra.mxu0 0.0
  %532 = vmatprep.subr.mxu0 0.0
  %533 = vmatpush1.xpose.msra.mxu0 0.0
  %534 = vmatprep.subr.mxu0 0.0
  %535 = vmatpush1.xpose.msra.mxu0 0.0
  %536 = vmatprep.subr.mxu0 0.0
  %537 = vmatpush1.xpose.msra.mxu0 0.0
  %538 = vmatprep.subr.mxu0 0.0
  %539 = vmatpush1.xpose.msra.mxu0 0.0
  %540 = vmatprep.subr.mxu0 0.0
  %541 = vmatpush1.xpose.msra.mxu0 0.0
  %542 = vmatprep.subr.mxu0 0.0
  %543 = vmatpush1.xpose.msra.mxu0 0.0
  %544 = vmatprep.subr.mxu0 0.0
  %545 = vmatpush1.xpose.msra.mxu0 %v522
  %546 = vmatprep.subr.mxu0 0.0
  %547 = vmatpush1.xpose.msra.mxu0 %v519
  %548 = vmatprep.subr.mxu0 0.0
  %549 = vmatpush1.xpose.msra.mxu0 %v516
  %550 = vmatprep.subr.mxu0 0.0
  %551 = vmatpush1.xpose.msra.mxu0 %v513
  %552 = vmatprep.subr.mxu0 0.0
  %553 = vmatpush1.xpose.msra.mxu0 %v510
  %554 = vmatprep.subr.mxu0 0.0
  %555 = vmatpush1.xpose.msra.mxu0 %v507
  %556 = vmatprep.subr.mxu0 0.0
  %557 = vmatpush2.xpose.msra.mxu0 0.0
  %558 = vmatprep.subr.mxu0 0.0
  %559 = vmatpush2.xpose.msra.mxu0 0.0
  %560 = vmatprep.subr.mxu0 0.0
  %561 = vmatpush2.xpose.msra.mxu0 0.0
  %562 = vmatprep.subr.mxu0 0.0
  %563 = vmatpush2.xpose.msra.mxu0 0.0
  %564 = vmatprep.subr.mxu0 0.0
  %565 = vmatpush2.xpose.msra.mxu0 0.0
  %566 = vmatprep.subr.mxu0 0.0
  %567 = vmatpush2.xpose.msra.mxu0 0.0
  %568 = vmatprep.subr.mxu0 0.0
  %569 = vmatpush2.xpose.msra.mxu0 0.0
  %570 = vmatprep.subr.mxu0 0.0
  %571 = vmatpush2.xpose.msra.mxu0 0.0
  %572 = vmatprep.subr.mxu0 0.0
  %573 = vmatpush2.xpose.msra.mxu0 0.0
  %574 = vmatprep.subr.mxu0 0.0
  %575 = vmatpush2.xpose.msra.mxu0 0.0
  %576 = vmatprep.subr.mxu0 0.0
  %577 = vmatpush2.xpose.msra.mxu0 0.0
  %578 = vmatprep.subr.mxu0 0.0
  %579 = vmatpush2.xpose.msra.mxu0 0.0
  %580 = vmatprep.subr.mxu0 0.0
  %581 = vmatpush2.xpose.msra.mxu0 0.0
  %582 = vmatprep.subr.mxu0 0.0
  %583 = vmatpush2.xpose.msra.mxu0 0.0
  %584 = vmatprep.subr.mxu0 0.0
  %585 = vmatpush2.xpose.msra.mxu0 0.0
  %586 = vmatprep.subr.mxu0 0.0
  %587 = vmatpush2.xpose.msra.mxu0 0.0
  %588 = vmatprep.mubr.f32.mxu0 0.0
  %589 = vmatmul.mubr.f32.gmra.mxu0 %v435
  %v590 = vpop.f32.mrf.mxu0
  %v591 = vadd.f32 %v410, %v590
  %v592 = vpop.f32.mrf.mxu0
  %593 = vmatprep.mubr.f32.mxu0 0.0
  %594 = vmatmul.mubr.f32.gmra.mxu0 %v438
  %v595 = vpop.f32.mrf.mxu0
  %v596 = vadd.f32 %v411, %v595
  %v597 = vpop.f32.mrf.mxu0
  %598 = vmatprep.mubr.f32.mxu0 0.0
  %599 = vmatmul.mubr.f32.gmra.mxu0 %v441
  %v600 = vpop.f32.mrf.mxu0
  %v601 = vadd.f32 %v412, %v600
  %v602 = vpop.f32.mrf.mxu0
  %603 = vmatprep.mubr.f32.mxu0 0.0
  %604 = vmatmul.mubr.f32.gmra.mxu0 %v444
  %v605 = vpop.f32.mrf.mxu0
  %v606 = vadd.f32 %v413, %v605
  %v607 = vpop.f32.mrf.mxu0
  %608 = vmatprep.mubr.f32.mxu0 0.0
  %609 = vmatmul.mubr.f32.gmra.mxu0 %v447
  %v610 = vpop.f32.mrf.mxu0
  %v611 = vadd.f32 %v414, %v610
  %v612 = vpop.f32.mrf.mxu0
  %613 = vmatprep.mubr.f32.mxu0 0.0
  %614 = vmatmul.mubr.f32.gmra.mxu0 %v450
  %v615 = vpop.f32.mrf.mxu0
  %v616 = vadd.f32 %v415, %v615
  %v617 = vpop.f32.mrf.mxu0
  %618 = vmatprep.mubr.f32.mxu0 0.0
  %619 = vmatmul.mubr.f32.gmra.mxu0 %v453
  %v620 = vpop.f32.mrf.mxu0
  %v621 = vadd.f32 %v416, %v620
  %v622 = vpop.f32.mrf.mxu0
  %623 = vmatprep.mubr.f32.mxu0 0.0
  %624 = vmatmul.mubr.f32.gmra.mxu0 %v456
  %v625 = vpop.f32.mrf.mxu0
  %v626 = vadd.f32 %v417, %v625
  %v627 = vpop.f32.mrf.mxu0
  %628 = vmatprep.mubr.f32.mxu0 0.0
  %629 = vmatmul.mubr.f32.gmra.mxu0 %v459
  %v630 = vpop.f32.mrf.mxu0
  %v631 = vadd.f32 %v418, %v630
  %v632 = vpop.f32.mrf.mxu0
  %633 = vmatprep.mubr.f32.mxu0 0.0
  %634 = vmatmul.mubr.f32.gmra.mxu0 %v462
  %v635 = vpop.f32.mrf.mxu0
  %v636 = vadd.f32 %v419, %v635
  %v637 = vpop.f32.mrf.mxu0
  %638 = vmatprep.mubr.f32.mxu0 0.0
  %639 = vmatmul.mubr.f32.gmra.mxu0 %v465
  %v640 = vpop.f32.mrf.mxu0
  %v641 = vadd.f32 %v420, %v640
  %v642 = vpop.f32.mrf.mxu0
  %643 = vmatprep.mubr.f32.mxu0 0.0
  %644 = vmatmul.mubr.f32.gmra.mxu0 %v468
  %v645 = vpop.f32.mrf.mxu0
  %v646 = vadd.f32 %v421, %v645
  %v647 = vpop.f32.mrf.mxu0
  %648 = vmatprep.mubr.f32.mxu0 0.0
  %649 = vmatmul.mubr.f32.gmra.mxu0 %v471
  %v650 = vpop.f32.mrf.mxu0
  %v651 = vadd.f32 %v422, %v650
  %v652 = vpop.f32.mrf.mxu0
  %653 = vmatprep.mubr.f32.mxu0 0.0
  %654 = vmatmul.mubr.f32.gmra.mxu0 %v474
  %v655 = vpop.f32.mrf.mxu0
  %v656 = vadd.f32 %v423, %v655
  %v657 = vpop.f32.mrf.mxu0
  %658 = vmatprep.mubr.f32.mxu0 0.0
  %659 = vmatmul.mubr.f32.gmra.mxu0 %v477
  %v660 = vpop.f32.mrf.mxu0
  %v661 = vadd.f32 %v424, %v660
  %v662 = vpop.f32.mrf.mxu0
  %663 = vmatprep.mubr.f32.mxu0 0.0
  %664 = vmatmul.mubr.f32.gmra.mxu0 %v480
  %v665 = vpop.f32.mrf.mxu0
  %v666 = vadd.f32 %v425, %v665
  %v667 = vpop.f32.mrf.mxu0
  %668 = vmatprep.mubr.f32.mxu0 0.0
  %669 = vmatmul.mubr.f32.gmra.mxu0 %v483
  %v670 = vpop.f32.mrf.mxu0
  %v671 = vadd.f32 %v426, %v670
  %v672 = vpop.f32.mrf.mxu0
  %673 = vmatprep.mubr.f32.mxu0 0.0
  %674 = vmatmul.mubr.f32.gmra.mxu0 %v486
  %v675 = vpop.f32.mrf.mxu0
  %v676 = vadd.f32 %v427, %v675
  %v677 = vpop.f32.mrf.mxu0
  %678 = vmatprep.mubr.f32.mxu0 0.0
  %679 = vmatmul.mubr.f32.gmra.mxu0 %v489
  %v680 = vpop.f32.mrf.mxu0
  %v681 = vadd.f32 %v428, %v680
  %v682 = vpop.f32.mrf.mxu0
  %683 = vmatprep.mubr.f32.mxu0 0.0
  %684 = vmatmul.mubr.f32.gmra.mxu0 %v492
  %v685 = vpop.f32.mrf.mxu0
  %v686 = vadd.f32 %v429, %v685
  %v687 = vpop.f32.mrf.mxu0
  %688 = vmatprep.mubr.f32.mxu0 0.0
  %689 = vmatmul.mubr.f32.gmra.mxu0 %v495
  %v690 = vpop.f32.mrf.mxu0
  %v691 = vadd.f32 %v430, %v690
  %v692 = vpop.f32.mrf.mxu0
  %693 = vmatprep.mubr.f32.mxu0 0.0
  %694 = vmatmul.mubr.f32.gmra.mxu0 %v498
  %v695 = vpop.f32.mrf.mxu0
  %v696 = vadd.f32 %v431, %v695
  %v697 = vpop.f32.mrf.mxu0
  %698 = vmatprep.mubr.f32.mxu0 0.0
  %699 = vmatmul.mubr.f32.gmra.mxu0 %v501
  %v700 = vpop.f32.mrf.mxu0
  %v701 = vadd.f32 %v432, %v700
  %v702 = vpop.f32.mrf.mxu0
  %703 = vmatprep.mubr.f32.mxu0 0.0
  %704 = vmatmul.mubr.f32.gmra.mxu0 %v504
  %v705 = vpop.f32.mrf.mxu0
  %v706 = vadd.f32 %v433, %v705
  %v707 = vpop.f32.mrf.mxu0
  %708 = vdwg.mxu0
  %vm709 = vcmask 392192
  %v710 = vsel %vm709, %v591, -inf
  %711 = vmax.xlane.f32.xlu0 %v710
  %v712 = vpop.xlane.xlu0 %711
  %v713 = vsel %vm709, %v596, -inf
  %714 = vmax.xlane.f32.xlu0 %v713
  %v715 = vpop.xlane.xlu0 %714
  %v716 = vsel %vm709, %v601, -inf
  %717 = vmax.xlane.f32.xlu0 %v716
  %v718 = vpop.xlane.xlu0 %717
  %v719 = vsel %vm709, %v606, -inf
  %720 = vmax.xlane.f32.xlu0 %v719
  %v721 = vpop.xlane.xlu0 %720
  %v722 = vsel %vm709, %v611, -inf
  %723 = vmax.xlane.f32.xlu0 %v722
  %v724 = vpop.xlane.xlu0 %723
  %v725 = vsel %vm709, %v616, -inf
  %726 = vmax.xlane.f32.xlu0 %v725
  %v727 = vpop.xlane.xlu0 %726
  %v728 = vsel %vm709, %v621, -inf
  %729 = vmax.xlane.f32.xlu0 %v728
  %v730 = vpop.xlane.xlu0 %729
  %v731 = vsel %vm709, %v626, -inf
  %732 = vmax.xlane.f32.xlu0 %v731
  %v733 = vpop.xlane.xlu0 %732
  %v734 = vsel %vm709, %v631, -inf
  %735 = vmax.xlane.f32.xlu0 %v734
  %v736 = vpop.xlane.xlu0 %735
  %v737 = vsel %vm709, %v636, -inf
  %738 = vmax.xlane.f32.xlu0 %v737
  %v739 = vpop.xlane.xlu0 %738
  %v740 = vsel %vm709, %v641, -inf
  %741 = vmax.xlane.f32.xlu0 %v740
  %v742 = vpop.xlane.xlu0 %741
  %v743 = vsel %vm709, %v646, -inf
  %744 = vmax.xlane.f32.xlu0 %v743
  %v745 = vpop.xlane.xlu0 %744
  %v746 = vsel %vm709, %v651, -inf
  %747 = vmax.xlane.f32.xlu0 %v746
  %v748 = vpop.xlane.xlu0 %747
  %v749 = vsel %vm709, %v656, -inf
  %750 = vmax.xlane.f32.xlu0 %v749
  %v751 = vpop.xlane.xlu0 %750
  %v752 = vsel %vm709, %v661, -inf
  %753 = vmax.xlane.f32.xlu0 %v752
  %v754 = vpop.xlane.xlu0 %753
  %v755 = vsel %vm709, %v666, -inf
  %756 = vmax.xlane.f32.xlu0 %v755
  %v757 = vpop.xlane.xlu0 %756
  %v758 = vsel %vm709, %v671, -inf
  %759 = vmax.xlane.f32.xlu0 %v758
  %v760 = vpop.xlane.xlu0 %759
  %v761 = vsel %vm709, %v676, -inf
  %762 = vmax.xlane.f32.xlu0 %v761
  %v763 = vpop.xlane.xlu0 %762
  %v764 = vsel %vm709, %v681, -inf
  %765 = vmax.xlane.f32.xlu0 %v764
  %v766 = vpop.xlane.xlu0 %765
  %v767 = vsel %vm709, %v686, -inf
  %768 = vmax.xlane.f32.xlu0 %v767
  %v769 = vpop.xlane.xlu0 %768
  %v770 = vsel %vm709, %v691, -inf
  %771 = vmax.xlane.f32.xlu0 %v770
  %v772 = vpop.xlane.xlu0 %771
  %v773 = vsel %vm709, %v696, -inf
  %774 = vmax.xlane.f32.xlu0 %v773
  %v775 = vpop.xlane.xlu0 %774
  %v776 = vsel %vm709, %v701, -inf
  %777 = vmax.xlane.f32.xlu0 %v776
  %v778 = vpop.xlane.xlu0 %777
  %v779 = vsel %vm709, %v706, -inf
  %780 = vmax.xlane.f32.xlu0 %v779
  %v781 = vpop.xlane.xlu0 %780
  %v782 = vsub.f32 %v591, %v712
  %v783 = vsub.f32 %v596, %v715
  %v784 = vsub.f32 %v601, %v718
  %v785 = vsub.f32 %v606, %v721
  %v786 = vsub.f32 %v611, %v724
  %v787 = vsub.f32 %v616, %v727
  %v788 = vsub.f32 %v621, %v730
  %v789 = vsub.f32 %v626, %v733
  %v790 = vsub.f32 %v631, %v736
  %v791 = vsub.f32 %v636, %v739
  %v792 = vsub.f32 %v641, %v742
  %v793 = vsub.f32 %v646, %v745
  %v794 = vsub.f32 %v651, %v748
  %v795 = vsub.f32 %v656, %v751
  %v796 = vsub.f32 %v661, %v754
  %v797 = vsub.f32 %v666, %v757
  %v798 = vsub.f32 %v671, %v760
  %v799 = vsub.f32 %v676, %v763
  %v800 = vsub.f32 %v681, %v766
  %v801 = vsub.f32 %v686, %v769
  %v802 = vsub.f32 %v691, %v772
  %v803 = vsub.f32 %v696, %v775
  %v804 = vsub.f32 %v701, %v778
  %v805 = vsub.f32 %v706, %v781
  %v806 = vmul.f32 %v782, 1.442695
  %v807 = vpow.pop %v806
  %v808 = vmul.f32 %v783, 1.442695
  %v809 = vpow.pop %v808
  %v810 = vmul.f32 %v784, 1.442695
  %v811 = vpow.pop %v810
  %v812 = vmul.f32 %v785, 1.442695
  %v813 = vpow.pop %v812
  %v814 = vmul.f32 %v786, 1.442695
  %v815 = vpow.pop %v814
  %v816 = vmul.f32 %v787, 1.442695
  %v817 = vpow.pop %v816
  %v818 = vmul.f32 %v788, 1.442695
  %v819 = vpow.pop %v818
  %v820 = vmul.f32 %v789, 1.442695
  %v821 = vpow.pop %v820
  %v822 = vmul.f32 %v790, 1.442695
  %v823 = vpow.pop %v822
  %v824 = vmul.f32 %v791, 1.442695
  %v825 = vpow.pop %v824
  %v826 = vmul.f32 %v792, 1.442695
  %v827 = vpow.pop %v826
  %v828 = vmul.f32 %v793, 1.442695
  %v829 = vpow.pop %v828
  %v830 = vmul.f32 %v794, 1.442695
  %v831 = vpow.pop %v830
  %v832 = vmul.f32 %v795, 1.442695
  %v833 = vpow.pop %v832
  %v834 = vmul.f32 %v796, 1.442695
  %v835 = vpow.pop %v834
  %v836 = vmul.f32 %v797, 1.442695
  %v837 = vpow.pop %v836
  %v838 = vmul.f32 %v798, 1.442695
  %v839 = vpow.pop %v838
  %v840 = vmul.f32 %v799, 1.442695
  %v841 = vpow.pop %v840
  %v842 = vmul.f32 %v800, 1.442695
  %v843 = vpow.pop %v842
  %v844 = vmul.f32 %v801, 1.442695
  %v845 = vpow.pop %v844
  %v846 = vmul.f32 %v802, 1.442695
  %v847 = vpow.pop %v846
  %v848 = vmul.f32 %v803, 1.442695
  %v849 = vpow.pop %v848
  %v850 = vmul.f32 %v804, 1.442695
  %v851 = vpow.pop %v850
  %v852 = vmul.f32 %v805, 1.442695
  %v853 = vpow.pop %v852
  %v854 = vsel %vm709, %v807, 0.0
  %855 = vadd.xlane.f32.xlu0 %v854
  %v856 = vpop.xlane.xlu0 %855
  %v857 = vsel %vm709, %v809, 0.0
  %858 = vadd.xlane.f32.xlu0 %v857
  %v859 = vpop.xlane.xlu0 %858
  %v860 = vsel %vm709, %v811, 0.0
  %861 = vadd.xlane.f32.xlu0 %v860
  %v862 = vpop.xlane.xlu0 %861
  %v863 = vsel %vm709, %v813, 0.0
  %864 = vadd.xlane.f32.xlu0 %v863
  %v865 = vpop.xlane.xlu0 %864
  %v866 = vsel %vm709, %v815, 0.0
  %867 = vadd.xlane.f32.xlu0 %v866
  %v868 = vpop.xlane.xlu0 %867
  %v869 = vsel %vm709, %v817, 0.0
  %870 = vadd.xlane.f32.xlu0 %v869
  %v871 = vpop.xlane.xlu0 %870
  %v872 = vsel %vm709, %v819, 0.0
  %873 = vadd.xlane.f32.xlu0 %v872
  %v874 = vpop.xlane.xlu0 %873
  %v875 = vsel %vm709, %v821, 0.0
  %876 = vadd.xlane.f32.xlu0 %v875
  %v877 = vpop.xlane.xlu0 %876
  %v878 = vsel %vm709, %v823, 0.0
  %879 = vadd.xlane.f32.xlu0 %v878
  %v880 = vpop.xlane.xlu0 %879
  %v881 = vsel %vm709, %v825, 0.0
  %882 = vadd.xlane.f32.xlu0 %v881
  %v883 = vpop.xlane.xlu0 %882
  %v884 = vsel %vm709, %v827, 0.0
  %885 = vadd.xlane.f32.xlu0 %v884
  %v886 = vpop.xlane.xlu0 %885
  %v887 = vsel %vm709, %v829, 0.0
  %888 = vadd.xlane.f32.xlu0 %v887
  %v889 = vpop.xlane.xlu0 %888
  %v890 = vsel %vm709, %v831, 0.0
  %891 = vadd.xlane.f32.xlu0 %v890
  %v892 = vpop.xlane.xlu0 %891
  %v893 = vsel %vm709, %v833, 0.0
  %894 = vadd.xlane.f32.xlu0 %v893
  %v895 = vpop.xlane.xlu0 %894
  %v896 = vsel %vm709, %v835, 0.0
  %897 = vadd.xlane.f32.xlu0 %v896
  %v898 = vpop.xlane.xlu0 %897
  %v899 = vsel %vm709, %v837, 0.0
  %900 = vadd.xlane.f32.xlu0 %v899
  %v901 = vpop.xlane.xlu0 %900
  %v902 = vsel %vm709, %v839, 0.0
  %903 = vadd.xlane.f32.xlu0 %v902
  %v904 = vpop.xlane.xlu0 %903
  %v905 = vsel %vm709, %v841, 0.0
  %906 = vadd.xlane.f32.xlu0 %v905
  %v907 = vpop.xlane.xlu0 %906
  %v908 = vsel %vm709, %v843, 0.0
  %909 = vadd.xlane.f32.xlu0 %v908
  %v910 = vpop.xlane.xlu0 %909
  %v911 = vsel %vm709, %v845, 0.0
  %912 = vadd.xlane.f32.xlu0 %v911
  %v913 = vpop.xlane.xlu0 %912
  %v914 = vsel %vm709, %v847, 0.0
  %915 = vadd.xlane.f32.xlu0 %v914
  %v916 = vpop.xlane.xlu0 %915
  %v917 = vsel %vm709, %v849, 0.0
  %918 = vadd.xlane.f32.xlu0 %v917
  %v919 = vpop.xlane.xlu0 %918
  %v920 = vsel %vm709, %v851, 0.0
  %921 = vadd.xlane.f32.xlu0 %v920
  %v922 = vpop.xlane.xlu0 %921
  %v923 = vsel %vm709, %v853, 0.0
  %924 = vadd.xlane.f32.xlu0 %v923
  %v925 = vpop.xlane.xlu0 %924
  %v926 = vrcp.pop %v856
  %v927 = vrcp.pop %v859
  %v928 = vrcp.pop %v862
  %v929 = vrcp.pop %v865
  %v930 = vrcp.pop %v868
  %v931 = vrcp.pop %v871
  %v932 = vrcp.pop %v874
  %v933 = vrcp.pop %v877
  %v934 = vrcp.pop %v880
  %v935 = vrcp.pop %v883
  %v936 = vrcp.pop %v886
  %v937 = vrcp.pop %v889
  %v938 = vrcp.pop %v892
  %v939 = vrcp.pop %v895
  %v940 = vrcp.pop %v898
  %v941 = vrcp.pop %v901
  %v942 = vrcp.pop %v904
  %v943 = vrcp.pop %v907
  %v944 = vrcp.pop %v910
  %v945 = vrcp.pop %v913
  %v946 = vrcp.pop %v916
  %v947 = vrcp.pop %v919
  %v948 = vrcp.pop %v922
  %v949 = vrcp.pop %v925
  %v950 = vmul.f32 %v807, %v926
  %v951 = vmul.f32 %v809, %v927
  %v952 = vmul.f32 %v811, %v928
  %v953 = vmul.f32 %v813, %v929
  %v954 = vmul.f32 %v815, %v930
  %v955 = vmul.f32 %v817, %v931
  %v956 = vmul.f32 %v819, %v932
  %v957 = vmul.f32 %v821, %v933
  %v958 = vmul.f32 %v823, %v934
  %v959 = vmul.f32 %v825, %v935
  %v960 = vmul.f32 %v827, %v936
  %v961 = vmul.f32 %v829, %v937
  %v962 = vmul.f32 %v831, %v938
  %v963 = vmul.f32 %v833, %v939
  %v964 = vmul.f32 %v835, %v940
  %v965 = vmul.f32 %v837, %v941
  %v966 = vmul.f32 %v839, %v942
  %v967 = vmul.f32 %v841, %v943
  %v968 = vmul.f32 %v843, %v944
  %v969 = vmul.f32 %v845, %v945
  %v970 = vmul.f32 %v847, %v946
  %v971 = vmul.f32 %v849, %v947
  %v972 = vmul.f32 %v851, %v948
  %v973 = vmul.f32 %v853, %v949
  %v975 = vsel %vm709, %v950, 0
  %v978 = vsel %vm709, %v951, 0
  %v981 = vsel %vm709, %v952, 0
  %v984 = vsel %vm709, %v953, 0
  %v987 = vsel %vm709, %v954, 0
  %v990 = vsel %vm709, %v955, 0
  %v993 = vsel %vm709, %v956, 0
  %v996 = vsel %vm709, %v957, 0
  %v999 = vsel %vm709, %v958, 0
  %v1002 = vsel %vm709, %v959, 0
  %v1005 = vsel %vm709, %v960, 0
  %v1008 = vsel %vm709, %v961, 0
  %v1011 = vsel %vm709, %v962, 0
  %v1014 = vsel %vm709, %v963, 0
  %v1017 = vsel %vm709, %v964, 0
  %v1020 = vsel %vm709, %v965, 0
  %v1023 = vsel %vm709, %v966, 0
  %v1026 = vsel %vm709, %v967, 0
  %v1029 = vsel %vm709, %v968, 0
  %v1032 = vsel %vm709, %v969, 0
  %v1035 = vsel %vm709, %v970, 0
  %v1038 = vsel %vm709, %v971, 0
  %v1041 = vsel %vm709, %v972, 0
  %v1044 = vsel %vm709, %v973, 0
  %1046 = vmatprep.subr.mxu0 0.0
  %1047 = vmatpush1.msra.mxu0 0.0
  %1048 = vmatprep.subr.mxu0 0.0
  %1049 = vmatpush1.msra.mxu0 0.0
  %1050 = vmatprep.subr.mxu0 0.0
  %1051 = vmatpush1.msra.mxu0 0.0
  %1052 = vmatprep.subr.mxu0 0.0
  %1053 = vmatpush1.msra.mxu0 0.0
  %1054 = vmatprep.subr.mxu0 0.0
  %1055 = vmatpush1.msra.mxu0 0.0
  %1056 = vmatprep.subr.mxu0 0.0
  %1057 = vmatpush1.msra.mxu0 0.0
  %1058 = vmatprep.subr.mxu0 0.0
  %1059 = vmatpush1.msra.mxu0 0.0
  %1060 = vmatprep.subr.mxu0 0.0
  %1061 = vmatpush1.msra.mxu0 0.0
  %1062 = vmatprep.subr.mxu0 0.0
  %1063 = vmatpush1.msra.mxu0 0.0
  %1064 = vmatprep.subr.mxu0 0.0
  %1065 = vmatpush1.msra.mxu0 0.0
  %1066 = vmatprep.subr.mxu0 0.0
  %1067 = vmatpush1.msra.mxu0 %v383
  %1068 = vmatprep.subr.mxu0 0.0
  %1069 = vmatpush1.msra.mxu0 %v378
  %1070 = vmatprep.subr.mxu0 0.0
  %1071 = vmatpush1.msra.mxu0 %v373
  %1072 = vmatprep.subr.mxu0 0.0
  %1073 = vmatpush1.msra.mxu0 %v368
  %1074 = vmatprep.subr.mxu0 0.0
  %1075 = vmatpush1.msra.mxu0 %v363
  %1076 = vmatprep.subr.mxu0 0.0
  %1077 = vmatpush1.msra.mxu0 %v358
  %1078 = vmatprep.subr.mxu0 0.0
  %1079 = vmatpush2.msra.mxu0 0.0
  %1080 = vmatprep.subr.mxu0 0.0
  %1081 = vmatpush2.msra.mxu0 0.0
  %1082 = vmatprep.subr.mxu0 0.0
  %1083 = vmatpush2.msra.mxu0 0.0
  %1084 = vmatprep.subr.mxu0 0.0
  %1085 = vmatpush2.msra.mxu0 0.0
  %1086 = vmatprep.subr.mxu0 0.0
  %1087 = vmatpush2.msra.mxu0 0.0
  %1088 = vmatprep.subr.mxu0 0.0
  %1089 = vmatpush2.msra.mxu0 0.0
  %1090 = vmatprep.subr.mxu0 0.0
  %1091 = vmatpush2.msra.mxu0 0.0
  %1092 = vmatprep.subr.mxu0 0.0
  %1093 = vmatpush2.msra.mxu0 0.0
  %1094 = vmatprep.subr.mxu0 0.0
  %1095 = vmatpush2.msra.mxu0 0.0
  %1096 = vmatprep.subr.mxu0 0.0
  %1097 = vmatpush2.msra.mxu0 0.0
  %1098 = vmatprep.subr.mxu0 0.0
  %1099 = vmatpush2.msra.mxu0 0.0
  %1100 = vmatprep.subr.mxu0 0.0
  %1101 = vmatpush2.msra.mxu0 0.0
  %1102 = vmatprep.subr.mxu0 0.0
  %1103 = vmatpush2.msra.mxu0 0.0
  %1104 = vmatprep.subr.mxu0 0.0
  %1105 = vmatpush2.msra.mxu0 0.0
  %1106 = vmatprep.subr.mxu0 0.0
  %1107 = vmatpush2.msra.mxu0 0.0
  %1108 = vmatprep.subr.mxu0 0.0
  %1109 = vmatpush2.msra.mxu0 0.0
  %1110 = vmatprep.mubr.f32.mxu0 0.0
  %1111 = vmatmul.mubr.f32.gmra.mxu0 %v975
  %v1112 = vpop.f32.mrf.mxu0
  %v1113 = vadd.f32 0.0, %v1112
  %v1114 = vpop.f32.mrf.mxu0
  %1115 = vmatprep.mubr.f32.mxu0 0.0
  %1116 = vmatmul.mubr.f32.gmra.mxu0 %v978
  %v1117 = vpop.f32.mrf.mxu0
  %v1118 = vadd.f32 0.0, %v1117
  %v1119 = vpop.f32.mrf.mxu0
  %1120 = vmatprep.mubr.f32.mxu0 0.0
  %1121 = vmatmul.mubr.f32.gmra.mxu0 %v981
  %v1122 = vpop.f32.mrf.mxu0
  %v1123 = vadd.f32 0.0, %v1122
  %v1124 = vpop.f32.mrf.mxu0
  %1125 = vmatprep.mubr.f32.mxu0 0.0
  %1126 = vmatmul.mubr.f32.gmra.mxu0 %v984
  %v1127 = vpop.f32.mrf.mxu0
  %v1128 = vadd.f32 0.0, %v1127
  %v1129 = vpop.f32.mrf.mxu0
  %1130 = vmatprep.mubr.f32.mxu0 0.0
  %1131 = vmatmul.mubr.f32.gmra.mxu0 %v987
  %v1132 = vpop.f32.mrf.mxu0
  %v1133 = vadd.f32 0.0, %v1132
  %v1134 = vpop.f32.mrf.mxu0
  %1135 = vmatprep.mubr.f32.mxu0 0.0
  %1136 = vmatmul.mubr.f32.gmra.mxu0 %v990
  %v1137 = vpop.f32.mrf.mxu0
  %v1138 = vadd.f32 0.0, %v1137
  %v1139 = vpop.f32.mrf.mxu0
  %1140 = vmatprep.mubr.f32.mxu0 0.0
  %1141 = vmatmul.mubr.f32.gmra.mxu0 %v993
  %v1142 = vpop.f32.mrf.mxu0
  %v1143 = vadd.f32 0.0, %v1142
  %v1144 = vpop.f32.mrf.mxu0
  %1145 = vmatprep.mubr.f32.mxu0 0.0
  %1146 = vmatmul.mubr.f32.gmra.mxu0 %v996
  %v1147 = vpop.f32.mrf.mxu0
  %v1148 = vadd.f32 0.0, %v1147
  %v1149 = vpop.f32.mrf.mxu0
  %1150 = vmatprep.mubr.f32.mxu0 0.0
  %1151 = vmatmul.mubr.f32.gmra.mxu0 %v999
  %v1152 = vpop.f32.mrf.mxu0
  %v1153 = vadd.f32 0.0, %v1152
  %v1154 = vpop.f32.mrf.mxu0
  %1155 = vmatprep.mubr.f32.mxu0 0.0
  %1156 = vmatmul.mubr.f32.gmra.mxu0 %v1002
  %v1157 = vpop.f32.mrf.mxu0
  %v1158 = vadd.f32 0.0, %v1157
  %v1159 = vpop.f32.mrf.mxu0
  %1160 = vmatprep.mubr.f32.mxu0 0.0
  %1161 = vmatmul.mubr.f32.gmra.mxu0 %v1005
  %v1162 = vpop.f32.mrf.mxu0
  %v1163 = vadd.f32 0.0, %v1162
  %v1164 = vpop.f32.mrf.mxu0
  %1165 = vmatprep.mubr.f32.mxu0 0.0
  %1166 = vmatmul.mubr.f32.gmra.mxu0 %v1008
  %v1167 = vpop.f32.mrf.mxu0
  %v1168 = vadd.f32 0.0, %v1167
  %v1169 = vpop.f32.mrf.mxu0
  %1170 = vmatprep.mubr.f32.mxu0 0.0
  %1171 = vmatmul.mubr.f32.gmra.mxu0 %v1011
  %v1172 = vpop.f32.mrf.mxu0
  %v1173 = vadd.f32 0.0, %v1172
  %v1174 = vpop.f32.mrf.mxu0
  %1175 = vmatprep.mubr.f32.mxu0 0.0
  %1176 = vmatmul.mubr.f32.gmra.mxu0 %v1014
  %v1177 = vpop.f32.mrf.mxu0
  %v1178 = vadd.f32 0.0, %v1177
  %v1179 = vpop.f32.mrf.mxu0
  %1180 = vmatprep.mubr.f32.mxu0 0.0
  %1181 = vmatmul.mubr.f32.gmra.mxu0 %v1017
  %v1182 = vpop.f32.mrf.mxu0
  %v1183 = vadd.f32 0.0, %v1182
  %v1184 = vpop.f32.mrf.mxu0
  %1185 = vmatprep.mubr.f32.mxu0 0.0
  %1186 = vmatmul.mubr.f32.gmra.mxu0 %v1020
  %v1187 = vpop.f32.mrf.mxu0
  %v1188 = vadd.f32 0.0, %v1187
  %v1189 = vpop.f32.mrf.mxu0
  %1190 = vmatprep.mubr.f32.mxu0 0.0
  %1191 = vmatmul.mubr.f32.gmra.mxu0 %v1023
  %v1192 = vpop.f32.mrf.mxu0
  %v1193 = vadd.f32 0.0, %v1192
  %v1194 = vpop.f32.mrf.mxu0
  %1195 = vmatprep.mubr.f32.mxu0 0.0
  %1196 = vmatmul.mubr.f32.gmra.mxu0 %v1026
  %v1197 = vpop.f32.mrf.mxu0
  %v1198 = vadd.f32 0.0, %v1197
  %v1199 = vpop.f32.mrf.mxu0
  %1200 = vmatprep.mubr.f32.mxu0 0.0
  %1201 = vmatmul.mubr.f32.gmra.mxu0 %v1029
  %v1202 = vpop.f32.mrf.mxu0
  %v1203 = vadd.f32 0.0, %v1202
  %v1204 = vpop.f32.mrf.mxu0
  %1205 = vmatprep.mubr.f32.mxu0 0.0
  %1206 = vmatmul.mubr.f32.gmra.mxu0 %v1032
  %v1207 = vpop.f32.mrf.mxu0
  %v1208 = vadd.f32 0.0, %v1207
  %v1209 = vpop.f32.mrf.mxu0
  %1210 = vmatprep.mubr.f32.mxu0 0.0
  %1211 = vmatmul.mubr.f32.gmra.mxu0 %v1035
  %v1212 = vpop.f32.mrf.mxu0
  %v1213 = vadd.f32 0.0, %v1212
  %v1214 = vpop.f32.mrf.mxu0
  %1215 = vmatprep.mubr.f32.mxu0 0.0
  %1216 = vmatmul.mubr.f32.gmra.mxu0 %v1038
  %v1217 = vpop.f32.mrf.mxu0
  %v1218 = vadd.f32 0.0, %v1217
  %v1219 = vpop.f32.mrf.mxu0
  %1220 = vmatprep.mubr.f32.mxu0 0.0
  %1221 = vmatmul.mubr.f32.gmra.mxu0 %v1041
  %v1222 = vpop.f32.mrf.mxu0
  %v1223 = vadd.f32 0.0, %v1222
  %v1224 = vpop.f32.mrf.mxu0
  %1225 = vmatprep.mubr.f32.mxu0 0.0
  %1226 = vmatmul.mubr.f32.gmra.mxu0 %v1044
  %v1227 = vpop.f32.mrf.mxu0
  %v1228 = vadd.f32 0.0, %v1227
  %v1229 = vpop.f32.mrf.mxu0
  %1230 = vdwg.mxu0
  %v1231 = vmul.f32 %v1113, %v29
  %v1232 = vmul.f32 %v1118, %v29
  %v1233 = vmul.f32 %v1123, %v29
  %v1234 = vmul.f32 %v1128, %v29
  %v1235 = vmul.f32 %v1133, %v29
  %v1236 = vmul.f32 %v1138, %v29
  %v1237 = vmul.f32 %v1143, %v34
  %v1238 = vmul.f32 %v1148, %v34
  %v1239 = vmul.f32 %v1153, %v34
  %v1240 = vmul.f32 %v1158, %v34
  %v1241 = vmul.f32 %v1163, %v34
  %v1242 = vmul.f32 %v1168, %v34
  %v1243 = vadd.f32 %v1231, %v1237
  %v1244 = vadd.f32 %v1232, %v1238
  %v1245 = vadd.f32 %v1233, %v1239
  %v1246 = vadd.f32 %v1234, %v1240
  %v1247 = vadd.f32 %v1235, %v1241
  %v1248 = vadd.f32 %v1236, %v1242
  %v1249 = vmul.f32 %v1173, %v39
  %v1250 = vmul.f32 %v1178, %v39
  %v1251 = vmul.f32 %v1183, %v39
  %v1252 = vmul.f32 %v1188, %v39
  %v1253 = vmul.f32 %v1193, %v39
  %v1254 = vmul.f32 %v1198, %v39
  %v1255 = vadd.f32 %v1243, %v1249
  %v1256 = vadd.f32 %v1244, %v1250
  %v1257 = vadd.f32 %v1245, %v1251
  %v1258 = vadd.f32 %v1246, %v1252
  %v1259 = vadd.f32 %v1247, %v1253
  %v1260 = vadd.f32 %v1248, %v1254
  %v1261 = vmul.f32 %v1203, %v44
  %v1262 = vmul.f32 %v1208, %v44
  %v1263 = vmul.f32 %v1213, %v44
  %v1264 = vmul.f32 %v1218, %v44
  %v1265 = vmul.f32 %v1223, %v44
  %v1266 = vmul.f32 %v1228, %v44
  %v1267 = vadd.f32 %v1255, %v1261
  %v1268 = vadd.f32 %v1256, %v1262
  %v1269 = vadd.f32 %v1257, %v1263
  %v1270 = vadd.f32 %v1258, %v1264
  %v1271 = vadd.f32 %v1259, %v1265
  %v1272 = vadd.f32 %v1260, %v1266
  %s1273 = scalar_lea.vmem %s1, 96
  %v1274 = vld [vmem:[%s1273] sm:$0xff]
  %v1275 = vld [vmem:[%s1273 + $0x8] sm:$0xff]
  %v1276 = vld [vmem:[%s1273 + $0x10] sm:$0xff]
  %v1277 = vld [vmem:[%s1273 + $0x18] sm:$0xff]
  %s1278 = scalar_lea.vmem %s2, 3
  %v1279 = vld [vmem:[%s1278] sm:$0x1]
  %v1281 = vlaneseq
  %v1282 = vshrl.u32 %v1281, 7
  %v1283 = vsub.s32 0, %v1282
  %v1284 = vrot.slane %v1279, %v1283
  %v1287 = vsel %vm56, %v1267, 0
  %v1290 = vsel %vm56, %v1268, 0
  %v1293 = vsel %vm56, %v1269, 0
  %v1296 = vsel %vm56, %v1270, 0
  %v1299 = vsel %vm56, %v1271, 0
  %v1302 = vsel %vm56, %v1272, 0
  %1304 = vmatprep.subr.mxu0 0.0
  %1305 = vmatpush1.msra.mxu0 0.0
  %1306 = vmatprep.subr.mxu0 0.0
  %1307 = vmatpush1.msra.mxu0 0.0
  %1308 = vmatprep.subr.mxu0 0.0
  %1309 = vmatpush1.msra.mxu0 0.0
  %1310 = vmatprep.subr.mxu0 0.0
  %1311 = vmatpush1.msra.mxu0 0.0
  %1312 = vmatprep.subr.mxu0 0.0
  %1313 = vmatpush1.msra.mxu0 0.0
  %1314 = vmatprep.subr.mxu0 0.0
  %1315 = vmatpush1.msra.mxu0 0.0
  %1316 = vmatprep.subr.mxu0 0.0
  %1317 = vmatpush1.msra.mxu0 0.0
  %1318 = vmatprep.subr.mxu0 0.0
  %1319 = vmatpush1.msra.mxu0 0.0
  %1320 = vmatprep.subr.mxu0 0.0
  %1321 = vmatpush1.msra.mxu0 0.0
  %1322 = vmatprep.subr.mxu0 0.0
  %1323 = vmatpush1.msra.mxu0 0.0
  %1324 = vmatprep.subr.mxu0 0.0
  %1325 = vmatpush1.msra.mxu0 0.0
  %1326 = vmatprep.subr.mxu0 0.0
  %1327 = vmatpush1.msra.mxu0 0.0
  %1328 = vmatprep.subr.mxu0 0.0
  %1329 = vmatpush1.msra.mxu0 %v1277
  %1330 = vmatprep.subr.mxu0 0.0
  %1331 = vmatpush1.msra.mxu0 %v1276
  %1332 = vmatprep.subr.mxu0 0.0
  %1333 = vmatpush1.msra.mxu0 %v1275
  %1334 = vmatprep.subr.mxu0 0.0
  %1335 = vmatpush1.msra.mxu0 %v1274
  %1336 = vmatprep.subr.mxu0 0.0
  %1337 = vmatpush2.msra.mxu0 0.0
  %1338 = vmatprep.subr.mxu0 0.0
  %1339 = vmatpush2.msra.mxu0 0.0
  %1340 = vmatprep.subr.mxu0 0.0
  %1341 = vmatpush2.msra.mxu0 0.0
  %1342 = vmatprep.subr.mxu0 0.0
  %1343 = vmatpush2.msra.mxu0 0.0
  %1344 = vmatprep.subr.mxu0 0.0
  %1345 = vmatpush2.msra.mxu0 0.0
  %1346 = vmatprep.subr.mxu0 0.0
  %1347 = vmatpush2.msra.mxu0 0.0
  %1348 = vmatprep.subr.mxu0 0.0
  %1349 = vmatpush2.msra.mxu0 0.0
  %1350 = vmatprep.subr.mxu0 0.0
  %1351 = vmatpush2.msra.mxu0 0.0
  %1352 = vmatprep.subr.mxu0 0.0
  %1353 = vmatpush2.msra.mxu0 0.0
  %1354 = vmatprep.subr.mxu0 0.0
  %1355 = vmatpush2.msra.mxu0 0.0
  %1356 = vmatprep.subr.mxu0 0.0
  %1357 = vmatpush2.msra.mxu0 0.0
  %1358 = vmatprep.subr.mxu0 0.0
  %1359 = vmatpush2.msra.mxu0 0.0
  %1360 = vmatprep.subr.mxu0 0.0
  %1361 = vmatpush2.msra.mxu0 0.0
  %1362 = vmatprep.subr.mxu0 0.0
  %1363 = vmatpush2.msra.mxu0 0.0
  %1364 = vmatprep.subr.mxu0 0.0
  %1365 = vmatpush2.msra.mxu0 0.0
  %1366 = vmatprep.subr.mxu0 0.0
  %1367 = vmatpush2.msra.mxu0 0.0
  %1368 = vmatprep.mubr.f32.mxu0 0.0
  %1369 = vmatmul.mubr.f32.gmra.mxu0 %v1287
  %v1370 = vpop.f32.mrf.mxu0
  %v1371 = vadd.f32 %v1284, %v1370
  %v1372 = vpop.f32.mrf.mxu0
  %1373 = vmatprep.mubr.f32.mxu0 0.0
  %1374 = vmatmul.mubr.f32.gmra.mxu0 %v1290
  %v1375 = vpop.f32.mrf.mxu0
  %v1376 = vadd.f32 %v1284, %v1375
  %v1377 = vpop.f32.mrf.mxu0
  %1378 = vmatprep.mubr.f32.mxu0 0.0
  %1379 = vmatmul.mubr.f32.gmra.mxu0 %v1293
  %v1380 = vpop.f32.mrf.mxu0
  %v1381 = vadd.f32 %v1284, %v1380
  %v1382 = vpop.f32.mrf.mxu0
  %1383 = vmatprep.mubr.f32.mxu0 0.0
  %1384 = vmatmul.mubr.f32.gmra.mxu0 %v1296
  %v1385 = vpop.f32.mrf.mxu0
  %v1386 = vadd.f32 %v1284, %v1385
  %v1387 = vpop.f32.mrf.mxu0
  %1388 = vmatprep.mubr.f32.mxu0 0.0
  %1389 = vmatmul.mubr.f32.gmra.mxu0 %v1299
  %v1390 = vpop.f32.mrf.mxu0
  %v1391 = vadd.f32 %v1284, %v1390
  %v1392 = vpop.f32.mrf.mxu0
  %1393 = vmatprep.mubr.f32.mxu0 0.0
  %1394 = vmatmul.mubr.f32.gmra.mxu0 %v1302
  %v1395 = vpop.f32.mrf.mxu0
  %v1396 = vadd.f32 %v1284, %v1395
  %v1397 = vpop.f32.mrf.mxu0
  %1398 = vdwg.mxu0
  %v1399 = vadd.f32 %v1371, %v17
  %v1400 = vadd.f32 %v1376, %v18
  %v1401 = vadd.f32 %v1381, %v19
  %v1402 = vadd.f32 %v1386, %v20
  %v1403 = vadd.f32 %v1391, %v21
  %v1404 = vadd.f32 %v1396, %v22
  %v1405 = vsel %vm56, %v1399, 0.0
  %1406 = vadd.xlane.f32.xlu0 %v1405
  %v1407 = vpop.xlane.xlu0 %1406
  %v1408 = vsel %vm56, %v1400, 0.0
  %1409 = vadd.xlane.f32.xlu0 %v1408
  %v1410 = vpop.xlane.xlu0 %1409
  %v1411 = vsel %vm56, %v1401, 0.0
  %1412 = vadd.xlane.f32.xlu0 %v1411
  %v1413 = vpop.xlane.xlu0 %1412
  %v1414 = vsel %vm56, %v1402, 0.0
  %1415 = vadd.xlane.f32.xlu0 %v1414
  %v1416 = vpop.xlane.xlu0 %1415
  %v1417 = vsel %vm56, %v1403, 0.0
  %1418 = vadd.xlane.f32.xlu0 %v1417
  %v1419 = vpop.xlane.xlu0 %1418
  %v1420 = vsel %vm56, %v1404, 0.0
  %1421 = vadd.xlane.f32.xlu0 %v1420
  %v1422 = vpop.xlane.xlu0 %1421
  %v1423 = vrcp.pop 32.0
  %v1424 = vmul.f32 %v1407, %v1423
  %v1425 = vmul.f32 %v1410, %v1423
  %v1426 = vmul.f32 %v1413, %v1423
  %v1427 = vmul.f32 %v1416, %v1423
  %v1428 = vmul.f32 %v1419, %v1423
  %v1429 = vmul.f32 %v1422, %v1423
  %v1430 = vsub.f32 %v1399, %v1424
  %v1431 = vsub.f32 %v1400, %v1425
  %v1432 = vsub.f32 %v1401, %v1426
  %v1433 = vsub.f32 %v1402, %v1427
  %v1434 = vsub.f32 %v1403, %v1428
  %v1435 = vsub.f32 %v1404, %v1429
  %v1436 = vmul.f32 %v1430, %v1430
  %v1437 = vmul.f32 %v1431, %v1431
  %v1438 = vmul.f32 %v1432, %v1432
  %v1439 = vmul.f32 %v1433, %v1433
  %v1440 = vmul.f32 %v1434, %v1434
  %v1441 = vmul.f32 %v1435, %v1435
  %v1442 = vsel %vm56, %v1436, 0.0
  %1443 = vadd.xlane.f32.xlu0 %v1442
  %v1444 = vpop.xlane.xlu0 %1443
  %v1445 = vsel %vm56, %v1437, 0.0
  %1446 = vadd.xlane.f32.xlu0 %v1445
  %v1447 = vpop.xlane.xlu0 %1446
  %v1448 = vsel %vm56, %v1438, 0.0
  %1449 = vadd.xlane.f32.xlu0 %v1448
  %v1450 = vpop.xlane.xlu0 %1449
  %v1451 = vsel %vm56, %v1439, 0.0
  %1452 = vadd.xlane.f32.xlu0 %v1451
  %v1453 = vpop.xlane.xlu0 %1452
  %v1454 = vsel %vm56, %v1440, 0.0
  %1455 = vadd.xlane.f32.xlu0 %v1454
  %v1456 = vpop.xlane.xlu0 %1455
  %v1457 = vsel %vm56, %v1441, 0.0
  %1458 = vadd.xlane.f32.xlu0 %v1457
  %v1459 = vpop.xlane.xlu0 %1458
  %v1460 = vmul.f32 %v1444, %v1423
  %v1461 = vmul.f32 %v1447, %v1423
  %v1462 = vmul.f32 %v1450, %v1423
  %v1463 = vmul.f32 %v1453, %v1423
  %v1464 = vmul.f32 %v1456, %v1423
  %v1465 = vmul.f32 %v1459, %v1423
  %v1466 = vadd.f32 %v1460, 1e-05
  %v1467 = vadd.f32 %v1461, 1e-05
  %v1468 = vadd.f32 %v1462, 1e-05
  %v1469 = vadd.f32 %v1463, 1e-05
  %v1470 = vadd.f32 %v1464, 1e-05
  %v1471 = vadd.f32 %v1465, 1e-05
  %v1472 = vrsqrt.pop %v1466
  %v1473 = vrsqrt.pop %v1467
  %v1474 = vrsqrt.pop %v1468
  %v1475 = vrsqrt.pop %v1469
  %v1476 = vrsqrt.pop %v1470
  %v1477 = vrsqrt.pop %v1471
  %v1478 = vmul.f32 %v1430, %v1472
  %v1479 = vmul.f32 %v1431, %v1473
  %v1480 = vmul.f32 %v1432, %v1474
  %v1481 = vmul.f32 %v1433, %v1475
  %v1482 = vmul.f32 %v1434, %v1476
  %v1483 = vmul.f32 %v1435, %v1477
  %s1484 = scalar_lea.vmem %s2, 4
  %v1485 = vld [vmem:[%s1484] sm:$0x1]
  %v1487 = vlaneseq
  %v1488 = vshrl.u32 %v1487, 7
  %v1489 = vsub.s32 0, %v1488
  %v1490 = vrot.slane %v1485, %v1489
  %v1492 = vmul.f32 %v1478, %v1490
  %v1493 = vmul.f32 %v1479, %v1490
  %v1494 = vmul.f32 %v1480, %v1490
  %v1495 = vmul.f32 %v1481, %v1490
  %v1496 = vmul.f32 %v1482, %v1490
  %v1497 = vmul.f32 %v1483, %v1490
  %s1498 = scalar_lea.vmem %s2, 5
  %v1499 = vld [vmem:[%s1498] sm:$0x1]
  %v1501 = vlaneseq
  %v1502 = vshrl.u32 %v1501, 7
  %v1503 = vsub.s32 0, %v1502
  %v1504 = vrot.slane %v1499, %v1503
  %v1506 = vadd.f32 %v1492, %v1504
  %v1507 = vadd.f32 %v1493, %v1504
  %v1508 = vadd.f32 %v1494, %v1504
  %v1509 = vadd.f32 %v1495, %v1504
  %v1510 = vadd.f32 %v1496, %v1504
  %v1511 = vadd.f32 %v1497, %v1504
  %s1512 = scalar_lea.vmem %s1, 128
  %v1513 = vld [vmem:[%s1512] sm:$0xff]
  %v1514 = vld [vmem:[%s1512 + $0x8] sm:$0xff]
  %v1515 = vld [vmem:[%s1512 + $0x10] sm:$0xff]
  %v1516 = vld [vmem:[%s1512 + $0x18] sm:$0xff]
  %s1517 = scalar_lea.vmem %s2, 6
  %v1518 = vld [vmem:[%s1517] sm:$0x1]
  %v1520 = vlaneseq
  %v1521 = vshrl.u32 %v1520, 7
  %v1522 = vsub.s32 0, %v1521
  %v1523 = vrot.slane %v1518, %v1522
  %v1526 = vsel %vm56, %v1506, 0
  %v1529 = vsel %vm56, %v1507, 0
  %v1532 = vsel %vm56, %v1508, 0
  %v1535 = vsel %vm56, %v1509, 0
  %v1538 = vsel %vm56, %v1510, 0
  %v1541 = vsel %vm56, %v1511, 0
  %1543 = vmatprep.subr.mxu0 0.0
  %1544 = vmatpush1.msra.mxu0 0.0
  %1545 = vmatprep.subr.mxu0 0.0
  %1546 = vmatpush1.msra.mxu0 0.0
  %1547 = vmatprep.subr.mxu0 0.0
  %1548 = vmatpush1.msra.mxu0 0.0
  %1549 = vmatprep.subr.mxu0 0.0
  %1550 = vmatpush1.msra.mxu0 0.0
  %1551 = vmatprep.subr.mxu0 0.0
  %1552 = vmatpush1.msra.mxu0 0.0
  %1553 = vmatprep.subr.mxu0 0.0
  %1554 = vmatpush1.msra.mxu0 0.0
  %1555 = vmatprep.subr.mxu0 0.0
  %1556 = vmatpush1.msra.mxu0 0.0
  %1557 = vmatprep.subr.mxu0 0.0
  %1558 = vmatpush1.msra.mxu0 0.0
  %1559 = vmatprep.subr.mxu0 0.0
  %1560 = vmatpush1.msra.mxu0 0.0
  %1561 = vmatprep.subr.mxu0 0.0
  %1562 = vmatpush1.msra.mxu0 0.0
  %1563 = vmatprep.subr.mxu0 0.0
  %1564 = vmatpush1.msra.mxu0 0.0
  %1565 = vmatprep.subr.mxu0 0.0
  %1566 = vmatpush1.msra.mxu0 0.0
  %1567 = vmatprep.subr.mxu0 0.0
  %1568 = vmatpush1.msra.mxu0 %v1516
  %1569 = vmatprep.subr.mxu0 0.0
  %1570 = vmatpush1.msra.mxu0 %v1515
  %1571 = vmatprep.subr.mxu0 0.0
  %1572 = vmatpush1.msra.mxu0 %v1514
  %1573 = vmatprep.subr.mxu0 0.0
  %1574 = vmatpush1.msra.mxu0 %v1513
  %1575 = vmatprep.subr.mxu0 0.0
  %1576 = vmatpush2.msra.mxu0 0.0
  %1577 = vmatprep.subr.mxu0 0.0
  %1578 = vmatpush2.msra.mxu0 0.0
  %1579 = vmatprep.subr.mxu0 0.0
  %1580 = vmatpush2.msra.mxu0 0.0
  %1581 = vmatprep.subr.mxu0 0.0
  %1582 = vmatpush2.msra.mxu0 0.0
  %1583 = vmatprep.subr.mxu0 0.0
  %1584 = vmatpush2.msra.mxu0 0.0
  %1585 = vmatprep.subr.mxu0 0.0
  %1586 = vmatpush2.msra.mxu0 0.0
  %1587 = vmatprep.subr.mxu0 0.0
  %1588 = vmatpush2.msra.mxu0 0.0
  %1589 = vmatprep.subr.mxu0 0.0
  %1590 = vmatpush2.msra.mxu0 0.0
  %1591 = vmatprep.subr.mxu0 0.0
  %1592 = vmatpush2.msra.mxu0 0.0
  %1593 = vmatprep.subr.mxu0 0.0
  %1594 = vmatpush2.msra.mxu0 0.0
  %1595 = vmatprep.subr.mxu0 0.0
  %1596 = vmatpush2.msra.mxu0 0.0
  %1597 = vmatprep.subr.mxu0 0.0
  %1598 = vmatpush2.msra.mxu0 0.0
  %1599 = vmatprep.subr.mxu0 0.0
  %1600 = vmatpush2.msra.mxu0 0.0
  %1601 = vmatprep.subr.mxu0 0.0
  %1602 = vmatpush2.msra.mxu0 0.0
  %1603 = vmatprep.subr.mxu0 0.0
  %1604 = vmatpush2.msra.mxu0 0.0
  %1605 = vmatprep.subr.mxu0 0.0
  %1606 = vmatpush2.msra.mxu0 0.0
  %1607 = vmatprep.mubr.f32.mxu0 0.0
  %1608 = vmatmul.mubr.f32.gmra.mxu0 %v1526
  %v1609 = vpop.f32.mrf.mxu0
  %v1610 = vadd.f32 %v1523, %v1609
  %v1611 = vpop.f32.mrf.mxu0
  %1612 = vmatprep.mubr.f32.mxu0 0.0
  %1613 = vmatmul.mubr.f32.gmra.mxu0 %v1529
  %v1614 = vpop.f32.mrf.mxu0
  %v1615 = vadd.f32 %v1523, %v1614
  %v1616 = vpop.f32.mrf.mxu0
  %1617 = vmatprep.mubr.f32.mxu0 0.0
  %1618 = vmatmul.mubr.f32.gmra.mxu0 %v1532
  %v1619 = vpop.f32.mrf.mxu0
  %v1620 = vadd.f32 %v1523, %v1619
  %v1621 = vpop.f32.mrf.mxu0
  %1622 = vmatprep.mubr.f32.mxu0 0.0
  %1623 = vmatmul.mubr.f32.gmra.mxu0 %v1535
  %v1624 = vpop.f32.mrf.mxu0
  %v1625 = vadd.f32 %v1523, %v1624
  %v1626 = vpop.f32.mrf.mxu0
  %1627 = vmatprep.mubr.f32.mxu0 0.0
  %1628 = vmatmul.mubr.f32.gmra.mxu0 %v1538
  %v1629 = vpop.f32.mrf.mxu0
  %v1630 = vadd.f32 %v1523, %v1629
  %v1631 = vpop.f32.mrf.mxu0
  %1632 = vmatprep.mubr.f32.mxu0 0.0
  %1633 = vmatmul.mubr.f32.gmra.mxu0 %v1541
  %v1634 = vpop.f32.mrf.mxu0
  %v1635 = vadd.f32 %v1523, %v1634
  %v1636 = vpop.f32.mrf.mxu0
  %1637 = vdwg.mxu0
  %s1638 = scalar_lea.vmem %s1, 160
  %v1639 = vld [vmem:[%s1638] sm:$0xff]
  %v1640 = vld [vmem:[%s1638 + $0x8] sm:$0xff]
  %v1641 = vld [vmem:[%s1638 + $0x10] sm:$0xff]
  %v1642 = vld [vmem:[%s1638 + $0x18] sm:$0xff]
  %s1643 = scalar_lea.vmem %s2, 7
  %v1644 = vld [vmem:[%s1643] sm:$0x1]
  %v1646 = vlaneseq
  %v1647 = vshrl.u32 %v1646, 7
  %v1648 = vsub.s32 0, %v1647
  %v1649 = vrot.slane %v1644, %v1648
  %1651 = vmatprep.subr.mxu0 0.0
  %1652 = vmatpush1.msra.mxu0 0.0
  %1653 = vmatprep.subr.mxu0 0.0
  %1654 = vmatpush1.msra.mxu0 0.0
  %1655 = vmatprep.subr.mxu0 0.0
  %1656 = vmatpush1.msra.mxu0 0.0
  %1657 = vmatprep.subr.mxu0 0.0
  %1658 = vmatpush1.msra.mxu0 0.0
  %1659 = vmatprep.subr.mxu0 0.0
  %1660 = vmatpush1.msra.mxu0 0.0
  %1661 = vmatprep.subr.mxu0 0.0
  %1662 = vmatpush1.msra.mxu0 0.0
  %1663 = vmatprep.subr.mxu0 0.0
  %1664 = vmatpush1.msra.mxu0 0.0
  %1665 = vmatprep.subr.mxu0 0.0
  %1666 = vmatpush1.msra.mxu0 0.0
  %1667 = vmatprep.subr.mxu0 0.0
  %1668 = vmatpush1.msra.mxu0 0.0
  %1669 = vmatprep.subr.mxu0 0.0
  %1670 = vmatpush1.msra.mxu0 0.0
  %1671 = vmatprep.subr.mxu0 0.0
  %1672 = vmatpush1.msra.mxu0 0.0
  %1673 = vmatprep.subr.mxu0 0.0
  %1674 = vmatpush1.msra.mxu0 0.0
  %1675 = vmatprep.subr.mxu0 0.0
  %1676 = vmatpush1.msra.mxu0 %v1642
  %1677 = vmatprep.subr.mxu0 0.0
  %1678 = vmatpush1.msra.mxu0 %v1641
  %1679 = vmatprep.subr.mxu0 0.0
  %1680 = vmatpush1.msra.mxu0 %v1640
  %1681 = vmatprep.subr.mxu0 0.0
  %1682 = vmatpush1.msra.mxu0 %v1639
  %1683 = vmatprep.subr.mxu0 0.0
  %1684 = vmatpush2.msra.mxu0 0.0
  %1685 = vmatprep.subr.mxu0 0.0
  %1686 = vmatpush2.msra.mxu0 0.0
  %1687 = vmatprep.subr.mxu0 0.0
  %1688 = vmatpush2.msra.mxu0 0.0
  %1689 = vmatprep.subr.mxu0 0.0
  %1690 = vmatpush2.msra.mxu0 0.0
  %1691 = vmatprep.subr.mxu0 0.0
  %1692 = vmatpush2.msra.mxu0 0.0
  %1693 = vmatprep.subr.mxu0 0.0
  %1694 = vmatpush2.msra.mxu0 0.0
  %1695 = vmatprep.subr.mxu0 0.0
  %1696 = vmatpush2.msra.mxu0 0.0
  %1697 = vmatprep.subr.mxu0 0.0
  %1698 = vmatpush2.msra.mxu0 0.0
  %1699 = vmatprep.subr.mxu0 0.0
  %1700 = vmatpush2.msra.mxu0 0.0
  %1701 = vmatprep.subr.mxu0 0.0
  %1702 = vmatpush2.msra.mxu0 0.0
  %1703 = vmatprep.subr.mxu0 0.0
  %1704 = vmatpush2.msra.mxu0 0.0
  %1705 = vmatprep.subr.mxu0 0.0
  %1706 = vmatpush2.msra.mxu0 0.0
  %1707 = vmatprep.subr.mxu0 0.0
  %1708 = vmatpush2.msra.mxu0 0.0
  %1709 = vmatprep.subr.mxu0 0.0
  %1710 = vmatpush2.msra.mxu0 0.0
  %1711 = vmatprep.subr.mxu0 0.0
  %1712 = vmatpush2.msra.mxu0 0.0
  %1713 = vmatprep.subr.mxu0 0.0
  %1714 = vmatpush2.msra.mxu0 0.0
  %1715 = vmatprep.mubr.f32.mxu0 0.0
  %1716 = vmatmul.mubr.f32.gmra.mxu0 %v1526
  %v1717 = vpop.f32.mrf.mxu0
  %v1718 = vadd.f32 %v1649, %v1717
  %v1719 = vpop.f32.mrf.mxu0
  %1720 = vmatprep.mubr.f32.mxu0 0.0
  %1721 = vmatmul.mubr.f32.gmra.mxu0 %v1529
  %v1722 = vpop.f32.mrf.mxu0
  %v1723 = vadd.f32 %v1649, %v1722
  %v1724 = vpop.f32.mrf.mxu0
  %1725 = vmatprep.mubr.f32.mxu0 0.0
  %1726 = vmatmul.mubr.f32.gmra.mxu0 %v1532
  %v1727 = vpop.f32.mrf.mxu0
  %v1728 = vadd.f32 %v1649, %v1727
  %v1729 = vpop.f32.mrf.mxu0
  %1730 = vmatprep.mubr.f32.mxu0 0.0
  %1731 = vmatmul.mubr.f32.gmra.mxu0 %v1535
  %v1732 = vpop.f32.mrf.mxu0
  %v1733 = vadd.f32 %v1649, %v1732
  %v1734 = vpop.f32.mrf.mxu0
  %1735 = vmatprep.mubr.f32.mxu0 0.0
  %1736 = vmatmul.mubr.f32.gmra.mxu0 %v1538
  %v1737 = vpop.f32.mrf.mxu0
  %v1738 = vadd.f32 %v1649, %v1737
  %v1739 = vpop.f32.mrf.mxu0
  %1740 = vmatprep.mubr.f32.mxu0 0.0
  %1741 = vmatmul.mubr.f32.gmra.mxu0 %v1541
  %v1742 = vpop.f32.mrf.mxu0
  %v1743 = vadd.f32 %v1649, %v1742
  %v1744 = vpop.f32.mrf.mxu0
  %1745 = vdwg.mxu0
  %s1746 = scalar_lea.vmem %s1, 192
  %v1747 = vld [vmem:[%s1746] sm:$0xff]
  %v1748 = vld [vmem:[%s1746 + $0x8] sm:$0xff]
  %v1749 = vld [vmem:[%s1746 + $0x10] sm:$0xff]
  %v1750 = vld [vmem:[%s1746 + $0x18] sm:$0xff]
  %s1751 = scalar_lea.vmem %s2, 8
  %v1752 = vld [vmem:[%s1751] sm:$0x1]
  %v1754 = vlaneseq
  %v1755 = vshrl.u32 %v1754, 7
  %v1756 = vsub.s32 0, %v1755
  %v1757 = vrot.slane %v1752, %v1756
  %1759 = vmatprep.subr.mxu0 0.0
  %1760 = vmatpush1.msra.mxu0 0.0
  %1761 = vmatprep.subr.mxu0 0.0
  %1762 = vmatpush1.msra.mxu0 0.0
  %1763 = vmatprep.subr.mxu0 0.0
  %1764 = vmatpush1.msra.mxu0 0.0
  %1765 = vmatprep.subr.mxu0 0.0
  %1766 = vmatpush1.msra.mxu0 0.0
  %1767 = vmatprep.subr.mxu0 0.0
  %1768 = vmatpush1.msra.mxu0 0.0
  %1769 = vmatprep.subr.mxu0 0.0
  %1770 = vmatpush1.msra.mxu0 0.0
  %1771 = vmatprep.subr.mxu0 0.0
  %1772 = vmatpush1.msra.mxu0 0.0
  %1773 = vmatprep.subr.mxu0 0.0
  %1774 = vmatpush1.msra.mxu0 0.0
  %1775 = vmatprep.subr.mxu0 0.0
  %1776 = vmatpush1.msra.mxu0 0.0
  %1777 = vmatprep.subr.mxu0 0.0
  %1778 = vmatpush1.msra.mxu0 0.0
  %1779 = vmatprep.subr.mxu0 0.0
  %1780 = vmatpush1.msra.mxu0 0.0
  %1781 = vmatprep.subr.mxu0 0.0
  %1782 = vmatpush1.msra.mxu0 0.0
  %1783 = vmatprep.subr.mxu0 0.0
  %1784 = vmatpush1.msra.mxu0 %v1750
  %1785 = vmatprep.subr.mxu0 0.0
  %1786 = vmatpush1.msra.mxu0 %v1749
  %1787 = vmatprep.subr.mxu0 0.0
  %1788 = vmatpush1.msra.mxu0 %v1748
  %1789 = vmatprep.subr.mxu0 0.0
  %1790 = vmatpush1.msra.mxu0 %v1747
  %1791 = vmatprep.subr.mxu0 0.0
  %1792 = vmatpush2.msra.mxu0 0.0
  %1793 = vmatprep.subr.mxu0 0.0
  %1794 = vmatpush2.msra.mxu0 0.0
  %1795 = vmatprep.subr.mxu0 0.0
  %1796 = vmatpush2.msra.mxu0 0.0
  %1797 = vmatprep.subr.mxu0 0.0
  %1798 = vmatpush2.msra.mxu0 0.0
  %1799 = vmatprep.subr.mxu0 0.0
  %1800 = vmatpush2.msra.mxu0 0.0
  %1801 = vmatprep.subr.mxu0 0.0
  %1802 = vmatpush2.msra.mxu0 0.0
  %1803 = vmatprep.subr.mxu0 0.0
  %1804 = vmatpush2.msra.mxu0 0.0
  %1805 = vmatprep.subr.mxu0 0.0
  %1806 = vmatpush2.msra.mxu0 0.0
  %1807 = vmatprep.subr.mxu0 0.0
  %1808 = vmatpush2.msra.mxu0 0.0
  %1809 = vmatprep.subr.mxu0 0.0
  %1810 = vmatpush2.msra.mxu0 0.0
  %1811 = vmatprep.subr.mxu0 0.0
  %1812 = vmatpush2.msra.mxu0 0.0
  %1813 = vmatprep.subr.mxu0 0.0
  %1814 = vmatpush2.msra.mxu0 0.0
  %1815 = vmatprep.subr.mxu0 0.0
  %1816 = vmatpush2.msra.mxu0 0.0
  %1817 = vmatprep.subr.mxu0 0.0
  %1818 = vmatpush2.msra.mxu0 0.0
  %1819 = vmatprep.subr.mxu0 0.0
  %1820 = vmatpush2.msra.mxu0 0.0
  %1821 = vmatprep.subr.mxu0 0.0
  %1822 = vmatpush2.msra.mxu0 0.0
  %1823 = vmatprep.mubr.f32.mxu0 0.0
  %1824 = vmatmul.mubr.f32.gmra.mxu0 %v1526
  %v1825 = vpop.f32.mrf.mxu0
  %v1826 = vadd.f32 %v1757, %v1825
  %v1827 = vpop.f32.mrf.mxu0
  %1828 = vmatprep.mubr.f32.mxu0 0.0
  %1829 = vmatmul.mubr.f32.gmra.mxu0 %v1529
  %v1830 = vpop.f32.mrf.mxu0
  %v1831 = vadd.f32 %v1757, %v1830
  %v1832 = vpop.f32.mrf.mxu0
  %1833 = vmatprep.mubr.f32.mxu0 0.0
  %1834 = vmatmul.mubr.f32.gmra.mxu0 %v1532
  %v1835 = vpop.f32.mrf.mxu0
  %v1836 = vadd.f32 %v1757, %v1835
  %v1837 = vpop.f32.mrf.mxu0
  %1838 = vmatprep.mubr.f32.mxu0 0.0
  %1839 = vmatmul.mubr.f32.gmra.mxu0 %v1535
  %v1840 = vpop.f32.mrf.mxu0
  %v1841 = vadd.f32 %v1757, %v1840
  %v1842 = vpop.f32.mrf.mxu0
  %1843 = vmatprep.mubr.f32.mxu0 0.0
  %1844 = vmatmul.mubr.f32.gmra.mxu0 %v1538
  %v1845 = vpop.f32.mrf.mxu0
  %v1846 = vadd.f32 %v1757, %v1845
  %v1847 = vpop.f32.mrf.mxu0
  %1848 = vmatprep.mubr.f32.mxu0 0.0
  %1849 = vmatmul.mubr.f32.gmra.mxu0 %v1541
  %v1850 = vpop.f32.mrf.mxu0
  %v1851 = vadd.f32 %v1757, %v1850
  %v1852 = vpop.f32.mrf.mxu0
  %1853 = vdwg.mxu0
  %v1854 = vmul.f32 %v1610, %v29
  %v1855 = vmul.f32 %v1615, %v29
  %v1856 = vmul.f32 %v1620, %v29
  %v1857 = vmul.f32 %v1625, %v29
  %v1858 = vmul.f32 %v1630, %v29
  %v1859 = vmul.f32 %v1635, %v29
  %v1860 = vmul.f32 %v1610, %v34
  %v1861 = vmul.f32 %v1615, %v34
  %v1862 = vmul.f32 %v1620, %v34
  %v1863 = vmul.f32 %v1625, %v34
  %v1864 = vmul.f32 %v1630, %v34
  %v1865 = vmul.f32 %v1635, %v34
  %v1866 = vmul.f32 %v1610, %v39
  %v1867 = vmul.f32 %v1615, %v39
  %v1868 = vmul.f32 %v1620, %v39
  %v1869 = vmul.f32 %v1625, %v39
  %v1870 = vmul.f32 %v1630, %v39
  %v1871 = vmul.f32 %v1635, %v39
  %v1872 = vmul.f32 %v1610, %v44
  %v1873 = vmul.f32 %v1615, %v44
  %v1874 = vmul.f32 %v1620, %v44
  %v1875 = vmul.f32 %v1625, %v44
  %v1876 = vmul.f32 %v1630, %v44
  %v1877 = vmul.f32 %v1635, %v44
  %s1878 = scalar_lea.vmem %s3, 192
  %v1879 = vld [vmem:[%s1878] sm:$0xff]
  %v1880 = vld [vmem:[%s1878 + $0x8] sm:$0xff]
  %v1881 = vld [vmem:[%s1878 + $0x10] sm:$0xff]
  %v1882 = vld [vmem:[%s1878 + $0x18] sm:$0xff]
  %v1883 = vld [vmem:[%s1878 + $0x20] sm:$0xff]
  %v1884 = vld [vmem:[%s1878 + $0x28] sm:$0xff]
  %v1885 = vld [vmem:[%s1878 + $0x30] sm:$0xff]
  %v1886 = vld [vmem:[%s1878 + $0x38] sm:$0xff]
  %v1887 = vld [vmem:[%s1878 + $0x40] sm:$0xff]
  %v1888 = vld [vmem:[%s1878 + $0x48] sm:$0xff]
  %v1889 = vld [vmem:[%s1878 + $0x50] sm:$0xff]
  %v1890 = vld [vmem:[%s1878 + $0x58] sm:$0xff]
  %v1891 = vld [vmem:[%s1878 + $0x60] sm:$0xff]
  %v1892 = vld [vmem:[%s1878 + $0x68] sm:$0xff]
  %v1893 = vld [vmem:[%s1878 + $0x70] sm:$0xff]
  %v1894 = vld [vmem:[%s1878 + $0x78] sm:$0xff]
  %v1895 = vld [vmem:[%s1878 + $0x80] sm:$0xff]
  %v1896 = vld [vmem:[%s1878 + $0x88] sm:$0xff]
  %v1897 = vld [vmem:[%s1878 + $0x90] sm:$0xff]
  %v1898 = vld [vmem:[%s1878 + $0x98] sm:$0xff]
  %v1899 = vld [vmem:[%s1878 + $0xa0] sm:$0xff]
  %v1900 = vld [vmem:[%s1878 + $0xa8] sm:$0xff]
  %v1901 = vld [vmem:[%s1878 + $0xb0] sm:$0xff]
  %v1902 = vld [vmem:[%s1878 + $0xb8] sm:$0xff]
  %v1904 = vsel %vm56, %v1854, 0
  %v1907 = vsel %vm56, %v1855, 0
  %v1910 = vsel %vm56, %v1856, 0
  %v1913 = vsel %vm56, %v1857, 0
  %v1916 = vsel %vm56, %v1858, 0
  %v1919 = vsel %vm56, %v1859, 0
  %v1922 = vsel %vm56, %v1860, 0
  %v1925 = vsel %vm56, %v1861, 0
  %v1928 = vsel %vm56, %v1862, 0
  %v1931 = vsel %vm56, %v1863, 0
  %v1934 = vsel %vm56, %v1864, 0
  %v1937 = vsel %vm56, %v1865, 0
  %v1940 = vsel %vm56, %v1866, 0
  %v1943 = vsel %vm56, %v1867, 0
  %v1946 = vsel %vm56, %v1868, 0
  %v1949 = vsel %vm56, %v1869, 0
  %v1952 = vsel %vm56, %v1870, 0
  %v1955 = vsel %vm56, %v1871, 0
  %v1958 = vsel %vm56, %v1872, 0
  %v1961 = vsel %vm56, %v1873, 0
  %v1964 = vsel %vm56, %v1874, 0
  %v1967 = vsel %vm56, %v1875, 0
  %v1970 = vsel %vm56, %v1876, 0
  %v1973 = vsel %vm56, %v1877, 0
  %v1976 = vsel %vm56, %v1718, 0
  %v1979 = vsel %vm56, %v1723, 0
  %v1982 = vsel %vm56, %v1728, 0
  %v1985 = vsel %vm56, %v1733, 0
  %v1988 = vsel %vm56, %v1738, 0
  %v1991 = vsel %vm56, %v1743, 0
  %1993 = vmatprep.subr.mxu0 0.0
  %1994 = vmatpush1.xpose.msra.mxu0 0.0
  %1995 = vmatprep.subr.mxu0 0.0
  %1996 = vmatpush1.xpose.msra.mxu0 0.0
  %1997 = vmatprep.subr.mxu0 0.0
  %1998 = vmatpush1.xpose.msra.mxu0 0.0
  %1999 = vmatprep.subr.mxu0 0.0
  %2000 = vmatpush1.xpose.msra.mxu0 0.0
  %2001 = vmatprep.subr.mxu0 0.0
  %2002 = vmatpush1.xpose.msra.mxu0 0.0
  %2003 = vmatprep.subr.mxu0 0.0
  %2004 = vmatpush1.xpose.msra.mxu0 0.0
  %2005 = vmatprep.subr.mxu0 0.0
  %2006 = vmatpush1.xpose.msra.mxu0 0.0
  %2007 = vmatprep.subr.mxu0 0.0
  %2008 = vmatpush1.xpose.msra.mxu0 0.0
  %2009 = vmatprep.subr.mxu0 0.0
  %2010 = vmatpush1.xpose.msra.mxu0 0.0
  %2011 = vmatprep.subr.mxu0 0.0
  %2012 = vmatpush1.xpose.msra.mxu0 0.0
  %2013 = vmatprep.subr.mxu0 0.0
  %2014 = vmatpush1.xpose.msra.mxu0 %v1991
  %2015 = vmatprep.subr.mxu0 0.0
  %2016 = vmatpush1.xpose.msra.mxu0 %v1988
  %2017 = vmatprep.subr.mxu0 0.0
  %2018 = vmatpush1.xpose.msra.mxu0 %v1985
  %2019 = vmatprep.subr.mxu0 0.0
  %2020 = vmatpush1.xpose.msra.mxu0 %v1982
  %2021 = vmatprep.subr.mxu0 0.0
  %2022 = vmatpush1.xpose.msra.mxu0 %v1979
  %2023 = vmatprep.subr.mxu0 0.0
  %2024 = vmatpush1.xpose.msra.mxu0 %v1976
  %2025 = vmatprep.subr.mxu0 0.0
  %2026 = vmatpush2.xpose.msra.mxu0 0.0
  %2027 = vmatprep.subr.mxu0 0.0
  %2028 = vmatpush2.xpose.msra.mxu0 0.0
  %2029 = vmatprep.subr.mxu0 0.0
  %2030 = vmatpush2.xpose.msra.mxu0 0.0
  %2031 = vmatprep.subr.mxu0 0.0
  %2032 = vmatpush2.xpose.msra.mxu0 0.0
  %2033 = vmatprep.subr.mxu0 0.0
  %2034 = vmatpush2.xpose.msra.mxu0 0.0
  %2035 = vmatprep.subr.mxu0 0.0
  %2036 = vmatpush2.xpose.msra.mxu0 0.0
  %2037 = vmatprep.subr.mxu0 0.0
  %2038 = vmatpush2.xpose.msra.mxu0 0.0
  %2039 = vmatprep.subr.mxu0 0.0
  %2040 = vmatpush2.xpose.msra.mxu0 0.0
  %2041 = vmatprep.subr.mxu0 0.0
  %2042 = vmatpush2.xpose.msra.mxu0 0.0
  %2043 = vmatprep.subr.mxu0 0.0
  %2044 = vmatpush2.xpose.msra.mxu0 0.0
  %2045 = vmatprep.subr.mxu0 0.0
  %2046 = vmatpush2.xpose.msra.mxu0 0.0
  %2047 = vmatprep.subr.mxu0 0.0
  %2048 = vmatpush2.xpose.msra.mxu0 0.0
  %2049 = vmatprep.subr.mxu0 0.0
  %2050 = vmatpush2.xpose.msra.mxu0 0.0
  %2051 = vmatprep.subr.mxu0 0.0
  %2052 = vmatpush2.xpose.msra.mxu0 0.0
  %2053 = vmatprep.subr.mxu0 0.0
  %2054 = vmatpush2.xpose.msra.mxu0 0.0
  %2055 = vmatprep.subr.mxu0 0.0
  %2056 = vmatpush2.xpose.msra.mxu0 0.0
  %2057 = vmatprep.mubr.f32.mxu0 0.0
  %2058 = vmatmul.mubr.f32.gmra.mxu0 %v1904
  %v2059 = vpop.f32.mrf.mxu0
  %v2060 = vadd.f32 %v1879, %v2059
  %v2061 = vpop.f32.mrf.mxu0
  %2062 = vmatprep.mubr.f32.mxu0 0.0
  %2063 = vmatmul.mubr.f32.gmra.mxu0 %v1907
  %v2064 = vpop.f32.mrf.mxu0
  %v2065 = vadd.f32 %v1880, %v2064
  %v2066 = vpop.f32.mrf.mxu0
  %2067 = vmatprep.mubr.f32.mxu0 0.0
  %2068 = vmatmul.mubr.f32.gmra.mxu0 %v1910
  %v2069 = vpop.f32.mrf.mxu0
  %v2070 = vadd.f32 %v1881, %v2069
  %v2071 = vpop.f32.mrf.mxu0
  %2072 = vmatprep.mubr.f32.mxu0 0.0
  %2073 = vmatmul.mubr.f32.gmra.mxu0 %v1913
  %v2074 = vpop.f32.mrf.mxu0
  %v2075 = vadd.f32 %v1882, %v2074
  %v2076 = vpop.f32.mrf.mxu0
  %2077 = vmatprep.mubr.f32.mxu0 0.0
  %2078 = vmatmul.mubr.f32.gmra.mxu0 %v1916
  %v2079 = vpop.f32.mrf.mxu0
  %v2080 = vadd.f32 %v1883, %v2079
  %v2081 = vpop.f32.mrf.mxu0
  %2082 = vmatprep.mubr.f32.mxu0 0.0
  %2083 = vmatmul.mubr.f32.gmra.mxu0 %v1919
  %v2084 = vpop.f32.mrf.mxu0
  %v2085 = vadd.f32 %v1884, %v2084
  %v2086 = vpop.f32.mrf.mxu0
  %2087 = vmatprep.mubr.f32.mxu0 0.0
  %2088 = vmatmul.mubr.f32.gmra.mxu0 %v1922
  %v2089 = vpop.f32.mrf.mxu0
  %v2090 = vadd.f32 %v1885, %v2089
  %v2091 = vpop.f32.mrf.mxu0
  %2092 = vmatprep.mubr.f32.mxu0 0.0
  %2093 = vmatmul.mubr.f32.gmra.mxu0 %v1925
  %v2094 = vpop.f32.mrf.mxu0
  %v2095 = vadd.f32 %v1886, %v2094
  %v2096 = vpop.f32.mrf.mxu0
  %2097 = vmatprep.mubr.f32.mxu0 0.0
  %2098 = vmatmul.mubr.f32.gmra.mxu0 %v1928
  %v2099 = vpop.f32.mrf.mxu0
  %v2100 = vadd.f32 %v1887, %v2099
  %v2101 = vpop.f32.mrf.mxu0
  %2102 = vmatprep.mubr.f32.mxu0 0.0
  %2103 = vmatmul.mubr.f32.gmra.mxu0 %v1931
  %v2104 = vpop.f32.mrf.mxu0
  %v2105 = vadd.f32 %v1888, %v2104
  %v2106 = vpop.f32.mrf.mxu0
  %2107 = vmatprep.mubr.f32.mxu0 0.0
  %2108 = vmatmul.mubr.f32.gmra.mxu0 %v1934
  %v2109 = vpop.f32.mrf.mxu0
  %v2110 = vadd.f32 %v1889, %v2109
  %v2111 = vpop.f32.mrf.mxu0
  %2112 = vmatprep.mubr.f32.mxu0 0.0
  %2113 = vmatmul.mubr.f32.gmra.mxu0 %v1937
  %v2114 = vpop.f32.mrf.mxu0
  %v2115 = vadd.f32 %v1890, %v2114
  %v2116 = vpop.f32.mrf.mxu0
  %2117 = vmatprep.mubr.f32.mxu0 0.0
  %2118 = vmatmul.mubr.f32.gmra.mxu0 %v1940
  %v2119 = vpop.f32.mrf.mxu0
  %v2120 = vadd.f32 %v1891, %v2119
  %v2121 = vpop.f32.mrf.mxu0
  %2122 = vmatprep.mubr.f32.mxu0 0.0
  %2123 = vmatmul.mubr.f32.gmra.mxu0 %v1943
  %v2124 = vpop.f32.mrf.mxu0
  %v2125 = vadd.f32 %v1892, %v2124
  %v2126 = vpop.f32.mrf.mxu0
  %2127 = vmatprep.mubr.f32.mxu0 0.0
  %2128 = vmatmul.mubr.f32.gmra.mxu0 %v1946
  %v2129 = vpop.f32.mrf.mxu0
  %v2130 = vadd.f32 %v1893, %v2129
  %v2131 = vpop.f32.mrf.mxu0
  %2132 = vmatprep.mubr.f32.mxu0 0.0
  %2133 = vmatmul.mubr.f32.gmra.mxu0 %v1949
  %v2134 = vpop.f32.mrf.mxu0
  %v2135 = vadd.f32 %v1894, %v2134
  %v2136 = vpop.f32.mrf.mxu0
  %2137 = vmatprep.mubr.f32.mxu0 0.0
  %2138 = vmatmul.mubr.f32.gmra.mxu0 %v1952
  %v2139 = vpop.f32.mrf.mxu0
  %v2140 = vadd.f32 %v1895, %v2139
  %v2141 = vpop.f32.mrf.mxu0
  %2142 = vmatprep.mubr.f32.mxu0 0.0
  %2143 = vmatmul.mubr.f32.gmra.mxu0 %v1955
  %v2144 = vpop.f32.mrf.mxu0
  %v2145 = vadd.f32 %v1896, %v2144
  %v2146 = vpop.f32.mrf.mxu0
  %2147 = vmatprep.mubr.f32.mxu0 0.0
  %2148 = vmatmul.mubr.f32.gmra.mxu0 %v1958
  %v2149 = vpop.f32.mrf.mxu0
  %v2150 = vadd.f32 %v1897, %v2149
  %v2151 = vpop.f32.mrf.mxu0
  %2152 = vmatprep.mubr.f32.mxu0 0.0
  %2153 = vmatmul.mubr.f32.gmra.mxu0 %v1961
  %v2154 = vpop.f32.mrf.mxu0
  %v2155 = vadd.f32 %v1898, %v2154
  %v2156 = vpop.f32.mrf.mxu0
  %2157 = vmatprep.mubr.f32.mxu0 0.0
  %2158 = vmatmul.mubr.f32.gmra.mxu0 %v1964
  %v2159 = vpop.f32.mrf.mxu0
  %v2160 = vadd.f32 %v1899, %v2159
  %v2161 = vpop.f32.mrf.mxu0
  %2162 = vmatprep.mubr.f32.mxu0 0.0
  %2163 = vmatmul.mubr.f32.gmra.mxu0 %v1967
  %v2164 = vpop.f32.mrf.mxu0
  %v2165 = vadd.f32 %v1900, %v2164
  %v2166 = vpop.f32.mrf.mxu0
  %2167 = vmatprep.mubr.f32.mxu0 0.0
  %2168 = vmatmul.mubr.f32.gmra.mxu0 %v1970
  %v2169 = vpop.f32.mrf.mxu0
  %v2170 = vadd.f32 %v1901, %v2169
  %v2171 = vpop.f32.mrf.mxu0
  %2172 = vmatprep.mubr.f32.mxu0 0.0
  %2173 = vmatmul.mubr.f32.gmra.mxu0 %v1973
  %v2174 = vpop.f32.mrf.mxu0
  %v2175 = vadd.f32 %v1902, %v2174
  %v2176 = vpop.f32.mrf.mxu0
  %2177 = vdwg.mxu0
  %v2178 = vsel %vm709, %v2060, -inf
  %2179 = vmax.xlane.f32.xlu0 %v2178
  %v2180 = vpop.xlane.xlu0 %2179
  %v2181 = vsel %vm709, %v2065, -inf
  %2182 = vmax.xlane.f32.xlu0 %v2181
  %v2183 = vpop.xlane.xlu0 %2182
  %v2184 = vsel %vm709, %v2070, -inf
  %2185 = vmax.xlane.f32.xlu0 %v2184
  %v2186 = vpop.xlane.xlu0 %2185
  %v2187 = vsel %vm709, %v2075, -inf
  %2188 = vmax.xlane.f32.xlu0 %v2187
  %v2189 = vpop.xlane.xlu0 %2188
  %v2190 = vsel %vm709, %v2080, -inf
  %2191 = vmax.xlane.f32.xlu0 %v2190
  %v2192 = vpop.xlane.xlu0 %2191
  %v2193 = vsel %vm709, %v2085, -inf
  %2194 = vmax.xlane.f32.xlu0 %v2193
  %v2195 = vpop.xlane.xlu0 %2194
  %v2196 = vsel %vm709, %v2090, -inf
  %2197 = vmax.xlane.f32.xlu0 %v2196
  %v2198 = vpop.xlane.xlu0 %2197
  %v2199 = vsel %vm709, %v2095, -inf
  %2200 = vmax.xlane.f32.xlu0 %v2199
  %v2201 = vpop.xlane.xlu0 %2200
  %v2202 = vsel %vm709, %v2100, -inf
  %2203 = vmax.xlane.f32.xlu0 %v2202
  %v2204 = vpop.xlane.xlu0 %2203
  %v2205 = vsel %vm709, %v2105, -inf
  %2206 = vmax.xlane.f32.xlu0 %v2205
  %v2207 = vpop.xlane.xlu0 %2206
  %v2208 = vsel %vm709, %v2110, -inf
  %2209 = vmax.xlane.f32.xlu0 %v2208
  %v2210 = vpop.xlane.xlu0 %2209
  %v2211 = vsel %vm709, %v2115, -inf
  %2212 = vmax.xlane.f32.xlu0 %v2211
  %v2213 = vpop.xlane.xlu0 %2212
  %v2214 = vsel %vm709, %v2120, -inf
  %2215 = vmax.xlane.f32.xlu0 %v2214
  %v2216 = vpop.xlane.xlu0 %2215
  %v2217 = vsel %vm709, %v2125, -inf
  %2218 = vmax.xlane.f32.xlu0 %v2217
  %v2219 = vpop.xlane.xlu0 %2218
  %v2220 = vsel %vm709, %v2130, -inf
  %2221 = vmax.xlane.f32.xlu0 %v2220
  %v2222 = vpop.xlane.xlu0 %2221
  %v2223 = vsel %vm709, %v2135, -inf
  %2224 = vmax.xlane.f32.xlu0 %v2223
  %v2225 = vpop.xlane.xlu0 %2224
  %v2226 = vsel %vm709, %v2140, -inf
  %2227 = vmax.xlane.f32.xlu0 %v2226
  %v2228 = vpop.xlane.xlu0 %2227
  %v2229 = vsel %vm709, %v2145, -inf
  %2230 = vmax.xlane.f32.xlu0 %v2229
  %v2231 = vpop.xlane.xlu0 %2230
  %v2232 = vsel %vm709, %v2150, -inf
  %2233 = vmax.xlane.f32.xlu0 %v2232
  %v2234 = vpop.xlane.xlu0 %2233
  %v2235 = vsel %vm709, %v2155, -inf
  %2236 = vmax.xlane.f32.xlu0 %v2235
  %v2237 = vpop.xlane.xlu0 %2236
  %v2238 = vsel %vm709, %v2160, -inf
  %2239 = vmax.xlane.f32.xlu0 %v2238
  %v2240 = vpop.xlane.xlu0 %2239
  %v2241 = vsel %vm709, %v2165, -inf
  %2242 = vmax.xlane.f32.xlu0 %v2241
  %v2243 = vpop.xlane.xlu0 %2242
  %v2244 = vsel %vm709, %v2170, -inf
  %2245 = vmax.xlane.f32.xlu0 %v2244
  %v2246 = vpop.xlane.xlu0 %2245
  %v2247 = vsel %vm709, %v2175, -inf
  %2248 = vmax.xlane.f32.xlu0 %v2247
  %v2249 = vpop.xlane.xlu0 %2248
  %v2250 = vsub.f32 %v2060, %v2180
  %v2251 = vsub.f32 %v2065, %v2183
  %v2252 = vsub.f32 %v2070, %v2186
  %v2253 = vsub.f32 %v2075, %v2189
  %v2254 = vsub.f32 %v2080, %v2192
  %v2255 = vsub.f32 %v2085, %v2195
  %v2256 = vsub.f32 %v2090, %v2198
  %v2257 = vsub.f32 %v2095, %v2201
  %v2258 = vsub.f32 %v2100, %v2204
  %v2259 = vsub.f32 %v2105, %v2207
  %v2260 = vsub.f32 %v2110, %v2210
  %v2261 = vsub.f32 %v2115, %v2213
  %v2262 = vsub.f32 %v2120, %v2216
  %v2263 = vsub.f32 %v2125, %v2219
  %v2264 = vsub.f32 %v2130, %v2222
  %v2265 = vsub.f32 %v2135, %v2225
  %v2266 = vsub.f32 %v2140, %v2228
  %v2267 = vsub.f32 %v2145, %v2231
  %v2268 = vsub.f32 %v2150, %v2234
  %v2269 = vsub.f32 %v2155, %v2237
  %v2270 = vsub.f32 %v2160, %v2240
  %v2271 = vsub.f32 %v2165, %v2243
  %v2272 = vsub.f32 %v2170, %v2246
  %v2273 = vsub.f32 %v2175, %v2249
  %v2274 = vmul.f32 %v2250, 1.442695
  %v2275 = vpow.pop %v2274
  %v2276 = vmul.f32 %v2251, 1.442695
  %v2277 = vpow.pop %v2276
  %v2278 = vmul.f32 %v2252, 1.442695
  %v2279 = vpow.pop %v2278
  %v2280 = vmul.f32 %v2253, 1.442695
  %v2281 = vpow.pop %v2280
  %v2282 = vmul.f32 %v2254, 1.442695
  %v2283 = vpow.pop %v2282
  %v2284 = vmul.f32 %v2255, 1.442695
  %v2285 = vpow.pop %v2284
  %v2286 = vmul.f32 %v2256, 1.442695
  %v2287 = vpow.pop %v2286
  %v2288 = vmul.f32 %v2257, 1.442695
  %v2289 = vpow.pop %v2288
  %v2290 = vmul.f32 %v2258, 1.442695
  %v2291 = vpow.pop %v2290
  %v2292 = vmul.f32 %v2259, 1.442695
  %v2293 = vpow.pop %v2292
  %v2294 = vmul.f32 %v2260, 1.442695
  %v2295 = vpow.pop %v2294
  %v2296 = vmul.f32 %v2261, 1.442695
  %v2297 = vpow.pop %v2296
  %v2298 = vmul.f32 %v2262, 1.442695
  %v2299 = vpow.pop %v2298
  %v2300 = vmul.f32 %v2263, 1.442695
  %v2301 = vpow.pop %v2300
  %v2302 = vmul.f32 %v2264, 1.442695
  %v2303 = vpow.pop %v2302
  %v2304 = vmul.f32 %v2265, 1.442695
  %v2305 = vpow.pop %v2304
  %v2306 = vmul.f32 %v2266, 1.442695
  %v2307 = vpow.pop %v2306
  %v2308 = vmul.f32 %v2267, 1.442695
  %v2309 = vpow.pop %v2308
  %v2310 = vmul.f32 %v2268, 1.442695
  %v2311 = vpow.pop %v2310
  %v2312 = vmul.f32 %v2269, 1.442695
  %v2313 = vpow.pop %v2312
  %v2314 = vmul.f32 %v2270, 1.442695
  %v2315 = vpow.pop %v2314
  %v2316 = vmul.f32 %v2271, 1.442695
  %v2317 = vpow.pop %v2316
  %v2318 = vmul.f32 %v2272, 1.442695
  %v2319 = vpow.pop %v2318
  %v2320 = vmul.f32 %v2273, 1.442695
  %v2321 = vpow.pop %v2320
  %v2322 = vsel %vm709, %v2275, 0.0
  %2323 = vadd.xlane.f32.xlu0 %v2322
  %v2324 = vpop.xlane.xlu0 %2323
  %v2325 = vsel %vm709, %v2277, 0.0
  %2326 = vadd.xlane.f32.xlu0 %v2325
  %v2327 = vpop.xlane.xlu0 %2326
  %v2328 = vsel %vm709, %v2279, 0.0
  %2329 = vadd.xlane.f32.xlu0 %v2328
  %v2330 = vpop.xlane.xlu0 %2329
  %v2331 = vsel %vm709, %v2281, 0.0
  %2332 = vadd.xlane.f32.xlu0 %v2331
  %v2333 = vpop.xlane.xlu0 %2332
  %v2334 = vsel %vm709, %v2283, 0.0
  %2335 = vadd.xlane.f32.xlu0 %v2334
  %v2336 = vpop.xlane.xlu0 %2335
  %v2337 = vsel %vm709, %v2285, 0.0
  %2338 = vadd.xlane.f32.xlu0 %v2337
  %v2339 = vpop.xlane.xlu0 %2338
  %v2340 = vsel %vm709, %v2287, 0.0
  %2341 = vadd.xlane.f32.xlu0 %v2340
  %v2342 = vpop.xlane.xlu0 %2341
  %v2343 = vsel %vm709, %v2289, 0.0
  %2344 = vadd.xlane.f32.xlu0 %v2343
  %v2345 = vpop.xlane.xlu0 %2344
  %v2346 = vsel %vm709, %v2291, 0.0
  %2347 = vadd.xlane.f32.xlu0 %v2346
  %v2348 = vpop.xlane.xlu0 %2347
  %v2349 = vsel %vm709, %v2293, 0.0
  %2350 = vadd.xlane.f32.xlu0 %v2349
  %v2351 = vpop.xlane.xlu0 %2350
  %v2352 = vsel %vm709, %v2295, 0.0
  %2353 = vadd.xlane.f32.xlu0 %v2352
  %v2354 = vpop.xlane.xlu0 %2353
  %v2355 = vsel %vm709, %v2297, 0.0
  %2356 = vadd.xlane.f32.xlu0 %v2355
  %v2357 = vpop.xlane.xlu0 %2356
  %v2358 = vsel %vm709, %v2299, 0.0
  %2359 = vadd.xlane.f32.xlu0 %v2358
  %v2360 = vpop.xlane.xlu0 %2359
  %v2361 = vsel %vm709, %v2301, 0.0
  %2362 = vadd.xlane.f32.xlu0 %v2361
  %v2363 = vpop.xlane.xlu0 %2362
  %v2364 = vsel %vm709, %v2303, 0.0
  %2365 = vadd.xlane.f32.xlu0 %v2364
  %v2366 = vpop.xlane.xlu0 %2365
  %v2367 = vsel %vm709, %v2305, 0.0
  %2368 = vadd.xlane.f32.xlu0 %v2367
  %v2369 = vpop.xlane.xlu0 %2368
  %v2370 = vsel %vm709, %v2307, 0.0
  %2371 = vadd.xlane.f32.xlu0 %v2370
  %v2372 = vpop.xlane.xlu0 %2371
  %v2373 = vsel %vm709, %v2309, 0.0
  %2374 = vadd.xlane.f32.xlu0 %v2373
  %v2375 = vpop.xlane.xlu0 %2374
  %v2376 = vsel %vm709, %v2311, 0.0
  %2377 = vadd.xlane.f32.xlu0 %v2376
  %v2378 = vpop.xlane.xlu0 %2377
  %v2379 = vsel %vm709, %v2313, 0.0
  %2380 = vadd.xlane.f32.xlu0 %v2379
  %v2381 = vpop.xlane.xlu0 %2380
  %v2382 = vsel %vm709, %v2315, 0.0
  %2383 = vadd.xlane.f32.xlu0 %v2382
  %v2384 = vpop.xlane.xlu0 %2383
  %v2385 = vsel %vm709, %v2317, 0.0
  %2386 = vadd.xlane.f32.xlu0 %v2385
  %v2387 = vpop.xlane.xlu0 %2386
  %v2388 = vsel %vm709, %v2319, 0.0
  %2389 = vadd.xlane.f32.xlu0 %v2388
  %v2390 = vpop.xlane.xlu0 %2389
  %v2391 = vsel %vm709, %v2321, 0.0
  %2392 = vadd.xlane.f32.xlu0 %v2391
  %v2393 = vpop.xlane.xlu0 %2392
  %v2394 = vrcp.pop %v2324
  %v2395 = vrcp.pop %v2327
  %v2396 = vrcp.pop %v2330
  %v2397 = vrcp.pop %v2333
  %v2398 = vrcp.pop %v2336
  %v2399 = vrcp.pop %v2339
  %v2400 = vrcp.pop %v2342
  %v2401 = vrcp.pop %v2345
  %v2402 = vrcp.pop %v2348
  %v2403 = vrcp.pop %v2351
  %v2404 = vrcp.pop %v2354
  %v2405 = vrcp.pop %v2357
  %v2406 = vrcp.pop %v2360
  %v2407 = vrcp.pop %v2363
  %v2408 = vrcp.pop %v2366
  %v2409 = vrcp.pop %v2369
  %v2410 = vrcp.pop %v2372
  %v2411 = vrcp.pop %v2375
  %v2412 = vrcp.pop %v2378
  %v2413 = vrcp.pop %v2381
  %v2414 = vrcp.pop %v2384
  %v2415 = vrcp.pop %v2387
  %v2416 = vrcp.pop %v2390
  %v2417 = vrcp.pop %v2393
  %v2418 = vmul.f32 %v2275, %v2394
  %v2419 = vmul.f32 %v2277, %v2395
  %v2420 = vmul.f32 %v2279, %v2396
  %v2421 = vmul.f32 %v2281, %v2397
  %v2422 = vmul.f32 %v2283, %v2398
  %v2423 = vmul.f32 %v2285, %v2399
  %v2424 = vmul.f32 %v2287, %v2400
  %v2425 = vmul.f32 %v2289, %v2401
  %v2426 = vmul.f32 %v2291, %v2402
  %v2427 = vmul.f32 %v2293, %v2403
  %v2428 = vmul.f32 %v2295, %v2404
  %v2429 = vmul.f32 %v2297, %v2405
  %v2430 = vmul.f32 %v2299, %v2406
  %v2431 = vmul.f32 %v2301, %v2407
  %v2432 = vmul.f32 %v2303, %v2408
  %v2433 = vmul.f32 %v2305, %v2409
  %v2434 = vmul.f32 %v2307, %v2410
  %v2435 = vmul.f32 %v2309, %v2411
  %v2436 = vmul.f32 %v2311, %v2412
  %v2437 = vmul.f32 %v2313, %v2413
  %v2438 = vmul.f32 %v2315, %v2414
  %v2439 = vmul.f32 %v2317, %v2415
  %v2440 = vmul.f32 %v2319, %v2416
  %v2441 = vmul.f32 %v2321, %v2417
  %v2443 = vsel %vm709, %v2418, 0
  %v2446 = vsel %vm709, %v2419, 0
  %v2449 = vsel %vm709, %v2420, 0
  %v2452 = vsel %vm709, %v2421, 0
  %v2455 = vsel %vm709, %v2422, 0
  %v2458 = vsel %vm709, %v2423, 0
  %v2461 = vsel %vm709, %v2424, 0
  %v2464 = vsel %vm709, %v2425, 0
  %v2467 = vsel %vm709, %v2426, 0
  %v2470 = vsel %vm709, %v2427, 0
  %v2473 = vsel %vm709, %v2428, 0
  %v2476 = vsel %vm709, %v2429, 0
  %v2479 = vsel %vm709, %v2430, 0
  %v2482 = vsel %vm709, %v2431, 0
  %v2485 = vsel %vm709, %v2432, 0
  %v2488 = vsel %vm709, %v2433, 0
  %v2491 = vsel %vm709, %v2434, 0
  %v2494 = vsel %vm709, %v2435, 0
  %v2497 = vsel %vm709, %v2436, 0
  %v2500 = vsel %vm709, %v2437, 0
  %v2503 = vsel %vm709, %v2438, 0
  %v2506 = vsel %vm709, %v2439, 0
  %v2509 = vsel %vm709, %v2440, 0
  %v2512 = vsel %vm709, %v2441, 0
  %2514 = vmatprep.subr.mxu0 0.0
  %2515 = vmatpush1.msra.mxu0 0.0
  %2516 = vmatprep.subr.mxu0 0.0
  %2517 = vmatpush1.msra.mxu0 0.0
  %2518 = vmatprep.subr.mxu0 0.0
  %2519 = vmatpush1.msra.mxu0 0.0
  %2520 = vmatprep.subr.mxu0 0.0
  %2521 = vmatpush1.msra.mxu0 0.0
  %2522 = vmatprep.subr.mxu0 0.0
  %2523 = vmatpush1.msra.mxu0 0.0
  %2524 = vmatprep.subr.mxu0 0.0
  %2525 = vmatpush1.msra.mxu0 0.0
  %2526 = vmatprep.subr.mxu0 0.0
  %2527 = vmatpush1.msra.mxu0 0.0
  %2528 = vmatprep.subr.mxu0 0.0
  %2529 = vmatpush1.msra.mxu0 0.0
  %2530 = vmatprep.subr.mxu0 0.0
  %2531 = vmatpush1.msra.mxu0 0.0
  %2532 = vmatprep.subr.mxu0 0.0
  %2533 = vmatpush1.msra.mxu0 0.0
  %2534 = vmatprep.subr.mxu0 0.0
  %2535 = vmatpush1.msra.mxu0 %v1851
  %2536 = vmatprep.subr.mxu0 0.0
  %2537 = vmatpush1.msra.mxu0 %v1846
  %2538 = vmatprep.subr.mxu0 0.0
  %2539 = vmatpush1.msra.mxu0 %v1841
  %2540 = vmatprep.subr.mxu0 0.0
  %2541 = vmatpush1.msra.mxu0 %v1836
  %2542 = vmatprep.subr.mxu0 0.0
  %2543 = vmatpush1.msra.mxu0 %v1831
  %2544 = vmatprep.subr.mxu0 0.0
  %2545 = vmatpush1.msra.mxu0 %v1826
  %2546 = vmatprep.subr.mxu0 0.0
  %2547 = vmatpush2.msra.mxu0 0.0
  %2548 = vmatprep.subr.mxu0 0.0
  %2549 = vmatpush2.msra.mxu0 0.0
  %2550 = vmatprep.subr.mxu0 0.0
  %2551 = vmatpush2.msra.mxu0 0.0
  %2552 = vmatprep.subr.mxu0 0.0
  %2553 = vmatpush2.msra.mxu0 0.0
  %2554 = vmatprep.subr.mxu0 0.0
  %2555 = vmatpush2.msra.mxu0 0.0
  %2556 = vmatprep.subr.mxu0 0.0
  %2557 = vmatpush2.msra.mxu0 0.0
  %2558 = vmatprep.subr.mxu0 0.0
  %2559 = vmatpush2.msra.mxu0 0.0
  %2560 = vmatprep.subr.mxu0 0.0
  %2561 = vmatpush2.msra.mxu0 0.0
  %2562 = vmatprep.subr.mxu0 0.0
  %2563 = vmatpush2.msra.mxu0 0.0
  %2564 = vmatprep.subr.mxu0 0.0
  %2565 = vmatpush2.msra.mxu0 0.0
  %2566 = vmatprep.subr.mxu0 0.0
  %2567 = vmatpush2.msra.mxu0 0.0
  %2568 = vmatprep.subr.mxu0 0.0
  %2569 = vmatpush2.msra.mxu0 0.0
  %2570 = vmatprep.subr.mxu0 0.0
  %2571 = vmatpush2.msra.mxu0 0.0
  %2572 = vmatprep.subr.mxu0 0.0
  %2573 = vmatpush2.msra.mxu0 0.0
  %2574 = vmatprep.subr.mxu0 0.0
  %2575 = vmatpush2.msra.mxu0 0.0
  %2576 = vmatprep.subr.mxu0 0.0
  %2577 = vmatpush2.msra.mxu0 0.0
  %2578 = vmatprep.mubr.f32.mxu0 0.0
  %2579 = vmatmul.mubr.f32.gmra.mxu0 %v2443
  %v2580 = vpop.f32.mrf.mxu0
  %v2581 = vadd.f32 0.0, %v2580
  %v2582 = vpop.f32.mrf.mxu0
  %2583 = vmatprep.mubr.f32.mxu0 0.0
  %2584 = vmatmul.mubr.f32.gmra.mxu0 %v2446
  %v2585 = vpop.f32.mrf.mxu0
  %v2586 = vadd.f32 0.0, %v2585
  %v2587 = vpop.f32.mrf.mxu0
  %2588 = vmatprep.mubr.f32.mxu0 0.0
  %2589 = vmatmul.mubr.f32.gmra.mxu0 %v2449
  %v2590 = vpop.f32.mrf.mxu0
  %v2591 = vadd.f32 0.0, %v2590
  %v2592 = vpop.f32.mrf.mxu0
  %2593 = vmatprep.mubr.f32.mxu0 0.0
  %2594 = vmatmul.mubr.f32.gmra.mxu0 %v2452
  %v2595 = vpop.f32.mrf.mxu0
  %v2596 = vadd.f32 0.0, %v2595
  %v2597 = vpop.f32.mrf.mxu0
  %2598 = vmatprep.mubr.f32.mxu0 0.0
  %2599 = vmatmul.mubr.f32.gmra.mxu0 %v2455
  %v2600 = vpop.f32.mrf.mxu0
  %v2601 = vadd.f32 0.0, %v2600
  %v2602 = vpop.f32.mrf.mxu0
  %2603 = vmatprep.mubr.f32.mxu0 0.0
  %2604 = vmatmul.mubr.f32.gmra.mxu0 %v2458
  %v2605 = vpop.f32.mrf.mxu0
  %v2606 = vadd.f32 0.0, %v2605
  %v2607 = vpop.f32.mrf.mxu0
  %2608 = vmatprep.mubr.f32.mxu0 0.0
  %2609 = vmatmul.mubr.f32.gmra.mxu0 %v2461
  %v2610 = vpop.f32.mrf.mxu0
  %v2611 = vadd.f32 0.0, %v2610
  %v2612 = vpop.f32.mrf.mxu0
  %2613 = vmatprep.mubr.f32.mxu0 0.0
  %2614 = vmatmul.mubr.f32.gmra.mxu0 %v2464
  %v2615 = vpop.f32.mrf.mxu0
  %v2616 = vadd.f32 0.0, %v2615
  %v2617 = vpop.f32.mrf.mxu0
  %2618 = vmatprep.mubr.f32.mxu0 0.0
  %2619 = vmatmul.mubr.f32.gmra.mxu0 %v2467
  %v2620 = vpop.f32.mrf.mxu0
  %v2621 = vadd.f32 0.0, %v2620
  %v2622 = vpop.f32.mrf.mxu0
  %2623 = vmatprep.mubr.f32.mxu0 0.0
  %2624 = vmatmul.mubr.f32.gmra.mxu0 %v2470
  %v2625 = vpop.f32.mrf.mxu0
  %v2626 = vadd.f32 0.0, %v2625
  %v2627 = vpop.f32.mrf.mxu0
  %2628 = vmatprep.mubr.f32.mxu0 0.0
  %2629 = vmatmul.mubr.f32.gmra.mxu0 %v2473
  %v2630 = vpop.f32.mrf.mxu0
  %v2631 = vadd.f32 0.0, %v2630
  %v2632 = vpop.f32.mrf.mxu0
  %2633 = vmatprep.mubr.f32.mxu0 0.0
  %2634 = vmatmul.mubr.f32.gmra.mxu0 %v2476
  %v2635 = vpop.f32.mrf.mxu0
  %v2636 = vadd.f32 0.0, %v2635
  %v2637 = vpop.f32.mrf.mxu0
  %2638 = vmatprep.mubr.f32.mxu0 0.0
  %2639 = vmatmul.mubr.f32.gmra.mxu0 %v2479
  %v2640 = vpop.f32.mrf.mxu0
  %v2641 = vadd.f32 0.0, %v2640
  %v2642 = vpop.f32.mrf.mxu0
  %2643 = vmatprep.mubr.f32.mxu0 0.0
  %2644 = vmatmul.mubr.f32.gmra.mxu0 %v2482
  %v2645 = vpop.f32.mrf.mxu0
  %v2646 = vadd.f32 0.0, %v2645
  %v2647 = vpop.f32.mrf.mxu0
  %2648 = vmatprep.mubr.f32.mxu0 0.0
  %2649 = vmatmul.mubr.f32.gmra.mxu0 %v2485
  %v2650 = vpop.f32.mrf.mxu0
  %v2651 = vadd.f32 0.0, %v2650
  %v2652 = vpop.f32.mrf.mxu0
  %2653 = vmatprep.mubr.f32.mxu0 0.0
  %2654 = vmatmul.mubr.f32.gmra.mxu0 %v2488
  %v2655 = vpop.f32.mrf.mxu0
  %v2656 = vadd.f32 0.0, %v2655
  %v2657 = vpop.f32.mrf.mxu0
  %2658 = vmatprep.mubr.f32.mxu0 0.0
  %2659 = vmatmul.mubr.f32.gmra.mxu0 %v2491
  %v2660 = vpop.f32.mrf.mxu0
  %v2661 = vadd.f32 0.0, %v2660
  %v2662 = vpop.f32.mrf.mxu0
  %2663 = vmatprep.mubr.f32.mxu0 0.0
  %2664 = vmatmul.mubr.f32.gmra.mxu0 %v2494
  %v2665 = vpop.f32.mrf.mxu0
  %v2666 = vadd.f32 0.0, %v2665
  %v2667 = vpop.f32.mrf.mxu0
  %2668 = vmatprep.mubr.f32.mxu0 0.0
  %2669 = vmatmul.mubr.f32.gmra.mxu0 %v2497
  %v2670 = vpop.f32.mrf.mxu0
  %v2671 = vadd.f32 0.0, %v2670
  %v2672 = vpop.f32.mrf.mxu0
  %2673 = vmatprep.mubr.f32.mxu0 0.0
  %2674 = vmatmul.mubr.f32.gmra.mxu0 %v2500
  %v2675 = vpop.f32.mrf.mxu0
  %v2676 = vadd.f32 0.0, %v2675
  %v2677 = vpop.f32.mrf.mxu0
  %2678 = vmatprep.mubr.f32.mxu0 0.0
  %2679 = vmatmul.mubr.f32.gmra.mxu0 %v2503
  %v2680 = vpop.f32.mrf.mxu0
  %v2681 = vadd.f32 0.0, %v2680
  %v2682 = vpop.f32.mrf.mxu0
  %2683 = vmatprep.mubr.f32.mxu0 0.0
  %2684 = vmatmul.mubr.f32.gmra.mxu0 %v2506
  %v2685 = vpop.f32.mrf.mxu0
  %v2686 = vadd.f32 0.0, %v2685
  %v2687 = vpop.f32.mrf.mxu0
  %2688 = vmatprep.mubr.f32.mxu0 0.0
  %2689 = vmatmul.mubr.f32.gmra.mxu0 %v2509
  %v2690 = vpop.f32.mrf.mxu0
  %v2691 = vadd.f32 0.0, %v2690
  %v2692 = vpop.f32.mrf.mxu0
  %2693 = vmatprep.mubr.f32.mxu0 0.0
  %2694 = vmatmul.mubr.f32.gmra.mxu0 %v2512
  %v2695 = vpop.f32.mrf.mxu0
  %v2696 = vadd.f32 0.0, %v2695
  %v2697 = vpop.f32.mrf.mxu0
  %2698 = vdwg.mxu0
  %v2699 = vmul.f32 %v2581, %v29
  %v2700 = vmul.f32 %v2586, %v29
  %v2701 = vmul.f32 %v2591, %v29
  %v2702 = vmul.f32 %v2596, %v29
  %v2703 = vmul.f32 %v2601, %v29
  %v2704 = vmul.f32 %v2606, %v29
  %v2705 = vmul.f32 %v2611, %v34
  %v2706 = vmul.f32 %v2616, %v34
  %v2707 = vmul.f32 %v2621, %v34
  %v2708 = vmul.f32 %v2626, %v34
  %v2709 = vmul.f32 %v2631, %v34
  %v2710 = vmul.f32 %v2636, %v34
  %v2711 = vadd.f32 %v2699, %v2705
  %v2712 = vadd.f32 %v2700, %v2706
  %v2713 = vadd.f32 %v2701, %v2707
  %v2714 = vadd.f32 %v2702, %v2708
  %v2715 = vadd.f32 %v2703, %v2709
  %v2716 = vadd.f32 %v2704, %v2710
  %v2717 = vmul.f32 %v2641, %v39
  %v2718 = vmul.f32 %v2646, %v39
  %v2719 = vmul.f32 %v2651, %v39
  %v2720 = vmul.f32 %v2656, %v39
  %v2721 = vmul.f32 %v2661, %v39
  %v2722 = vmul.f32 %v2666, %v39
  %v2723 = vadd.f32 %v2711, %v2717
  %v2724 = vadd.f32 %v2712, %v2718
  %v2725 = vadd.f32 %v2713, %v2719
  %v2726 = vadd.f32 %v2714, %v2720
  %v2727 = vadd.f32 %v2715, %v2721
  %v2728 = vadd.f32 %v2716, %v2722
  %v2729 = vmul.f32 %v2671, %v44
  %v2730 = vmul.f32 %v2676, %v44
  %v2731 = vmul.f32 %v2681, %v44
  %v2732 = vmul.f32 %v2686, %v44
  %v2733 = vmul.f32 %v2691, %v44
  %v2734 = vmul.f32 %v2696, %v44
  %v2735 = vadd.f32 %v2723, %v2729
  %v2736 = vadd.f32 %v2724, %v2730
  %v2737 = vadd.f32 %v2725, %v2731
  %v2738 = vadd.f32 %v2726, %v2732
  %v2739 = vadd.f32 %v2727, %v2733
  %v2740 = vadd.f32 %v2728, %v2734
  %s2741 = scalar_lea.vmem %s1, 224
  %v2742 = vld [vmem:[%s2741] sm:$0xff]
  %v2743 = vld [vmem:[%s2741 + $0x8] sm:$0xff]
  %v2744 = vld [vmem:[%s2741 + $0x10] sm:$0xff]
  %v2745 = vld [vmem:[%s2741 + $0x18] sm:$0xff]
  %s2746 = scalar_lea.vmem %s2, 9
  %v2747 = vld [vmem:[%s2746] sm:$0x1]
  %v2749 = vlaneseq
  %v2750 = vshrl.u32 %v2749, 7
  %v2751 = vsub.s32 0, %v2750
  %v2752 = vrot.slane %v2747, %v2751
  %v2755 = vsel %vm56, %v2735, 0
  %v2758 = vsel %vm56, %v2736, 0
  %v2761 = vsel %vm56, %v2737, 0
  %v2764 = vsel %vm56, %v2738, 0
  %v2767 = vsel %vm56, %v2739, 0
  %v2770 = vsel %vm56, %v2740, 0
  %2772 = vmatprep.subr.mxu0 0.0
  %2773 = vmatpush1.msra.mxu0 0.0
  %2774 = vmatprep.subr.mxu0 0.0
  %2775 = vmatpush1.msra.mxu0 0.0
  %2776 = vmatprep.subr.mxu0 0.0
  %2777 = vmatpush1.msra.mxu0 0.0
  %2778 = vmatprep.subr.mxu0 0.0
  %2779 = vmatpush1.msra.mxu0 0.0
  %2780 = vmatprep.subr.mxu0 0.0
  %2781 = vmatpush1.msra.mxu0 0.0
  %2782 = vmatprep.subr.mxu0 0.0
  %2783 = vmatpush1.msra.mxu0 0.0
  %2784 = vmatprep.subr.mxu0 0.0
  %2785 = vmatpush1.msra.mxu0 0.0
  %2786 = vmatprep.subr.mxu0 0.0
  %2787 = vmatpush1.msra.mxu0 0.0
  %2788 = vmatprep.subr.mxu0 0.0
  %2789 = vmatpush1.msra.mxu0 0.0
  %2790 = vmatprep.subr.mxu0 0.0
  %2791 = vmatpush1.msra.mxu0 0.0
  %2792 = vmatprep.subr.mxu0 0.0
  %2793 = vmatpush1.msra.mxu0 0.0
  %2794 = vmatprep.subr.mxu0 0.0
  %2795 = vmatpush1.msra.mxu0 0.0
  %2796 = vmatprep.subr.mxu0 0.0
  %2797 = vmatpush1.msra.mxu0 %v2745
  %2798 = vmatprep.subr.mxu0 0.0
  %2799 = vmatpush1.msra.mxu0 %v2744
  %2800 = vmatprep.subr.mxu0 0.0
  %2801 = vmatpush1.msra.mxu0 %v2743
  %2802 = vmatprep.subr.mxu0 0.0
  %2803 = vmatpush1.msra.mxu0 %v2742
  %2804 = vmatprep.subr.mxu0 0.0
  %2805 = vmatpush2.msra.mxu0 0.0
  %2806 = vmatprep.subr.mxu0 0.0
  %2807 = vmatpush2.msra.mxu0 0.0
  %2808 = vmatprep.subr.mxu0 0.0
  %2809 = vmatpush2.msra.mxu0 0.0
  %2810 = vmatprep.subr.mxu0 0.0
  %2811 = vmatpush2.msra.mxu0 0.0
  %2812 = vmatprep.subr.mxu0 0.0
  %2813 = vmatpush2.msra.mxu0 0.0
  %2814 = vmatprep.subr.mxu0 0.0
  %2815 = vmatpush2.msra.mxu0 0.0
  %2816 = vmatprep.subr.mxu0 0.0
  %2817 = vmatpush2.msra.mxu0 0.0
  %2818 = vmatprep.subr.mxu0 0.0
  %2819 = vmatpush2.msra.mxu0 0.0
  %2820 = vmatprep.subr.mxu0 0.0
  %2821 = vmatpush2.msra.mxu0 0.0
  %2822 = vmatprep.subr.mxu0 0.0
  %2823 = vmatpush2.msra.mxu0 0.0
  %2824 = vmatprep.subr.mxu0 0.0
  %2825 = vmatpush2.msra.mxu0 0.0
  %2826 = vmatprep.subr.mxu0 0.0
  %2827 = vmatpush2.msra.mxu0 0.0
  %2828 = vmatprep.subr.mxu0 0.0
  %2829 = vmatpush2.msra.mxu0 0.0
  %2830 = vmatprep.subr.mxu0 0.0
  %2831 = vmatpush2.msra.mxu0 0.0
  %2832 = vmatprep.subr.mxu0 0.0
  %2833 = vmatpush2.msra.mxu0 0.0
  %2834 = vmatprep.subr.mxu0 0.0
  %2835 = vmatpush2.msra.mxu0 0.0
  %2836 = vmatprep.mubr.f32.mxu0 0.0
  %2837 = vmatmul.mubr.f32.gmra.mxu0 %v2755
  %v2838 = vpop.f32.mrf.mxu0
  %v2839 = vadd.f32 %v2752, %v2838
  %v2840 = vpop.f32.mrf.mxu0
  %2841 = vmatprep.mubr.f32.mxu0 0.0
  %2842 = vmatmul.mubr.f32.gmra.mxu0 %v2758
  %v2843 = vpop.f32.mrf.mxu0
  %v2844 = vadd.f32 %v2752, %v2843
  %v2845 = vpop.f32.mrf.mxu0
  %2846 = vmatprep.mubr.f32.mxu0 0.0
  %2847 = vmatmul.mubr.f32.gmra.mxu0 %v2761
  %v2848 = vpop.f32.mrf.mxu0
  %v2849 = vadd.f32 %v2752, %v2848
  %v2850 = vpop.f32.mrf.mxu0
  %2851 = vmatprep.mubr.f32.mxu0 0.0
  %2852 = vmatmul.mubr.f32.gmra.mxu0 %v2764
  %v2853 = vpop.f32.mrf.mxu0
  %v2854 = vadd.f32 %v2752, %v2853
  %v2855 = vpop.f32.mrf.mxu0
  %2856 = vmatprep.mubr.f32.mxu0 0.0
  %2857 = vmatmul.mubr.f32.gmra.mxu0 %v2767
  %v2858 = vpop.f32.mrf.mxu0
  %v2859 = vadd.f32 %v2752, %v2858
  %v2860 = vpop.f32.mrf.mxu0
  %2861 = vmatprep.mubr.f32.mxu0 0.0
  %2862 = vmatmul.mubr.f32.gmra.mxu0 %v2770
  %v2863 = vpop.f32.mrf.mxu0
  %v2864 = vadd.f32 %v2752, %v2863
  %v2865 = vpop.f32.mrf.mxu0
  %2866 = vdwg.mxu0
  %v2867 = vadd.f32 %v2839, %v1506
  %v2868 = vadd.f32 %v2844, %v1507
  %v2869 = vadd.f32 %v2849, %v1508
  %v2870 = vadd.f32 %v2854, %v1509
  %v2871 = vadd.f32 %v2859, %v1510
  %v2872 = vadd.f32 %v2864, %v1511
  %v2873 = vsel %vm56, %v2867, 0.0
  %2874 = vadd.xlane.f32.xlu0 %v2873
  %v2875 = vpop.xlane.xlu0 %2874
  %v2876 = vsel %vm56, %v2868, 0.0
  %2877 = vadd.xlane.f32.xlu0 %v2876
  %v2878 = vpop.xlane.xlu0 %2877
  %v2879 = vsel %vm56, %v2869, 0.0
  %2880 = vadd.xlane.f32.xlu0 %v2879
  %v2881 = vpop.xlane.xlu0 %2880
  %v2882 = vsel %vm56, %v2870, 0.0
  %2883 = vadd.xlane.f32.xlu0 %v2882
  %v2884 = vpop.xlane.xlu0 %2883
  %v2885 = vsel %vm56, %v2871, 0.0
  %2886 = vadd.xlane.f32.xlu0 %v2885
  %v2887 = vpop.xlane.xlu0 %2886
  %v2888 = vsel %vm56, %v2872, 0.0
  %2889 = vadd.xlane.f32.xlu0 %v2888
  %v2890 = vpop.xlane.xlu0 %2889
  %v2891 = vmul.f32 %v2875, %v1423
  %v2892 = vmul.f32 %v2878, %v1423
  %v2893 = vmul.f32 %v2881, %v1423
  %v2894 = vmul.f32 %v2884, %v1423
  %v2895 = vmul.f32 %v2887, %v1423
  %v2896 = vmul.f32 %v2890, %v1423
  %v2897 = vsub.f32 %v2867, %v2891
  %v2898 = vsub.f32 %v2868, %v2892
  %v2899 = vsub.f32 %v2869, %v2893
  %v2900 = vsub.f32 %v2870, %v2894
  %v2901 = vsub.f32 %v2871, %v2895
  %v2902 = vsub.f32 %v2872, %v2896
  %v2903 = vmul.f32 %v2897, %v2897
  %v2904 = vmul.f32 %v2898, %v2898
  %v2905 = vmul.f32 %v2899, %v2899
  %v2906 = vmul.f32 %v2900, %v2900
  %v2907 = vmul.f32 %v2901, %v2901
  %v2908 = vmul.f32 %v2902, %v2902
  %v2909 = vsel %vm56, %v2903, 0.0
  %2910 = vadd.xlane.f32.xlu0 %v2909
  %v2911 = vpop.xlane.xlu0 %2910
  %v2912 = vsel %vm56, %v2904, 0.0
  %2913 = vadd.xlane.f32.xlu0 %v2912
  %v2914 = vpop.xlane.xlu0 %2913
  %v2915 = vsel %vm56, %v2905, 0.0
  %2916 = vadd.xlane.f32.xlu0 %v2915
  %v2917 = vpop.xlane.xlu0 %2916
  %v2918 = vsel %vm56, %v2906, 0.0
  %2919 = vadd.xlane.f32.xlu0 %v2918
  %v2920 = vpop.xlane.xlu0 %2919
  %v2921 = vsel %vm56, %v2907, 0.0
  %2922 = vadd.xlane.f32.xlu0 %v2921
  %v2923 = vpop.xlane.xlu0 %2922
  %v2924 = vsel %vm56, %v2908, 0.0
  %2925 = vadd.xlane.f32.xlu0 %v2924
  %v2926 = vpop.xlane.xlu0 %2925
  %v2927 = vmul.f32 %v2911, %v1423
  %v2928 = vmul.f32 %v2914, %v1423
  %v2929 = vmul.f32 %v2917, %v1423
  %v2930 = vmul.f32 %v2920, %v1423
  %v2931 = vmul.f32 %v2923, %v1423
  %v2932 = vmul.f32 %v2926, %v1423
  %v2933 = vadd.f32 %v2927, 1e-05
  %v2934 = vadd.f32 %v2928, 1e-05
  %v2935 = vadd.f32 %v2929, 1e-05
  %v2936 = vadd.f32 %v2930, 1e-05
  %v2937 = vadd.f32 %v2931, 1e-05
  %v2938 = vadd.f32 %v2932, 1e-05
  %v2939 = vrsqrt.pop %v2933
  %v2940 = vrsqrt.pop %v2934
  %v2941 = vrsqrt.pop %v2935
  %v2942 = vrsqrt.pop %v2936
  %v2943 = vrsqrt.pop %v2937
  %v2944 = vrsqrt.pop %v2938
  %v2945 = vmul.f32 %v2897, %v2939
  %v2946 = vmul.f32 %v2898, %v2940
  %v2947 = vmul.f32 %v2899, %v2941
  %v2948 = vmul.f32 %v2900, %v2942
  %v2949 = vmul.f32 %v2901, %v2943
  %v2950 = vmul.f32 %v2902, %v2944
  %s2951 = scalar_lea.vmem %s2, 10
  %v2952 = vld [vmem:[%s2951] sm:$0x1]
  %v2954 = vlaneseq
  %v2955 = vshrl.u32 %v2954, 7
  %v2956 = vsub.s32 0, %v2955
  %v2957 = vrot.slane %v2952, %v2956
  %v2959 = vmul.f32 %v2945, %v2957
  %v2960 = vmul.f32 %v2946, %v2957
  %v2961 = vmul.f32 %v2947, %v2957
  %v2962 = vmul.f32 %v2948, %v2957
  %v2963 = vmul.f32 %v2949, %v2957
  %v2964 = vmul.f32 %v2950, %v2957
  %s2965 = scalar_lea.vmem %s2, 11
  %v2966 = vld [vmem:[%s2965] sm:$0x1]
  %v2968 = vlaneseq
  %v2969 = vshrl.u32 %v2968, 7
  %v2970 = vsub.s32 0, %v2969
  %v2971 = vrot.slane %v2966, %v2970
  %v2973 = vadd.f32 %v2959, %v2971
  %v2974 = vadd.f32 %v2960, %v2971
  %v2975 = vadd.f32 %v2961, %v2971
  %v2976 = vadd.f32 %v2962, %v2971
  %v2977 = vadd.f32 %v2963, %v2971
  %v2978 = vadd.f32 %v2964, %v2971
  %2979 = vst.msk [vmem:[%s4] sm:$0xff] %vm56, %v2973
  %2980 = vst.msk [vmem:[%s4 + $0x8] sm:$0xff] %vm56, %v2974
  %2981 = vst.msk [vmem:[%s4 + $0x10] sm:$0xff] %vm56, %v2975
  %2982 = vst.msk [vmem:[%s4 + $0x18] sm:$0xff] %vm56, %v2976
  %2983 = vst.msk [vmem:[%s4 + $0x20] sm:$0xff] %vm56, %v2977
  %2984 = vst.msk [vmem:[%s4 + $0x28] sm:$0xff] %vm56, %v2978
  // Predicated region
  $region18: #{tpu_custom_call.1} parent=0 // pred_check
    _
  $region19: #{tpu_custom_call.1} parent=0 // pred_check_branch
    %2986 = sbr.rel (0) target = $region21
  $region20: #{tpu_custom_call.1} parent=0 // pred_region
    _
  $region21: #{tpu_custom_call.1} parent=0 // pred_fallthru
    _
  // Predicated region
  $region22: #{tpu_custom_call.1} parent=0 // pred_check
    _
  $region23: #{tpu_custom_call.1} parent=0 // pred_check_branch
    %2988 = sbr.rel (0) target = $region25
  $region24: #{tpu_custom_call.1} parent=0 // pred_region
    _
  $region25: #{tpu_custom_call.1} parent=0 // pred_fallthru
    _

</llo_original>
